<compile_context>
chip_gen: v5e
topology: v5e:2x2
jax: 0.10.0
libtpu: 0.0.40
codegen_flags: <defaults>
</compile_context>

<pallas_src>
import functools

import jax
import jax.numpy as jnp
from jax import lax
from jax.experimental import pallas as pl
from jax.experimental.pallas import tpu as pltpu

EMBED = 300                      # embed_size from the module
N_HEADS = 2
HEAD_DIM = EMBED // N_HEADS      # 150
E_PAD = 384                      # 3 * 128 lanes
HD_PAD = 256                     # per-head dim padded to 2 * 128 lanes
QKV_COLS = 3 * N_HEADS * HD_PAD  # 1536 (Q_h0 | Q_h1 | K_h0 | K_h1 | V_h0 | V_h1)


def _att_kernel(x_ref, wqkv_ref, bqkv_ref, wo_ref, bo_ref, doc_ref, *, tb, seq):
    """One grid step = TB batch elements: fused QKV proj + per-head attention with
    pooled softmax probabilities + single output projection. Emits (TB, E_PAD)."""
    x = x_ref[...]                                                   # (tb*seq, E_PAD) bf16
    # One wide MXU pass for Q, K, V of both heads (bf16 x bf16 -> f32 accumulate),
    # bias add in f32, then immediately downcast the activation to bf16.
    qkv = jnp.dot(x, wqkv_ref[...], preferred_element_type=jnp.float32)
    qkv = (qkv + bqkv_ref[...]).astype(jnp.bfloat16)                 # (tb*seq, 1536) bf16
    # Single relayout: rows regrouped per batch element; all head accesses below
    # are 128-aligned lane slices of this one value (no further reshapes).
    qkv3 = qkv.reshape(tb, seq, QKV_COLS)                            # (tb, seq, 1536) bf16

    pv_heads = []
    for h in range(N_HEADS):
        qc = (0 * N_HEADS + h) * HD_PAD                              # lane offsets are
        kc = (1 * N_HEADS + h) * HD_PAD                              # multiples of 256
        vc = (2 * N_HEADS + h) * HD_PAD                              # -> aligned slices
        q3 = qkv3[:, :, qc:qc + HD_PAD]                              # (tb, seq, HD_PAD) bf16
        k3 = qkv3[:, :, kc:kc + HD_PAD]
        v3 = qkv3[:, :, vc:vc + HD_PAD]

        # Scores (1/sqrt(head_dim) already folded into the Q weights at pack time).
        # Padded head lanes are zero so they contribute nothing.
        s = jnp.einsum("bqd,bkd->bqk", q3, k3,
                       preferred_element_type=jnp.float32)           # (tb, seq, seq) f32
        s = s - jnp.max(s, axis=-1, keepdims=True)
        p = jnp.exp(s)
        p = p * pl.reciprocal(jnp.sum(p, axis=-1, keepdims=True), approx=True)

        # avg_pool over the sequence is linear -> pool the probabilities first:
        #   mean_q sum_k p[b,q,k] v[b,k,:] == sum_k (mean_q p[b,q,k]) v[b,k,:]
        pbar = jnp.mean(p, axis=1)                                   # (tb, seq) f32
        # Pooled PV contraction on VPU + sublane reduce (no tiny batched matmuls).
        pv = jnp.sum(pbar[:, :, None] * v3.astype(jnp.float32), axis=1)  # (tb, HD_PAD) f32
        pv_heads.append(pv)

    # Both heads share one output projection (pv layout matches packed Wo rows).
    pv_cat = jnp.concatenate(pv_heads, axis=-1).astype(jnp.bfloat16)     # (tb, 2*HD_PAD)
    doc = jnp.dot(pv_cat, wo_ref[...],
                  preferred_element_type=jnp.float32) + bo_ref[...]      # (tb, E_PAD) f32
    doc_ref[...] = doc                                                   # lane-dense f32 store


def pack_params(params):
    """Pad/repack PyTorch-style (in,out) weights into aligned bf16 tiles.
    Call ONCE and reuse the result across forward calls (hoisted per review)."""
    wq, wk, wv, wo, bq, bk, bv, bo, wf, bf = params
    scale = 1.0 / jnp.sqrt(jnp.float32(HEAD_DIM))

    wqkv = jnp.zeros((E_PAD, QKV_COLS), jnp.float32)
    bqkv = jnp.zeros((1, QKV_COLS), jnp.float32)
    # 1/sqrt(head_dim) folded into the Q columns (weights and bias).
    for i, (w, b) in enumerate(((wq * scale, bq * scale), (wk, bk), (wv, bv))):
        for h in range(N_HEADS):
            c0 = (i * N_HEADS + h) * HD_PAD
            wqkv = wqkv.at[:EMBED, c0:c0 + HEAD_DIM].set(
                w[:, h * HEAD_DIM:(h + 1) * HEAD_DIM])
            bqkv = bqkv.at[0, c0:c0 + HEAD_DIM].set(
                b[0, h * HEAD_DIM:(h + 1) * HEAD_DIM])

    wo_p = jnp.zeros((N_HEADS * HD_PAD, E_PAD), jnp.float32)
    for h in range(N_HEADS):
        wo_p = wo_p.at[h * HD_PAD:h * HD_PAD + HEAD_DIM, :EMBED].set(
            wo[h * HEAD_DIM:(h + 1) * HEAD_DIM, :])
    bo_p = jnp.zeros((1, E_PAD), jnp.float32).at[0, :EMBED].set(bo[0])

    return (wqkv.astype(jnp.bfloat16), bqkv,
            wo_p.astype(jnp.bfloat16), bo_p, wf, bf)


@functools.partial(jax.jit, static_argnames=("batch_tile",))
def att_forward(x, packed, batch_tile=128):
    """Returns (doc: (B, EMBED) f32, rating: (B, 1) f32).

    batch_tile: 128 is a good default (fits v7x's 64 MiB VMEM comfortably);
    on v5e/v6e (128 MiB VMEM) 256 amortizes per-step overhead further.
    NOTE(v7x): for real workloads pick batch_tile so ceil(B/batch_tile) >= 2
    to shard the "parallel" grid across both TensorCores.
    """
    B, L, _ = x.shape
    assert batch_tile % 8 == 0, "batch_tile must be a multiple of 8 (sublane tile)"
    tb = min(batch_tile, pl.cdiv(B, 8) * 8)          # don't over-pad tiny batches
    b_pad = pl.cdiv(B, tb) * tb

    wqkv, bqkv, wo_p, bo_p, wf, bf = packed

    # Single fused bf16 pad: embed 300 -> 384, batch B -> b_pad (no f32 copy in HBM).
    x_p = jnp.pad(x.astype(jnp.bfloat16),
                  ((0, b_pad - B), (0, 0), (0, E_PAD - EMBED)))
    x_flat = x_p.reshape(b_pad * L, E_PAD)           # contiguous: free reshape in XLA

    doc_pad = pl.pallas_call(
        functools.partial(_att_kernel, tb=tb, seq=L),
        out_shape=jax.ShapeDtypeStruct((b_pad, E_PAD), jnp.float32),
        grid=(b_pad // tb,),
        in_specs=[pl.BlockSpec((tb * L, E_PAD), lambda i: (i, 0)),
                  pl.BlockSpec((E_PAD, QKV_COLS), lambda i: (0, 0)),
                  pl.BlockSpec((1, QKV_COLS), lambda i: (0, 0)),
                  pl.BlockSpec((N_HEADS * HD_PAD, E_PAD), lambda i: (0, 0)),
                  pl.BlockSpec((1, E_PAD), lambda i: (0, 0))],
        out_specs=pl.BlockSpec((tb, E_PAD), lambda i: (i, 0)),
        compiler_params=pltpu.CompilerParams(
            dimension_semantics=("parallel",),
            vmem_limit_bytes=48 * 1024 * 1024),
    )(x_flat, wqkv, bqkv, wo_p, bo_p)

    doc = doc_pad[:B, :EMBED]                                        # drop padding
    # Final Linear(300 -> 1) is negligible compute; done in plain JAX.
    rating = jnp.dot(doc, wf.T, precision=lax.Precision.HIGHEST) + bf  # (B, 1)
    return doc, rating


def att_module_forward(x_tuple, packed, mode="train"):
    """Mirror of Att.forward: train -> MSE loss, eval -> rating of shape (B,)."""
    x, y = x_tuple
    _, rating = att_forward(x, packed)
    if mode == "train":
        return jnp.mean((rating - y) ** 2)      # nn.MSELoss (mean reduction)
    return rating.reshape(rating.shape[0])


def reference(x, params):
    """Pure-JAX reference mirroring the kernel's mixed precision (bf16 inputs /
    weights / qkv activation / pooled value, f32 accumulation and softmax)."""
    wq, wk, wv, wo, bq, bk, bv, bo, wf, bf = params
    c = lambda a: a.astype(jnp.bfloat16).astype(jnp.float32)
    hi = lax.Precision.HIGHEST
    scale = 1.0 / jnp.sqrt(jnp.float32(HEAD_DIM))
    xb = c(x)
    q = c(jnp.dot(xb, c(wq * scale), precision=hi) + bq * scale)
    k = c(jnp.dot(xb, c(wk), precision=hi) + bk)
    v = c(jnp.dot(xb, c(wv), precision=hi) + bv)
    pvs = []
    for h in range(N_HEADS):
        lo, hi_d = h * HEAD_DIM, (h + 1) * HEAD_DIM
        s = jnp.einsum("bqd,bkd->bqk", q[..., lo:hi_d], k[..., lo:hi_d], precision=hi)
        p = jax.nn.softmax(s, axis=-1)
        pbar = jnp.mean(p, axis=1)                                   # pooled probabilities
        pvs.append(jnp.einsum("bk,bkd->bd", pbar, v[..., lo:hi_d], precision=hi))
    pv = c(jnp.concatenate(pvs, axis=-1))                            # (B, EMBED)
    doc = jnp.dot(pv, c(wo), precision=hi) + bo                      # (B, EMBED)
    rating = jnp.dot(doc, wf.T, precision=hi) + bf                   # (B, 1)
    return doc, rating


def init_params(key):
    ks = jax.random.split(key, 11)
    bound = 1.0 / jnp.sqrt(jnp.float32(EMBED))
    u = lambda k, shape: jax.random.uniform(k, shape, jnp.float32, -bound, bound)
    wq = u(ks[0], (EMBED, EMBED)); bq = u(ks[1], (1, EMBED))
    wk = u(ks[2], (EMBED, EMBED)); bk = u(ks[3], (1, EMBED))
    wv = u(ks[4], (EMBED, EMBED)); bv = u(ks[5], (1, EMBED))
    wo = u(ks[6], (EMBED, EMBED)); bo = u(ks[7], (1, EMBED))
    wf = u(ks[8], (1, EMBED));     bf = u(ks[9], (1, 1))
    return (wq, wk, wv, wo, bq, bk, bv, bo, wf, bf)


if __name__ == "__main__":
    key = jax.random.PRNGKey(0)
    k_x, k_y, k_p = jax.random.split(key, 3)

    B, L = 2, 8
    x = jax.random.normal(k_x, (B, L, EMBED), jnp.float32)
    y = jax.random.normal(k_y, (B, 1), jnp.float32)
    params = init_params(k_p)

    # Pack/pad weights once (hoisted out of the forward path per review).
    packed = pack_params(params)

    # Run the Pallas kernel path.
    doc, rating = att_forward(x, packed)
    jax.block_until_ready((doc, rating))

    # Correctness check against pure-JAX reference with matching mixed precision.
    doc_ref, rating_ref = reference(x, params)
    assert doc.shape == (B, EMBED) and rating.shape == (B, 1)
    assert jnp.allclose(doc, doc_ref, atol=5e-3, rtol=5e-3), "doc mismatch"
    assert jnp.allclose(rating, rating_ref, atol=5e-3, rtol=5e-3), "rating mismatch"

    # Module-level forward (train mode -> MSE loss, eval mode -> (B,) ratings).
    loss = att_module_forward((x, y), packed, mode="train")
    preds = att_module_forward((x, y), packed, mode="eval")
    jax.block_until_ready((loss, preds))
    assert preds.shape == (B,)

    print("KERNEL_OK")
</pallas_src>

<mosaic_0001>
module attributes {stable_mosaic.version = 11 : i64} {
  func.func @_att_kernel(%arg0: i32, %arg1: memref<64x384xbf16, #tpu.memory_space<vmem>>, %arg2: memref<384x1536xbf16, #tpu.memory_space<vmem>>, %arg3: memref<1x1536xf32, #tpu.memory_space<vmem>>, %arg4: memref<512x384xbf16, #tpu.memory_space<vmem>>, %arg5: memref<1x384xf32, #tpu.memory_space<vmem>>, %arg6: memref<8x384xf32, #tpu.memory_space<vmem>>) attributes {dimension_semantics = [#tpu.dimension_semantics<parallel>], iteration_bounds = array<i64: 1>, scalar_prefetch = 0 : i64, scratch_operands = 0 : i64, tpu.core_type = #tpu.core_type<tc>, window_params = [{transform_indices = @transform_0, window_bounds = array<i64: 64, 384>}, {pipeline_mode = #tpu.pipeline_mode<synchronous>, transform_indices = @transform_1, window_bounds = array<i64: 384, 1536>}, {pipeline_mode = #tpu.pipeline_mode<synchronous>, transform_indices = @transform_2, window_bounds = array<i64: 1, 1536>}, {pipeline_mode = #tpu.pipeline_mode<synchronous>, transform_indices = @transform_3, window_bounds = array<i64: 512, 384>}, {pipeline_mode = #tpu.pipeline_mode<synchronous>, transform_indices = @transform_4, window_bounds = array<i64: 1, 384>}, {transform_indices = @transform_5, window_bounds = array<i64: 8, 384>}]} {
    %c0 = arith.constant 0 : index
    %c0_0 = arith.constant 0 : index
    %0 = vector.load %arg1[%c0, %c0_0] : memref<64x384xbf16, #tpu.memory_space<vmem>>, vector<64x384xbf16>
    %c0_1 = arith.constant 0 : index
    %c0_2 = arith.constant 0 : index
    %1 = vector.load %arg2[%c0_1, %c0_2] : memref<384x1536xbf16, #tpu.memory_space<vmem>>, vector<384x1536xbf16>
    %cst = arith.constant dense<0.000000e+00> : vector<64x1536xf32>
    %2 = tpu.matmul %0, %1, %cst {dimension_numbers = #tpu.dot_dimension_numbers<[1], [0], [0], [1], [0, 0, 1, 1], [], []>} : vector<64x384xbf16>, vector<384x1536xbf16>, vector<64x1536xf32> -> vector<64x1536xf32>
    %c0_3 = arith.constant 0 : index
    %c0_4 = arith.constant 0 : index
    %3 = vector.load %arg3[%c0_3, %c0_4] : memref<1x1536xf32, #tpu.memory_space<vmem>>, vector<1x1536xf32>
    %4 = vector.broadcast %3 : vector<1x1536xf32> to vector<64x1536xf32>
    %5 = arith.addf %2, %4 : vector<64x1536xf32>
    %6 = arith.truncf %5 : vector<64x1536xf32> to vector<64x1536xbf16>
    %7 = vector.shape_cast %6 : vector<64x1536xbf16> to vector<8x8x1536xbf16>
    %8 = vector.extract_strided_slice %7 {offsets = [0, 0, 0], sizes = [8, 8, 256], strides = [1, 1, 1]} : vector<8x8x1536xbf16> to vector<8x8x256xbf16>
    %9 = vector.extract_strided_slice %7 {offsets = [0, 0, 512], sizes = [8, 8, 256], strides = [1, 1, 1]} : vector<8x8x1536xbf16> to vector<8x8x256xbf16>
    %10 = vector.extract_strided_slice %7 {offsets = [0, 0, 1024], sizes = [8, 8, 256], strides = [1, 1, 1]} : vector<8x8x1536xbf16> to vector<8x8x256xbf16>
    "tpu.trace_start"() <{level = 10 : i32, message = "bqd,bkd->bqk"}> : () -> ()
    %cst_5 = arith.constant dense<0.000000e+00> : vector<8x8x8xf32>
    %11 = tpu.matmul %8, %9, %cst_5 {dimension_numbers = #tpu.dot_dimension_numbers<[2], [2], [1], [1], [0, 0, 0, 1, 1, 1], [0], [0]>} : vector<8x8x256xbf16>, vector<8x8x256xbf16>, vector<8x8x8xf32> -> vector<8x8x8xf32>
    "tpu.trace_stop"() : () -> ()
    %cst_6 = arith.constant dense<0xFF800000> : vector<8x8xf32>
    %12 = vector.multi_reduction <maximumf>, %11, %cst_6 [2] : vector<8x8x8xf32> to vector<8x8xf32>
    %13 = vector.shape_cast %12 : vector<8x8xf32> to vector<8x8x1xf32>
    %14 = vector.broadcast %13 : vector<8x8x1xf32> to vector<8x8x8xf32>
    %15 = arith.subf %11, %14 : vector<8x8x8xf32>
    %16 = math.exp %15 : vector<8x8x8xf32>
    %cst_7 = arith.constant dense<0.000000e+00> : vector<8x8xf32>
    %17 = vector.multi_reduction <add>, %16, %cst_7 [2] : vector<8x8x8xf32> to vector<8x8xf32>
    %18 = vector.shape_cast %17 : vector<8x8xf32> to vector<8x8x1xf32>
    %19 = tpu.reciprocal %18 {approx = true} : vector<8x8x1xf32> -> vector<8x8x1xf32>
    %20 = vector.broadcast %19 : vector<8x8x1xf32> to vector<8x8x8xf32>
    %21 = arith.mulf %16, %20 : vector<8x8x8xf32>
    %cst_8 = arith.constant dense<0.000000e+00> : vector<8x8xf32>
    %22 = vector.multi_reduction <add>, %21, %cst_8 [1] : vector<8x8x8xf32> to vector<8x8xf32>
    %cst_9 = arith.constant 8.000000e+00 : f32
    %23 = vector.broadcast %cst_9 : f32 to vector<8x8xf32>
    %24 = arith.divf %22, %23 : vector<8x8xf32>
    %25 = vector.shape_cast %24 : vector<8x8xf32> to vector<8x8x1xf32>
    %26 = arith.extf %10 : vector<8x8x256xbf16> to vector<8x8x256xf32>
    %27 = vector.broadcast %25 : vector<8x8x1xf32> to vector<8x8x256xf32>
    %28 = arith.mulf %27, %26 : vector<8x8x256xf32>
    %cst_10 = arith.constant dense<0.000000e+00> : vector<8x256xf32>
    %29 = vector.multi_reduction <add>, %28, %cst_10 [1] : vector<8x8x256xf32> to vector<8x256xf32>
    %30 = vector.extract_strided_slice %7 {offsets = [0, 0, 256], sizes = [8, 8, 256], strides = [1, 1, 1]} : vector<8x8x1536xbf16> to vector<8x8x256xbf16>
    %31 = vector.extract_strided_slice %7 {offsets = [0, 0, 768], sizes = [8, 8, 256], strides = [1, 1, 1]} : vector<8x8x1536xbf16> to vector<8x8x256xbf16>
    %32 = vector.extract_strided_slice %7 {offsets = [0, 0, 1280], sizes = [8, 8, 256], strides = [1, 1, 1]} : vector<8x8x1536xbf16> to vector<8x8x256xbf16>
    "tpu.trace_start"() <{level = 10 : i32, message = "bqd,bkd->bqk"}> : () -> ()
    %cst_11 = arith.constant dense<0.000000e+00> : vector<8x8x8xf32>
    %33 = tpu.matmul %30, %31, %cst_11 {dimension_numbers = #tpu.dot_dimension_numbers<[2], [2], [1], [1], [0, 0, 0, 1, 1, 1], [0], [0]>} : vector<8x8x256xbf16>, vector<8x8x256xbf16>, vector<8x8x8xf32> -> vector<8x8x8xf32>
    "tpu.trace_stop"() : () -> ()
    %cst_12 = arith.constant dense<0xFF800000> : vector<8x8xf32>
    %34 = vector.multi_reduction <maximumf>, %33, %cst_12 [2] : vector<8x8x8xf32> to vector<8x8xf32>
    %35 = vector.shape_cast %34 : vector<8x8xf32> to vector<8x8x1xf32>
    %36 = vector.broadcast %35 : vector<8x8x1xf32> to vector<8x8x8xf32>
    %37 = arith.subf %33, %36 : vector<8x8x8xf32>
    %38 = math.exp %37 : vector<8x8x8xf32>
    %cst_13 = arith.constant dense<0.000000e+00> : vector<8x8xf32>
    %39 = vector.multi_reduction <add>, %38, %cst_13 [2] : vector<8x8x8xf32> to vector<8x8xf32>
    %40 = vector.shape_cast %39 : vector<8x8xf32> to vector<8x8x1xf32>
    %41 = tpu.reciprocal %40 {approx = true} : vector<8x8x1xf32> -> vector<8x8x1xf32>
    %42 = vector.broadcast %41 : vector<8x8x1xf32> to vector<8x8x8xf32>
    %43 = arith.mulf %38, %42 : vector<8x8x8xf32>
    %cst_14 = arith.constant dense<0.000000e+00> : vector<8x8xf32>
    %44 = vector.multi_reduction <add>, %43, %cst_14 [1] : vector<8x8x8xf32> to vector<8x8xf32>
    %cst_15 = arith.constant 8.000000e+00 : f32
    %45 = vector.broadcast %cst_15 : f32 to vector<8x8xf32>
    %46 = arith.divf %44, %45 : vector<8x8xf32>
    %47 = vector.shape_cast %46 : vector<8x8xf32> to vector<8x8x1xf32>
    %48 = arith.extf %32 : vector<8x8x256xbf16> to vector<8x8x256xf32>
    %49 = vector.broadcast %47 : vector<8x8x1xf32> to vector<8x8x256xf32>
    %50 = arith.mulf %49, %48 : vector<8x8x256xf32>
    %cst_16 = arith.constant dense<0.000000e+00> : vector<8x256xf32>
    %51 = vector.multi_reduction <add>, %50, %cst_16 [1] : vector<8x8x256xf32> to vector<8x256xf32>
    %52 = tpu.concatenate %29, %51 in 1 : vector<8x256xf32>, vector<8x256xf32> -> vector<8x512xf32>
    %53 = arith.truncf %52 : vector<8x512xf32> to vector<8x512xbf16>
    %c0_17 = arith.constant 0 : index
    %c0_18 = arith.constant 0 : index
    %54 = vector.load %arg4[%c0_17, %c0_18] : memref<512x384xbf16, #tpu.memory_space<vmem>>, vector<512x384xbf16>
    %cst_19 = arith.constant dense<0.000000e+00> : vector<8x384xf32>
    %55 = tpu.matmul %53, %54, %cst_19 {dimension_numbers = #tpu.dot_dimension_numbers<[1], [0], [0], [1], [0, 0, 1, 1], [], []>} : vector<8x512xbf16>, vector<512x384xbf16>, vector<8x384xf32> -> vector<8x384xf32>
    %c0_20 = arith.constant 0 : index
    %c0_21 = arith.constant 0 : index
    %56 = vector.load %arg5[%c0_20, %c0_21] : memref<1x384xf32, #tpu.memory_space<vmem>>, vector<1x384xf32>
    %57 = vector.broadcast %56 : vector<1x384xf32> to vector<8x384xf32>
    %58 = arith.addf %55, %57 : vector<8x384xf32>
    %c0_22 = arith.constant 0 : index
    %c0_23 = arith.constant 0 : index
    %59 = vector.load %arg6[%c0_22, %c0_23] : memref<8x384xf32, #tpu.memory_space<vmem>>, vector<8x384xf32>
    tpu.vector_store %arg6[%c0_22, %c0_23], %58 {strides = array<i32>} : memref<8x384xf32, #tpu.memory_space<vmem>>, vector<8x384xf32>,
    return
  }
  func.func @transform_0(%arg0: i32) -> (i32, i32) {
    %c0_i32 = arith.constant 0 : i32
    %c0_i32_0 = arith.constant 0 : i32
    return %arg0, %c0_i32 : i32, i32
  }
  func.func @transform_1(%arg0: i32) -> (i32, i32) {
    %c0_i32 = arith.constant 0 : i32
    %c0_i32_0 = arith.constant 0 : i32
    %c0_i32_1 = arith.constant 0 : i32
    return %c0_i32, %c0_i32_0 : i32, i32
  }
  func.func @transform_2(%arg0: i32) -> (i32, i32) {
    %c0_i32 = arith.constant 0 : i32
    %c0_i32_0 = arith.constant 0 : i32
    %c0_i32_1 = arith.constant 0 : i32
    return %c0_i32, %c0_i32_0 : i32, i32
  }
  func.func @transform_3(%arg0: i32) -> (i32, i32) {
    %c0_i32 = arith.constant 0 : i32
    %c0_i32_0 = arith.constant 0 : i32
    %c0_i32_1 = arith.constant 0 : i32
    return %c0_i32, %c0_i32_0 : i32, i32
  }
  func.func @transform_4(%arg0: i32) -> (i32, i32) {
    %c0_i32 = arith.constant 0 : i32
    %c0_i32_0 = arith.constant 0 : i32
    %c0_i32_1 = arith.constant 0 : i32
    return %c0_i32, %c0_i32_0 : i32, i32
  }
  func.func @transform_5(%arg0: i32) -> (i32, i32) {
    %c0_i32 = arith.constant 0 : i32
    %c0_i32_0 = arith.constant 0 : i32
    return %arg0, %c0_i32 : i32, i32
  }
}

</mosaic_0001>

<llo_original>
// kernel: att_forward.1
$region0: #{att_forward.1}
  #allocation0 [shape = 'u32[]', space=smem, size = 0x4, offset = 0x4, fixed_abs, tag = 'smem constant byte address 0x4 - core index']
  #allocation1 [shape = 'u32[72,128]{1,0:T(1,128)}', space=vmem, size = 0x9000, scoped, tag = 'internal scratch']
  %s0 = inlined_call_operand.vmem [shape: bf16[64,384], index: 0, kind: input, shape index: {}]
  %s1 = inlined_call_operand.hbm [shape: bf16[384,1536], index: 1, kind: input, shape index: {}]
  %s2 = inlined_call_operand.hbm [shape: f32[1,1536], index: 2, kind: input, shape index: {}]
  %s3 = inlined_call_operand.hbm [shape: bf16[512,384], index: 3, kind: input, shape index: {}]
  %s4 = inlined_call_operand.hbm [shape: f32[1,384], index: 4, kind: input, shape index: {}]
  %s5 = inlined_call_operand.vmem [shape: f32[8,384], index: 5, kind: output, shape index: {}]
  %s6 = sld [smem:[#allocation0]]
  $region46: #{att_forward.1} parent=0
    _
  %s8 = ssub.s32 1, %s6
  %s9 = scalar_select 0, %s8, %s6
  $region1: #{att_forward.1} parent=0
    #allocation2 [shape = 'u8[1179648]{0}', space=vmem, size = 0x120000, scoped, tag = 'input window, operand 1, single buffered']
    #allocation3 [shape = 's32[1]{0}', space=sflag, size = 0x4, scoped, tag = 'scoped memory for att_forward.1']
    #allocation4 [shape = 'u8[6144]{0}', space=vmem, size = 0x1800, scoped, tag = 'input window, operand 2, single buffered']
    #allocation5 [shape = 's32[1]{0}', space=sflag, size = 0x4, scoped, tag = 'scoped memory for att_forward.1']
    #allocation6 [shape = 'u8[393216]{0}', space=vmem, size = 0x60000, scoped, tag = 'input window, operand 3, single buffered']
    #allocation7 [shape = 'u8[1536]{0}', space=vmem, size = 0x800, scoped, tag = 'input window, operand 4, single buffered']
    #allocation8 [shape = 's32[1]{0}', space=sflag, size = 0x4, scoped, tag = 'scoped memory for att_forward.1']
    %10 = vsyncpa [#allocation3], 0
    %11 = vsyncpa [#allocation5], 0
    %12 = vsyncpa [#allocation8], 0
    // Predicated region
    $region2: #{att_forward.1} parent=1 // pred_check
      _
    $region3: #{att_forward.1} parent=1 // pred_check_branch
      %14 = sbr.rel (0) target = $region5
    $region4: #{att_forward.1} parent=1 // pred_region
      _
    $region5: #{att_forward.1} parent=1 // pred_fallthru
      _
    // Predicated region
    $region6: #{att_forward.1} parent=1 // pred_check
      _
    $region7: #{att_forward.1} parent=1 // pred_check_branch
      %16 = sbr.rel (0) target = $region9
    $region8: #{att_forward.1} parent=1 // pred_region
      %18 = vsyncadd [#allocation3], 0
      %s19 = sshll.u32 %s1, 4
      %s20 = int_to_ptr.hbm [resolvable:$true] %s19
      %s21 = sshll.u32 [#allocation2], 4
      %s22 = int_to_ptr.vmem [resolvable:$true] %s21
      %27 = dma.hbm_to_vmem [thread:$0]  %s20, 36864, %s22, [#allocation3], 768, 768, 48
    $region9: #{att_forward.1} parent=1 // pred_fallthru
      _
    // Predicated region
    $region10: #{att_forward.1} parent=1 // pred_check
      _
    $region11: #{att_forward.1} parent=1 // pred_check_branch
      %29 = sbr.rel (0) target = $region13
    $region12: #{att_forward.1} parent=1 // pred_region
      %31 = vsyncadd [#allocation5], 0
      %s33 = sshll.u32 %s2, 4
      %s34 = int_to_ptr.hbm [resolvable:$true] %s33
      %s35 = sshll.u32 [#allocation4], 4
      %s36 = int_to_ptr.vmem [resolvable:$true] %s35
      %38 = dma.hbm_to_vmem [thread:$0]  %s34, 192, %s36, [#allocation5]
    $region13: #{att_forward.1} parent=1 // pred_fallthru
      _
    // Predicated region
    $region14: #{att_forward.1} parent=1 // pred_check
      _
    $region15: #{att_forward.1} parent=1 // pred_check_branch
      %40 = sbr.rel (0) target = $region17
    $region16: #{att_forward.1} parent=1 // pred_region
      %42 = vsyncadd [#allocation5], 0
      %s43 = sshll.u32 %s3, 4
      %s44 = int_to_ptr.hbm [resolvable:$true] %s43
      %s45 = sshll.u32 [#allocation6], 4
      %s46 = int_to_ptr.vmem [resolvable:$true] %s45
      %51 = dma.hbm_to_vmem [thread:$0]  %s44, 12288, %s46, [#allocation5], 192, 192, 12
    $region17: #{att_forward.1} parent=1 // pred_fallthru
      _
    // Predicated region
    $region18: #{att_forward.1} parent=1 // pred_check
      _
    $region19: #{att_forward.1} parent=1 // pred_check_branch
      %53 = sbr.rel (0) target = $region21
    $region20: #{att_forward.1} parent=1 // pred_region
      %55 = vsyncadd [#allocation8], 0
      %s57 = sshll.u32 %s4, 4
      %s58 = int_to_ptr.hbm [resolvable:$true] %s57
      %s59 = sshll.u32 [#allocation7], 4
      %s60 = int_to_ptr.vmem [resolvable:$true] %s59
      %62 = dma.hbm_to_vmem [thread:$0]  %s58, 48, %s60, [#allocation8]
    $region21: #{att_forward.1} parent=1 // pred_fallthru
      _
    // Predicated region
    $region22: #{att_forward.1} parent=1 // pred_check
      _
    $region23: #{att_forward.1} parent=1 // pred_check_branch
      %64 = sbr.rel (0) target = $region25
    $region24: #{att_forward.1} parent=1 // pred_region
      %66 = dma.done [#allocation3], 36864
    $region25: #{att_forward.1} parent=1 // pred_fallthru
      _
    // Predicated region
    $region26: #{att_forward.1} parent=1 // pred_check
      _
    $region27: #{att_forward.1} parent=1 // pred_check_branch
      %68 = sbr.rel (0) target = $region29
    $region28: #{att_forward.1} parent=1 // pred_region
      %70 = dma.done [#allocation5], 192
    $region29: #{att_forward.1} parent=1 // pred_fallthru
      _
    // Predicated region
    $region30: #{att_forward.1} parent=1 // pred_check
      _
    $region31: #{att_forward.1} parent=1 // pred_check_branch
      %72 = sbr.rel (0) target = $region33
    $region32: #{att_forward.1} parent=1 // pred_region
      %74 = dma.done [#allocation5], 12288
    $region33: #{att_forward.1} parent=1 // pred_fallthru
      _
    // Predicated region
    $region34: #{att_forward.1} parent=1 // pred_check
      _
    $region35: #{att_forward.1} parent=1 // pred_check_branch
      %76 = sbr.rel (0) target = $region37
    $region36: #{att_forward.1} parent=1 // pred_region
      %78 = dma.done [#allocation8], 48
    $region37: #{att_forward.1} parent=1 // pred_fallthru
      _
    %v80 = vld [vmem:[%s0] sm:$0xff]
    %v81 = vld [vmem:[%s0 + $0x8] sm:$0xf]
    %v82 = vld [vmem:[%s0 + $0xc] sm:$0xff]
    %v83 = vld [vmem:[%s0 + $0x14] sm:$0xf]
    %v84 = vld [vmem:[%s0 + $0x18] sm:$0xff]
    %v85 = vld [vmem:[%s0 + $0x20] sm:$0xf]
    %v86 = vld [vmem:[%s0 + $0x24] sm:$0xff]
    %v87 = vld [vmem:[%s0 + $0x2c] sm:$0xf]
    %v88 = vld [vmem:[%s0 + $0x30] sm:$0xff]
    %v89 = vld [vmem:[%s0 + $0x38] sm:$0xf]
    %v90 = vld [vmem:[%s0 + $0x3c] sm:$0xff]
    %v91 = vld [vmem:[%s0 + $0x44] sm:$0xf]
    %v92 = vld [vmem:[%s0 + $0x48] sm:$0xff]
    %v93 = vld [vmem:[%s0 + $0x50] sm:$0xf]
    %v94 = vld [vmem:[%s0 + $0x54] sm:$0xff]
    %v95 = vld [vmem:[%s0 + $0x5c] sm:$0xf]
    %v96 = vld [vmem:[#allocation2] sm:$0xff]
    %v97 = vld [vmem:[#allocation2 + $0x8] sm:$0xff]
    %v98 = vld [vmem:[#allocation2 + $0x10] sm:$0xff]
    %v99 = vld [vmem:[#allocation2 + $0x18] sm:$0xff]
    %v100 = vld [vmem:[#allocation2 + $0x20] sm:$0xff]
    %v101 = vld [vmem:[#allocation2 + $0x28] sm:$0xff]
    %v102 = vld [vmem:[#allocation2 + $0x30] sm:$0xff]
    %v103 = vld [vmem:[#allocation2 + $0x38] sm:$0xff]
    %v104 = vld [vmem:[#allocation2 + $0x40] sm:$0xff]
    %v105 = vld [vmem:[#allocation2 + $0x48] sm:$0xff]
    %v106 = vld [vmem:[#allocation2 + $0x50] sm:$0xff]
    %v107 = vld [vmem:[#allocation2 + $0x58] sm:$0xff]
    %v108 = vld [vmem:[#allocation2 + $0x60] sm:$0xff]
    %v109 = vld [vmem:[#allocation2 + $0x68] sm:$0xff]
    %v110 = vld [vmem:[#allocation2 + $0x70] sm:$0xff]
    %v111 = vld [vmem:[#allocation2 + $0x78] sm:$0xff]
    %v112 = vld [vmem:[#allocation2 + $0x80] sm:$0xff]
    %v113 = vld [vmem:[#allocation2 + $0x88] sm:$0xff]
    %v114 = vld [vmem:[#allocation2 + $0x90] sm:$0xff]
    %v115 = vld [vmem:[#allocation2 + $0x98] sm:$0xff]
    %v116 = vld [vmem:[#allocation2 + $0xa0] sm:$0xff]
    %v117 = vld [vmem:[#allocation2 + $0xa8] sm:$0xff]
    %v118 = vld [vmem:[#allocation2 + $0xb0] sm:$0xff]
    %v119 = vld [vmem:[#allocation2 + $0xb8] sm:$0xff]
    %v120 = vld [vmem:[#allocation2 + $0xc0] sm:$0xff]
    %v121 = vld [vmem:[#allocation2 + $0xc8] sm:$0xff]
    %v122 = vld [vmem:[#allocation2 + $0xd0] sm:$0xff]
    %v123 = vld [vmem:[#allocation2 + $0xd8] sm:$0xff]
    %v124 = vld [vmem:[#allocation2 + $0xe0] sm:$0xff]
    %v125 = vld [vmem:[#allocation2 + $0xe8] sm:$0xff]
    %v126 = vld [vmem:[#allocation2 + $0xf0] sm:$0xff]
    %v127 = vld [vmem:[#allocation2 + $0xf8] sm:$0xff]
    %v128 = vld [vmem:[#allocation2 + $0x100] sm:$0xff]
    %v129 = vld [vmem:[#allocation2 + $0x108] sm:$0xff]
    %v130 = vld [vmem:[#allocation2 + $0x110] sm:$0xff]
    %v131 = vld [vmem:[#allocation2 + $0x118] sm:$0xff]
    %v132 = vld [vmem:[#allocation2 + $0x120] sm:$0xff]
    %v133 = vld [vmem:[#allocation2 + $0x128] sm:$0xff]
    %v134 = vld [vmem:[#allocation2 + $0x130] sm:$0xff]
    %v135 = vld [vmem:[#allocation2 + $0x138] sm:$0xff]
    %v136 = vld [vmem:[#allocation2 + $0x140] sm:$0xff]
    %v137 = vld [vmem:[#allocation2 + $0x148] sm:$0xff]
    %v138 = vld [vmem:[#allocation2 + $0x150] sm:$0xff]
    %v139 = vld [vmem:[#allocation2 + $0x158] sm:$0xff]
    %v140 = vld [vmem:[#allocation2 + $0x160] sm:$0xff]
    %v141 = vld [vmem:[#allocation2 + $0x168] sm:$0xff]
    %v142 = vld [vmem:[#allocation2 + $0x170] sm:$0xff]
    %v143 = vld [vmem:[#allocation2 + $0x178] sm:$0xff]
    %v144 = vld [vmem:[#allocation2 + $0x180] sm:$0xff]
    %v145 = vld [vmem:[#allocation2 + $0x188] sm:$0xff]
    %v146 = vld [vmem:[#allocation2 + $0x190] sm:$0xff]
    %v147 = vld [vmem:[#allocation2 + $0x198] sm:$0xff]
    %v148 = vld [vmem:[#allocation2 + $0x1a0] sm:$0xff]
    %v149 = vld [vmem:[#allocation2 + $0x1a8] sm:$0xff]
    %v150 = vld [vmem:[#allocation2 + $0x1b0] sm:$0xff]
    %v151 = vld [vmem:[#allocation2 + $0x1b8] sm:$0xff]
    %v152 = vld [vmem:[#allocation2 + $0x1c0] sm:$0xff]
    %v153 = vld [vmem:[#allocation2 + $0x1c8] sm:$0xff]
    %v154 = vld [vmem:[#allocation2 + $0x1d0] sm:$0xff]
    %v155 = vld [vmem:[#allocation2 + $0x1d8] sm:$0xff]
    %v156 = vld [vmem:[#allocation2 + $0x1e0] sm:$0xff]
    %v157 = vld [vmem:[#allocation2 + $0x1e8] sm:$0xff]
    %v158 = vld [vmem:[#allocation2 + $0x1f0] sm:$0xff]
    %v159 = vld [vmem:[#allocation2 + $0x1f8] sm:$0xff]
    %v160 = vld [vmem:[#allocation2 + $0x200] sm:$0xff]
    %v161 = vld [vmem:[#allocation2 + $0x208] sm:$0xff]
    %v162 = vld [vmem:[#allocation2 + $0x210] sm:$0xff]
    %v163 = vld [vmem:[#allocation2 + $0x218] sm:$0xff]
    %v164 = vld [vmem:[#allocation2 + $0x220] sm:$0xff]
    %v165 = vld [vmem:[#allocation2 + $0x228] sm:$0xff]
    %v166 = vld [vmem:[#allocation2 + $0x230] sm:$0xff]
    %v167 = vld [vmem:[#allocation2 + $0x238] sm:$0xff]
    %v168 = vld [vmem:[#allocation2 + $0x240] sm:$0xff]
    %v169 = vld [vmem:[#allocation2 + $0x248] sm:$0xff]
    %v170 = vld [vmem:[#allocation2 + $0x250] sm:$0xff]
    %v171 = vld [vmem:[#allocation2 + $0x258] sm:$0xff]
    %v172 = vld [vmem:[#allocation2 + $0x260] sm:$0xff]
    %v173 = vld [vmem:[#allocation2 + $0x268] sm:$0xff]
    %v174 = vld [vmem:[#allocation2 + $0x270] sm:$0xff]
    %v175 = vld [vmem:[#allocation2 + $0x278] sm:$0xff]
    %v176 = vld [vmem:[#allocation2 + $0x280] sm:$0xff]
    %v177 = vld [vmem:[#allocation2 + $0x288] sm:$0xff]
    %v178 = vld [vmem:[#allocation2 + $0x290] sm:$0xff]
    %v179 = vld [vmem:[#allocation2 + $0x298] sm:$0xff]
    %v180 = vld [vmem:[#allocation2 + $0x2a0] sm:$0xff]
    %v181 = vld [vmem:[#allocation2 + $0x2a8] sm:$0xff]
    %v182 = vld [vmem:[#allocation2 + $0x2b0] sm:$0xff]
    %v183 = vld [vmem:[#allocation2 + $0x2b8] sm:$0xff]
    %v184 = vld [vmem:[#allocation2 + $0x2c0] sm:$0xff]
    %v185 = vld [vmem:[#allocation2 + $0x2c8] sm:$0xff]
    %v186 = vld [vmem:[#allocation2 + $0x2d0] sm:$0xff]
    %v187 = vld [vmem:[#allocation2 + $0x2d8] sm:$0xff]
    %v188 = vld [vmem:[#allocation2 + $0x2e0] sm:$0xff]
    %v189 = vld [vmem:[#allocation2 + $0x2e8] sm:$0xff]
    %v190 = vld [vmem:[#allocation2 + $0x2f0] sm:$0xff]
    %v191 = vld [vmem:[#allocation2 + $0x2f8] sm:$0xff]
    %v192 = vld [vmem:[#allocation2 + $0x300] sm:$0xff]
    %v193 = vld [vmem:[#allocation2 + $0x308] sm:$0xff]
    %v194 = vld [vmem:[#allocation2 + $0x310] sm:$0xff]
    %v195 = vld [vmem:[#allocation2 + $0x318] sm:$0xff]
    %v196 = vld [vmem:[#allocation2 + $0x320] sm:$0xff]
    %v197 = vld [vmem:[#allocation2 + $0x328] sm:$0xff]
    %v198 = vld [vmem:[#allocation2 + $0x330] sm:$0xff]
    %v199 = vld [vmem:[#allocation2 + $0x338] sm:$0xff]
    %v200 = vld [vmem:[#allocation2 + $0x340] sm:$0xff]
    %v201 = vld [vmem:[#allocation2 + $0x348] sm:$0xff]
    %v202 = vld [vmem:[#allocation2 + $0x350] sm:$0xff]
    %v203 = vld [vmem:[#allocation2 + $0x358] sm:$0xff]
    %v204 = vld [vmem:[#allocation2 + $0x360] sm:$0xff]
    %v205 = vld [vmem:[#allocation2 + $0x368] sm:$0xff]
    %v206 = vld [vmem:[#allocation2 + $0x370] sm:$0xff]
    %v207 = vld [vmem:[#allocation2 + $0x378] sm:$0xff]
    %v208 = vld [vmem:[#allocation2 + $0x380] sm:$0xff]
    %v209 = vld [vmem:[#allocation2 + $0x388] sm:$0xff]
    %v210 = vld [vmem:[#allocation2 + $0x390] sm:$0xff]
    %v211 = vld [vmem:[#allocation2 + $0x398] sm:$0xff]
    %v212 = vld [vmem:[#allocation2 + $0x3a0] sm:$0xff]
    %v213 = vld [vmem:[#allocation2 + $0x3a8] sm:$0xff]
    %v214 = vld [vmem:[#allocation2 + $0x3b0] sm:$0xff]
    %v215 = vld [vmem:[#allocation2 + $0x3b8] sm:$0xff]
    %v216 = vld [vmem:[#allocation2 + $0x3c0] sm:$0xff]
    %v217 = vld [vmem:[#allocation2 + $0x3c8] sm:$0xff]
    %v218 = vld [vmem:[#allocation2 + $0x3d0] sm:$0xff]
    %v219 = vld [vmem:[#allocation2 + $0x3d8] sm:$0xff]
    %v220 = vld [vmem:[#allocation2 + $0x3e0] sm:$0xff]
    %v221 = vld [vmem:[#allocation2 + $0x3e8] sm:$0xff]
    %v222 = vld [vmem:[#allocation2 + $0x3f0] sm:$0xff]
    %v223 = vld [vmem:[#allocation2 + $0x3f8] sm:$0xff]
    %v224 = vld [vmem:[#allocation2 + $0x400] sm:$0xff]
    %v225 = vld [vmem:[#allocation2 + $0x408] sm:$0xff]
    %v226 = vld [vmem:[#allocation2 + $0x410] sm:$0xff]
    %v227 = vld [vmem:[#allocation2 + $0x418] sm:$0xff]
    %v228 = vld [vmem:[#allocation2 + $0x420] sm:$0xff]
    %v229 = vld [vmem:[#allocation2 + $0x428] sm:$0xff]
    %v230 = vld [vmem:[#allocation2 + $0x430] sm:$0xff]
    %v231 = vld [vmem:[#allocation2 + $0x438] sm:$0xff]
    %v232 = vld [vmem:[#allocation2 + $0x440] sm:$0xff]
    %v233 = vld [vmem:[#allocation2 + $0x448] sm:$0xff]
    %v234 = vld [vmem:[#allocation2 + $0x450] sm:$0xff]
    %v235 = vld [vmem:[#allocation2 + $0x458] sm:$0xff]
    %v236 = vld [vmem:[#allocation2 + $0x460] sm:$0xff]
    %v237 = vld [vmem:[#allocation2 + $0x468] sm:$0xff]
    %v238 = vld [vmem:[#allocation2 + $0x470] sm:$0xff]
    %v239 = vld [vmem:[#allocation2 + $0x478] sm:$0xff]
    %v240 = vld [vmem:[#allocation2 + $0x480] sm:$0xff]
    %v241 = vld [vmem:[#allocation2 + $0x488] sm:$0xff]
    %v242 = vld [vmem:[#allocation2 + $0x490] sm:$0xff]
    %v243 = vld [vmem:[#allocation2 + $0x498] sm:$0xff]
    %v244 = vld [vmem:[#allocation2 + $0x4a0] sm:$0xff]
    %v245 = vld [vmem:[#allocation2 + $0x4a8] sm:$0xff]
    %v246 = vld [vmem:[#allocation2 + $0x4b0] sm:$0xff]
    %v247 = vld [vmem:[#allocation2 + $0x4b8] sm:$0xff]
    %v248 = vld [vmem:[#allocation2 + $0x4c0] sm:$0xff]
    %v249 = vld [vmem:[#allocation2 + $0x4c8] sm:$0xff]
    %v250 = vld [vmem:[#allocation2 + $0x4d0] sm:$0xff]
    %v251 = vld [vmem:[#allocation2 + $0x4d8] sm:$0xff]
    %v252 = vld [vmem:[#allocation2 + $0x4e0] sm:$0xff]
    %v253 = vld [vmem:[#allocation2 + $0x4e8] sm:$0xff]
    %v254 = vld [vmem:[#allocation2 + $0x4f0] sm:$0xff]
    %v255 = vld [vmem:[#allocation2 + $0x4f8] sm:$0xff]
    %v256 = vld [vmem:[#allocation2 + $0x500] sm:$0xff]
    %v257 = vld [vmem:[#allocation2 + $0x508] sm:$0xff]
    %v258 = vld [vmem:[#allocation2 + $0x510] sm:$0xff]
    %v259 = vld [vmem:[#allocation2 + $0x518] sm:$0xff]
    %v260 = vld [vmem:[#allocation2 + $0x520] sm:$0xff]
    %v261 = vld [vmem:[#allocation2 + $0x528] sm:$0xff]
    %v262 = vld [vmem:[#allocation2 + $0x530] sm:$0xff]
    %v263 = vld [vmem:[#allocation2 + $0x538] sm:$0xff]
    %v264 = vld [vmem:[#allocation2 + $0x540] sm:$0xff]
    %v265 = vld [vmem:[#allocation2 + $0x548] sm:$0xff]
    %v266 = vld [vmem:[#allocation2 + $0x550] sm:$0xff]
    %v267 = vld [vmem:[#allocation2 + $0x558] sm:$0xff]
    %v268 = vld [vmem:[#allocation2 + $0x560] sm:$0xff]
    %v269 = vld [vmem:[#allocation2 + $0x568] sm:$0xff]
    %v270 = vld [vmem:[#allocation2 + $0x570] sm:$0xff]
    %v271 = vld [vmem:[#allocation2 + $0x578] sm:$0xff]
    %v272 = vld [vmem:[#allocation2 + $0x580] sm:$0xff]
    %v273 = vld [vmem:[#allocation2 + $0x588] sm:$0xff]
    %v274 = vld [vmem:[#allocation2 + $0x590] sm:$0xff]
    %v275 = vld [vmem:[#allocation2 + $0x598] sm:$0xff]
    %v276 = vld [vmem:[#allocation2 + $0x5a0] sm:$0xff]
    %v277 = vld [vmem:[#allocation2 + $0x5a8] sm:$0xff]
    %v278 = vld [vmem:[#allocation2 + $0x5b0] sm:$0xff]
    %v279 = vld [vmem:[#allocation2 + $0x5b8] sm:$0xff]
    %v280 = vld [vmem:[#allocation2 + $0x5c0] sm:$0xff]
    %v281 = vld [vmem:[#allocation2 + $0x5c8] sm:$0xff]
    %v282 = vld [vmem:[#allocation2 + $0x5d0] sm:$0xff]
    %v283 = vld [vmem:[#allocation2 + $0x5d8] sm:$0xff]
    %v284 = vld [vmem:[#allocation2 + $0x5e0] sm:$0xff]
    %v285 = vld [vmem:[#allocation2 + $0x5e8] sm:$0xff]
    %v286 = vld [vmem:[#allocation2 + $0x5f0] sm:$0xff]
    %v287 = vld [vmem:[#allocation2 + $0x5f8] sm:$0xff]
    %v288 = vld [vmem:[#allocation2 + $0x600] sm:$0xff]
    %v289 = vld [vmem:[#allocation2 + $0x608] sm:$0xff]
    %v290 = vld [vmem:[#allocation2 + $0x610] sm:$0xff]
    %v291 = vld [vmem:[#allocation2 + $0x618] sm:$0xff]
    %v292 = vld [vmem:[#allocation2 + $0x620] sm:$0xff]
    %v293 = vld [vmem:[#allocation2 + $0x628] sm:$0xff]
    %v294 = vld [vmem:[#allocation2 + $0x630] sm:$0xff]
    %v295 = vld [vmem:[#allocation2 + $0x638] sm:$0xff]
    %v296 = vld [vmem:[#allocation2 + $0x640] sm:$0xff]
    %v297 = vld [vmem:[#allocation2 + $0x648] sm:$0xff]
    %v298 = vld [vmem:[#allocation2 + $0x650] sm:$0xff]
    %v299 = vld [vmem:[#allocation2 + $0x658] sm:$0xff]
    %v300 = vld [vmem:[#allocation2 + $0x660] sm:$0xff]
    %v301 = vld [vmem:[#allocation2 + $0x668] sm:$0xff]
    %v302 = vld [vmem:[#allocation2 + $0x670] sm:$0xff]
    %v303 = vld [vmem:[#allocation2 + $0x678] sm:$0xff]
    %v304 = vld [vmem:[#allocation2 + $0x680] sm:$0xff]
    %v305 = vld [vmem:[#allocation2 + $0x688] sm:$0xff]
    %v306 = vld [vmem:[#allocation2 + $0x690] sm:$0xff]
    %v307 = vld [vmem:[#allocation2 + $0x698] sm:$0xff]
    %v308 = vld [vmem:[#allocation2 + $0x6a0] sm:$0xff]
    %v309 = vld [vmem:[#allocation2 + $0x6a8] sm:$0xff]
    %v310 = vld [vmem:[#allocation2 + $0x6b0] sm:$0xff]
    %v311 = vld [vmem:[#allocation2 + $0x6b8] sm:$0xff]
    %v312 = vld [vmem:[#allocation2 + $0x6c0] sm:$0xff]
    %v313 = vld [vmem:[#allocation2 + $0x6c8] sm:$0xff]
    %v314 = vld [vmem:[#allocation2 + $0x6d0] sm:$0xff]
    %v315 = vld [vmem:[#allocation2 + $0x6d8] sm:$0xff]
    %v316 = vld [vmem:[#allocation2 + $0x6e0] sm:$0xff]
    %v317 = vld [vmem:[#allocation2 + $0x6e8] sm:$0xff]
    %v318 = vld [vmem:[#allocation2 + $0x6f0] sm:$0xff]
    %v319 = vld [vmem:[#allocation2 + $0x6f8] sm:$0xff]
    %v320 = vld [vmem:[#allocation2 + $0x700] sm:$0xff]
    %v321 = vld [vmem:[#allocation2 + $0x708] sm:$0xff]
    %v322 = vld [vmem:[#allocation2 + $0x710] sm:$0xff]
    %v323 = vld [vmem:[#allocation2 + $0x718] sm:$0xff]
    %v324 = vld [vmem:[#allocation2 + $0x720] sm:$0xff]
    %v325 = vld [vmem:[#allocation2 + $0x728] sm:$0xff]
    %v326 = vld [vmem:[#allocation2 + $0x730] sm:$0xff]
    %v327 = vld [vmem:[#allocation2 + $0x738] sm:$0xff]
    %v328 = vld [vmem:[#allocation2 + $0x740] sm:$0xff]
    %v329 = vld [vmem:[#allocation2 + $0x748] sm:$0xff]
    %v330 = vld [vmem:[#allocation2 + $0x750] sm:$0xff]
    %v331 = vld [vmem:[#allocation2 + $0x758] sm:$0xff]
    %v332 = vld [vmem:[#allocation2 + $0x760] sm:$0xff]
    %v333 = vld [vmem:[#allocation2 + $0x768] sm:$0xff]
    %v334 = vld [vmem:[#allocation2 + $0x770] sm:$0xff]
    %v335 = vld [vmem:[#allocation2 + $0x778] sm:$0xff]
    %v336 = vld [vmem:[#allocation2 + $0x780] sm:$0xff]
    %v337 = vld [vmem:[#allocation2 + $0x788] sm:$0xff]
    %v338 = vld [vmem:[#allocation2 + $0x790] sm:$0xff]
    %v339 = vld [vmem:[#allocation2 + $0x798] sm:$0xff]
    %v340 = vld [vmem:[#allocation2 + $0x7a0] sm:$0xff]
    %v341 = vld [vmem:[#allocation2 + $0x7a8] sm:$0xff]
    %v342 = vld [vmem:[#allocation2 + $0x7b0] sm:$0xff]
    %v343 = vld [vmem:[#allocation2 + $0x7b8] sm:$0xff]
    %v344 = vld [vmem:[#allocation2 + $0x7c0] sm:$0xff]
    %v345 = vld [vmem:[#allocation2 + $0x7c8] sm:$0xff]
    %v346 = vld [vmem:[#allocation2 + $0x7d0] sm:$0xff]
    %v347 = vld [vmem:[#allocation2 + $0x7d8] sm:$0xff]
    %v348 = vld [vmem:[#allocation2 + $0x7e0] sm:$0xff]
    %v349 = vld [vmem:[#allocation2 + $0x7e8] sm:$0xff]
    %v350 = vld [vmem:[#allocation2 + $0x7f0] sm:$0xff]
    %v351 = vld [vmem:[#allocation2 + $0x7f8] sm:$0xff]
    %v352 = vld [vmem:[#allocation2 + $0x800] sm:$0xff]
    %v353 = vld [vmem:[#allocation2 + $0x808] sm:$0xff]
    %v354 = vld [vmem:[#allocation2 + $0x810] sm:$0xff]
    %v355 = vld [vmem:[#allocation2 + $0x818] sm:$0xff]
    %v356 = vld [vmem:[#allocation2 + $0x820] sm:$0xff]
    %v357 = vld [vmem:[#allocation2 + $0x828] sm:$0xff]
    %v358 = vld [vmem:[#allocation2 + $0x830] sm:$0xff]
    %v359 = vld [vmem:[#allocation2 + $0x838] sm:$0xff]
    %v360 = vld [vmem:[#allocation2 + $0x840] sm:$0xff]
    %v361 = vld [vmem:[#allocation2 + $0x848] sm:$0xff]
    %v362 = vld [vmem:[#allocation2 + $0x850] sm:$0xff]
    %v363 = vld [vmem:[#allocation2 + $0x858] sm:$0xff]
    %v364 = vld [vmem:[#allocation2 + $0x860] sm:$0xff]
    %v365 = vld [vmem:[#allocation2 + $0x868] sm:$0xff]
    %v366 = vld [vmem:[#allocation2 + $0x870] sm:$0xff]
    %v367 = vld [vmem:[#allocation2 + $0x878] sm:$0xff]
    %v368 = vld [vmem:[#allocation2 + $0x880] sm:$0xff]
    %v369 = vld [vmem:[#allocation2 + $0x888] sm:$0xff]
    %v370 = vld [vmem:[#allocation2 + $0x890] sm:$0xff]
    %v371 = vld [vmem:[#allocation2 + $0x898] sm:$0xff]
    %v372 = vld [vmem:[#allocation2 + $0x8a0] sm:$0xff]
    %v373 = vld [vmem:[#allocation2 + $0x8a8] sm:$0xff]
    %v374 = vld [vmem:[#allocation2 + $0x8b0] sm:$0xff]
    %v375 = vld [vmem:[#allocation2 + $0x8b8] sm:$0xff]
    %v376 = vld [vmem:[#allocation2 + $0x8c0] sm:$0xff]
    %v377 = vld [vmem:[#allocation2 + $0x8c8] sm:$0xff]
    %v378 = vld [vmem:[#allocation2 + $0x8d0] sm:$0xff]
    %v379 = vld [vmem:[#allocation2 + $0x8d8] sm:$0xff]
    %v380 = vld [vmem:[#allocation2 + $0x8e0] sm:$0xff]
    %v381 = vld [vmem:[#allocation2 + $0x8e8] sm:$0xff]
    %v382 = vld [vmem:[#allocation2 + $0x8f0] sm:$0xff]
    %v383 = vld [vmem:[#allocation2 + $0x8f8] sm:$0xff]
    %v384 = vld [vmem:[#allocation4] sm:$0xff]
    %v385 = vld [vmem:[#allocation4 + $0x8] sm:$0xf]
    %v388 = vperm.slane %v384, 0
    %v389 = vperm.slane %v384, 1
    %v390 = vperm.slane %v384, 2
    %v391 = vperm.slane %v384, 3
    %v392 = vperm.slane %v384, 4
    %v393 = vperm.slane %v384, 5
    %v394 = vperm.slane %v384, 6
    %v395 = vperm.slane %v384, 7
    %v396 = vperm.slane %v385, 0
    %v397 = vperm.slane %v385, 1
    %v398 = vperm.slane %v385, 2
    %v399 = vperm.slane %v385, 3
    %v428 = vunpack.c.l.b16 %v80
    %v429 = vunpack.c.h.b16 %v80
    %v430 = vunpack.c.l.b16 %v81
    %v431 = vunpack.c.l.b16 %v82
    %v432 = vunpack.c.h.b16 %v82
    %v433 = vunpack.c.l.b16 %v83
    %v434 = vunpack.c.l.b16 %v84
    %v435 = vunpack.c.h.b16 %v84
    %v436 = vunpack.c.l.b16 %v85
    %v437 = vunpack.c.l.b16 %v86
    %v438 = vunpack.c.h.b16 %v86
    %v439 = vunpack.c.l.b16 %v87
    %v440 = vunpack.c.l.b16 %v88
    %v441 = vunpack.c.h.b16 %v88
    %v442 = vunpack.c.l.b16 %v89
    %v443 = vunpack.c.l.b16 %v90
    %v444 = vunpack.c.h.b16 %v90
    %v445 = vunpack.c.l.b16 %v91
    %v446 = vunpack.c.l.b16 %v92
    %v447 = vunpack.c.h.b16 %v92
    %v448 = vunpack.c.l.b16 %v93
    %v449 = vunpack.c.l.b16 %v94
    %v450 = vunpack.c.h.b16 %v94
    %v451 = vunpack.c.l.b16 %v95
    %v452 = vpack.c.b16 %v431, %v428
    %v453 = vpack.c.b16 %v432, %v429
    %v454 = vpack.c.b16 %v433, %v430
    %v455 = vpack.c.b16 %v437, %v434
    %v456 = vpack.c.b16 %v438, %v435
    %v457 = vpack.c.b16 %v439, %v436
    %v458 = vpack.c.b16 %v443, %v440
    %v459 = vpack.c.b16 %v444, %v441
    %v460 = vpack.c.b16 %v445, %v442
    %v461 = vpack.c.b16 %v449, %v446
    %v462 = vpack.c.b16 %v450, %v447
    %v463 = vpack.c.b16 %v451, %v448
    %v764 = vunpack.c.l.b16 %v96
    %v765 = vunpack.c.h.b16 %v96
    %v766 = vunpack.c.l.b16 %v97
    %v767 = vunpack.c.h.b16 %v97
    %v768 = vunpack.c.l.b16 %v98
    %v769 = vunpack.c.h.b16 %v98
    %v770 = vunpack.c.l.b16 %v99
    %v771 = vunpack.c.h.b16 %v99
    %v772 = vunpack.c.l.b16 %v100
    %v773 = vunpack.c.h.b16 %v100
    %v774 = vunpack.c.l.b16 %v101
    %v775 = vunpack.c.h.b16 %v101
    %v776 = vunpack.c.l.b16 %v102
    %v777 = vunpack.c.h.b16 %v102
    %v778 = vunpack.c.l.b16 %v103
    %v779 = vunpack.c.h.b16 %v103
    %v780 = vunpack.c.l.b16 %v104
    %v781 = vunpack.c.h.b16 %v104
    %v782 = vunpack.c.l.b16 %v105
    %v783 = vunpack.c.h.b16 %v105
    %v784 = vunpack.c.l.b16 %v106
    %v785 = vunpack.c.h.b16 %v106
    %v786 = vunpack.c.l.b16 %v107
    %v787 = vunpack.c.h.b16 %v107
    %v788 = vunpack.c.l.b16 %v108
    %v789 = vunpack.c.h.b16 %v108
    %v790 = vunpack.c.l.b16 %v109
    %v791 = vunpack.c.h.b16 %v109
    %v792 = vunpack.c.l.b16 %v110
    %v793 = vunpack.c.h.b16 %v110
    %v794 = vunpack.c.l.b16 %v111
    %v795 = vunpack.c.h.b16 %v111
    %v796 = vunpack.c.l.b16 %v112
    %v797 = vunpack.c.h.b16 %v112
    %v798 = vunpack.c.l.b16 %v113
    %v799 = vunpack.c.h.b16 %v113
    %v800 = vunpack.c.l.b16 %v114
    %v801 = vunpack.c.h.b16 %v114
    %v802 = vunpack.c.l.b16 %v115
    %v803 = vunpack.c.h.b16 %v115
    %v804 = vunpack.c.l.b16 %v116
    %v805 = vunpack.c.h.b16 %v116
    %v806 = vunpack.c.l.b16 %v117
    %v807 = vunpack.c.h.b16 %v117
    %v808 = vunpack.c.l.b16 %v118
    %v809 = vunpack.c.h.b16 %v118
    %v810 = vunpack.c.l.b16 %v119
    %v811 = vunpack.c.h.b16 %v119
    %v812 = vunpack.c.l.b16 %v120
    %v813 = vunpack.c.h.b16 %v120
    %v814 = vunpack.c.l.b16 %v121
    %v815 = vunpack.c.h.b16 %v121
    %v816 = vunpack.c.l.b16 %v122
    %v817 = vunpack.c.h.b16 %v122
    %v818 = vunpack.c.l.b16 %v123
    %v819 = vunpack.c.h.b16 %v123
    %v820 = vunpack.c.l.b16 %v124
    %v821 = vunpack.c.h.b16 %v124
    %v822 = vunpack.c.l.b16 %v125
    %v823 = vunpack.c.h.b16 %v125
    %v824 = vunpack.c.l.b16 %v126
    %v825 = vunpack.c.h.b16 %v126
    %v826 = vunpack.c.l.b16 %v127
    %v827 = vunpack.c.h.b16 %v127
    %v828 = vunpack.c.l.b16 %v128
    %v829 = vunpack.c.h.b16 %v128
    %v830 = vunpack.c.l.b16 %v129
    %v831 = vunpack.c.h.b16 %v129
    %v832 = vunpack.c.l.b16 %v130
    %v833 = vunpack.c.h.b16 %v130
    %v834 = vunpack.c.l.b16 %v131
    %v835 = vunpack.c.h.b16 %v131
    %v836 = vunpack.c.l.b16 %v132
    %v837 = vunpack.c.h.b16 %v132
    %v838 = vunpack.c.l.b16 %v133
    %v839 = vunpack.c.h.b16 %v133
    %v840 = vunpack.c.l.b16 %v134
    %v841 = vunpack.c.h.b16 %v134
    %v842 = vunpack.c.l.b16 %v135
    %v843 = vunpack.c.h.b16 %v135
    %v844 = vunpack.c.l.b16 %v136
    %v845 = vunpack.c.h.b16 %v136
    %v846 = vunpack.c.l.b16 %v137
    %v847 = vunpack.c.h.b16 %v137
    %v848 = vunpack.c.l.b16 %v138
    %v849 = vunpack.c.h.b16 %v138
    %v850 = vunpack.c.l.b16 %v139
    %v851 = vunpack.c.h.b16 %v139
    %v852 = vunpack.c.l.b16 %v140
    %v853 = vunpack.c.h.b16 %v140
    %v854 = vunpack.c.l.b16 %v141
    %v855 = vunpack.c.h.b16 %v141
    %v856 = vunpack.c.l.b16 %v142
    %v857 = vunpack.c.h.b16 %v142
    %v858 = vunpack.c.l.b16 %v143
    %v859 = vunpack.c.h.b16 %v143
    %v860 = vunpack.c.l.b16 %v144
    %v861 = vunpack.c.h.b16 %v144
    %v862 = vunpack.c.l.b16 %v145
    %v863 = vunpack.c.h.b16 %v145
    %v864 = vunpack.c.l.b16 %v146
    %v865 = vunpack.c.h.b16 %v146
    %v866 = vunpack.c.l.b16 %v147
    %v867 = vunpack.c.h.b16 %v147
    %v868 = vunpack.c.l.b16 %v148
    %v869 = vunpack.c.h.b16 %v148
    %v870 = vunpack.c.l.b16 %v149
    %v871 = vunpack.c.h.b16 %v149
    %v872 = vunpack.c.l.b16 %v150
    %v873 = vunpack.c.h.b16 %v150
    %v874 = vunpack.c.l.b16 %v151
    %v875 = vunpack.c.h.b16 %v151
    %v876 = vunpack.c.l.b16 %v152
    %v877 = vunpack.c.h.b16 %v152
    %v878 = vunpack.c.l.b16 %v153
    %v879 = vunpack.c.h.b16 %v153
    %v880 = vunpack.c.l.b16 %v154
    %v881 = vunpack.c.h.b16 %v154
    %v882 = vunpack.c.l.b16 %v155
    %v883 = vunpack.c.h.b16 %v155
    %v884 = vunpack.c.l.b16 %v156
    %v885 = vunpack.c.h.b16 %v156
    %v886 = vunpack.c.l.b16 %v157
    %v887 = vunpack.c.h.b16 %v157
    %v888 = vunpack.c.l.b16 %v158
    %v889 = vunpack.c.h.b16 %v158
    %v890 = vunpack.c.l.b16 %v159
    %v891 = vunpack.c.h.b16 %v159
    %v892 = vunpack.c.l.b16 %v160
    %v893 = vunpack.c.h.b16 %v160
    %v894 = vunpack.c.l.b16 %v161
    %v895 = vunpack.c.h.b16 %v161
    %v896 = vunpack.c.l.b16 %v162
    %v897 = vunpack.c.h.b16 %v162
    %v898 = vunpack.c.l.b16 %v163
    %v899 = vunpack.c.h.b16 %v163
    %v900 = vunpack.c.l.b16 %v164
    %v901 = vunpack.c.h.b16 %v164
    %v902 = vunpack.c.l.b16 %v165
    %v903 = vunpack.c.h.b16 %v165
    %v904 = vunpack.c.l.b16 %v166
    %v905 = vunpack.c.h.b16 %v166
    %v906 = vunpack.c.l.b16 %v167
    %v907 = vunpack.c.h.b16 %v167
    %v908 = vunpack.c.l.b16 %v168
    %v909 = vunpack.c.h.b16 %v168
    %v910 = vunpack.c.l.b16 %v169
    %v911 = vunpack.c.h.b16 %v169
    %v912 = vunpack.c.l.b16 %v170
    %v913 = vunpack.c.h.b16 %v170
    %v914 = vunpack.c.l.b16 %v171
    %v915 = vunpack.c.h.b16 %v171
    %v916 = vunpack.c.l.b16 %v172
    %v917 = vunpack.c.h.b16 %v172
    %v918 = vunpack.c.l.b16 %v173
    %v919 = vunpack.c.h.b16 %v173
    %v920 = vunpack.c.l.b16 %v174
    %v921 = vunpack.c.h.b16 %v174
    %v922 = vunpack.c.l.b16 %v175
    %v923 = vunpack.c.h.b16 %v175
    %v924 = vunpack.c.l.b16 %v176
    %v925 = vunpack.c.h.b16 %v176
    %v926 = vunpack.c.l.b16 %v177
    %v927 = vunpack.c.h.b16 %v177
    %v928 = vunpack.c.l.b16 %v178
    %v929 = vunpack.c.h.b16 %v178
    %v930 = vunpack.c.l.b16 %v179
    %v931 = vunpack.c.h.b16 %v179
    %v932 = vunpack.c.l.b16 %v180
    %v933 = vunpack.c.h.b16 %v180
    %v934 = vunpack.c.l.b16 %v181
    %v935 = vunpack.c.h.b16 %v181
    %v936 = vunpack.c.l.b16 %v182
    %v937 = vunpack.c.h.b16 %v182
    %v938 = vunpack.c.l.b16 %v183
    %v939 = vunpack.c.h.b16 %v183
    %v940 = vunpack.c.l.b16 %v184
    %v941 = vunpack.c.h.b16 %v184
    %v942 = vunpack.c.l.b16 %v185
    %v943 = vunpack.c.h.b16 %v185
    %v944 = vunpack.c.l.b16 %v186
    %v945 = vunpack.c.h.b16 %v186
    %v946 = vunpack.c.l.b16 %v187
    %v947 = vunpack.c.h.b16 %v187
    %v948 = vunpack.c.l.b16 %v188
    %v949 = vunpack.c.h.b16 %v188
    %v950 = vunpack.c.l.b16 %v189
    %v951 = vunpack.c.h.b16 %v189
    %v952 = vunpack.c.l.b16 %v190
    %v953 = vunpack.c.h.b16 %v190
    %v954 = vunpack.c.l.b16 %v191
    %v955 = vunpack.c.h.b16 %v191
    %v956 = vunpack.c.l.b16 %v192
    %v957 = vunpack.c.h.b16 %v192
    %v958 = vunpack.c.l.b16 %v193
    %v959 = vunpack.c.h.b16 %v193
    %v960 = vunpack.c.l.b16 %v194
    %v961 = vunpack.c.h.b16 %v194
    %v962 = vunpack.c.l.b16 %v195
    %v963 = vunpack.c.h.b16 %v195
    %v964 = vunpack.c.l.b16 %v196
    %v965 = vunpack.c.h.b16 %v196
    %v966 = vunpack.c.l.b16 %v197
    %v967 = vunpack.c.h.b16 %v197
    %v968 = vunpack.c.l.b16 %v198
    %v969 = vunpack.c.h.b16 %v198
    %v970 = vunpack.c.l.b16 %v199
    %v971 = vunpack.c.h.b16 %v199
    %v972 = vunpack.c.l.b16 %v200
    %v973 = vunpack.c.h.b16 %v200
    %v974 = vunpack.c.l.b16 %v201
    %v975 = vunpack.c.h.b16 %v201
    %v976 = vunpack.c.l.b16 %v202
    %v977 = vunpack.c.h.b16 %v202
    %v978 = vunpack.c.l.b16 %v203
    %v979 = vunpack.c.h.b16 %v203
    %v980 = vunpack.c.l.b16 %v204
    %v981 = vunpack.c.h.b16 %v204
    %v982 = vunpack.c.l.b16 %v205
    %v983 = vunpack.c.h.b16 %v205
    %v984 = vunpack.c.l.b16 %v206
    %v985 = vunpack.c.h.b16 %v206
    %v986 = vunpack.c.l.b16 %v207
    %v987 = vunpack.c.h.b16 %v207
    %v988 = vunpack.c.l.b16 %v208
    %v989 = vunpack.c.h.b16 %v208
    %v990 = vunpack.c.l.b16 %v209
    %v991 = vunpack.c.h.b16 %v209
    %v992 = vunpack.c.l.b16 %v210
    %v993 = vunpack.c.h.b16 %v210
    %v994 = vunpack.c.l.b16 %v211
    %v995 = vunpack.c.h.b16 %v211
    %v996 = vunpack.c.l.b16 %v212
    %v997 = vunpack.c.h.b16 %v212
    %v998 = vunpack.c.l.b16 %v213
    %v999 = vunpack.c.h.b16 %v213
    %v1000 = vunpack.c.l.b16 %v214
    %v1001 = vunpack.c.h.b16 %v214
    %v1002 = vunpack.c.l.b16 %v215
    %v1003 = vunpack.c.h.b16 %v215
    %v1004 = vunpack.c.l.b16 %v216
    %v1005 = vunpack.c.h.b16 %v216
    %v1006 = vunpack.c.l.b16 %v217
    %v1007 = vunpack.c.h.b16 %v217
    %v1008 = vunpack.c.l.b16 %v218
    %v1009 = vunpack.c.h.b16 %v218
    %v1010 = vunpack.c.l.b16 %v219
    %v1011 = vunpack.c.h.b16 %v219
    %v1012 = vunpack.c.l.b16 %v220
    %v1013 = vunpack.c.h.b16 %v220
    %v1014 = vunpack.c.l.b16 %v221
    %v1015 = vunpack.c.h.b16 %v221
    %v1016 = vunpack.c.l.b16 %v222
    %v1017 = vunpack.c.h.b16 %v222
    %v1018 = vunpack.c.l.b16 %v223
    %v1019 = vunpack.c.h.b16 %v223
    %v1020 = vunpack.c.l.b16 %v224
    %v1021 = vunpack.c.h.b16 %v224
    %v1022 = vunpack.c.l.b16 %v225
    %v1023 = vunpack.c.h.b16 %v225
    %v1024 = vunpack.c.l.b16 %v226
    %v1025 = vunpack.c.h.b16 %v226
    %v1026 = vunpack.c.l.b16 %v227
    %v1027 = vunpack.c.h.b16 %v227
    %v1028 = vunpack.c.l.b16 %v228
    %v1029 = vunpack.c.h.b16 %v228
    %v1030 = vunpack.c.l.b16 %v229
    %v1031 = vunpack.c.h.b16 %v229
    %v1032 = vunpack.c.l.b16 %v230
    %v1033 = vunpack.c.h.b16 %v230
    %v1034 = vunpack.c.l.b16 %v231
    %v1035 = vunpack.c.h.b16 %v231
    %v1036 = vunpack.c.l.b16 %v232
    %v1037 = vunpack.c.h.b16 %v232
    %v1038 = vunpack.c.l.b16 %v233
    %v1039 = vunpack.c.h.b16 %v233
    %v1040 = vunpack.c.l.b16 %v234
    %v1041 = vunpack.c.h.b16 %v234
    %v1042 = vunpack.c.l.b16 %v235
    %v1043 = vunpack.c.h.b16 %v235
    %v1044 = vunpack.c.l.b16 %v236
    %v1045 = vunpack.c.h.b16 %v236
    %v1046 = vunpack.c.l.b16 %v237
    %v1047 = vunpack.c.h.b16 %v237
    %v1048 = vunpack.c.l.b16 %v238
    %v1049 = vunpack.c.h.b16 %v238
    %v1050 = vunpack.c.l.b16 %v239
    %v1051 = vunpack.c.h.b16 %v239
    %v1052 = vunpack.c.l.b16 %v240
    %v1053 = vunpack.c.h.b16 %v240
    %v1054 = vunpack.c.l.b16 %v241
    %v1055 = vunpack.c.h.b16 %v241
    %v1056 = vunpack.c.l.b16 %v242
    %v1057 = vunpack.c.h.b16 %v242
    %v1058 = vunpack.c.l.b16 %v243
    %v1059 = vunpack.c.h.b16 %v243
    %v1060 = vunpack.c.l.b16 %v244
    %v1061 = vunpack.c.h.b16 %v244
    %v1062 = vunpack.c.l.b16 %v245
    %v1063 = vunpack.c.h.b16 %v245
    %v1064 = vunpack.c.l.b16 %v246
    %v1065 = vunpack.c.h.b16 %v246
    %v1066 = vunpack.c.l.b16 %v247
    %v1067 = vunpack.c.h.b16 %v247
    %v1068 = vunpack.c.l.b16 %v248
    %v1069 = vunpack.c.h.b16 %v248
    %v1070 = vunpack.c.l.b16 %v249
    %v1071 = vunpack.c.h.b16 %v249
    %v1072 = vunpack.c.l.b16 %v250
    %v1073 = vunpack.c.h.b16 %v250
    %v1074 = vunpack.c.l.b16 %v251
    %v1075 = vunpack.c.h.b16 %v251
    %v1076 = vunpack.c.l.b16 %v252
    %v1077 = vunpack.c.h.b16 %v252
    %v1078 = vunpack.c.l.b16 %v253
    %v1079 = vunpack.c.h.b16 %v253
    %v1080 = vunpack.c.l.b16 %v254
    %v1081 = vunpack.c.h.b16 %v254
    %v1082 = vunpack.c.l.b16 %v255
    %v1083 = vunpack.c.h.b16 %v255
    %v1084 = vunpack.c.l.b16 %v256
    %v1085 = vunpack.c.h.b16 %v256
    %v1086 = vunpack.c.l.b16 %v257
    %v1087 = vunpack.c.h.b16 %v257
    %v1088 = vunpack.c.l.b16 %v258
    %v1089 = vunpack.c.h.b16 %v258
    %v1090 = vunpack.c.l.b16 %v259
    %v1091 = vunpack.c.h.b16 %v259
    %v1092 = vunpack.c.l.b16 %v260
    %v1093 = vunpack.c.h.b16 %v260
    %v1094 = vunpack.c.l.b16 %v261
    %v1095 = vunpack.c.h.b16 %v261
    %v1096 = vunpack.c.l.b16 %v262
    %v1097 = vunpack.c.h.b16 %v262
    %v1098 = vunpack.c.l.b16 %v263
    %v1099 = vunpack.c.h.b16 %v263
    %v1100 = vunpack.c.l.b16 %v264
    %v1101 = vunpack.c.h.b16 %v264
    %v1102 = vunpack.c.l.b16 %v265
    %v1103 = vunpack.c.h.b16 %v265
    %v1104 = vunpack.c.l.b16 %v266
    %v1105 = vunpack.c.h.b16 %v266
    %v1106 = vunpack.c.l.b16 %v267
    %v1107 = vunpack.c.h.b16 %v267
    %v1108 = vunpack.c.l.b16 %v268
    %v1109 = vunpack.c.h.b16 %v268
    %v1110 = vunpack.c.l.b16 %v269
    %v1111 = vunpack.c.h.b16 %v269
    %v1112 = vunpack.c.l.b16 %v270
    %v1113 = vunpack.c.h.b16 %v270
    %v1114 = vunpack.c.l.b16 %v271
    %v1115 = vunpack.c.h.b16 %v271
    %v1116 = vunpack.c.l.b16 %v272
    %v1117 = vunpack.c.h.b16 %v272
    %v1118 = vunpack.c.l.b16 %v273
    %v1119 = vunpack.c.h.b16 %v273
    %v1120 = vunpack.c.l.b16 %v274
    %v1121 = vunpack.c.h.b16 %v274
    %v1122 = vunpack.c.l.b16 %v275
    %v1123 = vunpack.c.h.b16 %v275
    %v1124 = vunpack.c.l.b16 %v276
    %v1125 = vunpack.c.h.b16 %v276
    %v1126 = vunpack.c.l.b16 %v277
    %v1127 = vunpack.c.h.b16 %v277
    %v1128 = vunpack.c.l.b16 %v278
    %v1129 = vunpack.c.h.b16 %v278
    %v1130 = vunpack.c.l.b16 %v279
    %v1131 = vunpack.c.h.b16 %v279
    %v1132 = vunpack.c.l.b16 %v280
    %v1133 = vunpack.c.h.b16 %v280
    %v1134 = vunpack.c.l.b16 %v281
    %v1135 = vunpack.c.h.b16 %v281
    %v1136 = vunpack.c.l.b16 %v282
    %v1137 = vunpack.c.h.b16 %v282
    %v1138 = vunpack.c.l.b16 %v283
    %v1139 = vunpack.c.h.b16 %v283
    %v1140 = vunpack.c.l.b16 %v284
    %v1141 = vunpack.c.h.b16 %v284
    %v1142 = vunpack.c.l.b16 %v285
    %v1143 = vunpack.c.h.b16 %v285
    %v1144 = vunpack.c.l.b16 %v286
    %v1145 = vunpack.c.h.b16 %v286
    %v1146 = vunpack.c.l.b16 %v287
    %v1147 = vunpack.c.h.b16 %v287
    %v1148 = vunpack.c.l.b16 %v288
    %v1149 = vunpack.c.h.b16 %v288
    %v1150 = vunpack.c.l.b16 %v289
    %v1151 = vunpack.c.h.b16 %v289
    %v1152 = vunpack.c.l.b16 %v290
    %v1153 = vunpack.c.h.b16 %v290
    %v1154 = vunpack.c.l.b16 %v291
    %v1155 = vunpack.c.h.b16 %v291
    %v1156 = vunpack.c.l.b16 %v292
    %v1157 = vunpack.c.h.b16 %v292
    %v1158 = vunpack.c.l.b16 %v293
    %v1159 = vunpack.c.h.b16 %v293
    %v1160 = vunpack.c.l.b16 %v294
    %v1161 = vunpack.c.h.b16 %v294
    %v1162 = vunpack.c.l.b16 %v295
    %v1163 = vunpack.c.h.b16 %v295
    %v1164 = vunpack.c.l.b16 %v296
    %v1165 = vunpack.c.h.b16 %v296
    %v1166 = vunpack.c.l.b16 %v297
    %v1167 = vunpack.c.h.b16 %v297
    %v1168 = vunpack.c.l.b16 %v298
    %v1169 = vunpack.c.h.b16 %v298
    %v1170 = vunpack.c.l.b16 %v299
    %v1171 = vunpack.c.h.b16 %v299
    %v1172 = vunpack.c.l.b16 %v300
    %v1173 = vunpack.c.h.b16 %v300
    %v1174 = vunpack.c.l.b16 %v301
    %v1175 = vunpack.c.h.b16 %v301
    %v1176 = vunpack.c.l.b16 %v302
    %v1177 = vunpack.c.h.b16 %v302
    %v1178 = vunpack.c.l.b16 %v303
    %v1179 = vunpack.c.h.b16 %v303
    %v1180 = vunpack.c.l.b16 %v304
    %v1181 = vunpack.c.h.b16 %v304
    %v1182 = vunpack.c.l.b16 %v305
    %v1183 = vunpack.c.h.b16 %v305
    %v1184 = vunpack.c.l.b16 %v306
    %v1185 = vunpack.c.h.b16 %v306
    %v1186 = vunpack.c.l.b16 %v307
    %v1187 = vunpack.c.h.b16 %v307
    %v1188 = vunpack.c.l.b16 %v308
    %v1189 = vunpack.c.h.b16 %v308
    %v1190 = vunpack.c.l.b16 %v309
    %v1191 = vunpack.c.h.b16 %v309
    %v1192 = vunpack.c.l.b16 %v310
    %v1193 = vunpack.c.h.b16 %v310
    %v1194 = vunpack.c.l.b16 %v311
    %v1195 = vunpack.c.h.b16 %v311
    %v1196 = vunpack.c.l.b16 %v312
    %v1197 = vunpack.c.h.b16 %v312
    %v1198 = vunpack.c.l.b16 %v313
    %v1199 = vunpack.c.h.b16 %v313
    %v1200 = vunpack.c.l.b16 %v314
    %v1201 = vunpack.c.h.b16 %v314
    %v1202 = vunpack.c.l.b16 %v315
    %v1203 = vunpack.c.h.b16 %v315
    %v1204 = vunpack.c.l.b16 %v316
    %v1205 = vunpack.c.h.b16 %v316
    %v1206 = vunpack.c.l.b16 %v317
    %v1207 = vunpack.c.h.b16 %v317
    %v1208 = vunpack.c.l.b16 %v318
    %v1209 = vunpack.c.h.b16 %v318
    %v1210 = vunpack.c.l.b16 %v319
    %v1211 = vunpack.c.h.b16 %v319
    %v1212 = vunpack.c.l.b16 %v320
    %v1213 = vunpack.c.h.b16 %v320
    %v1214 = vunpack.c.l.b16 %v321
    %v1215 = vunpack.c.h.b16 %v321
    %v1216 = vunpack.c.l.b16 %v322
    %v1217 = vunpack.c.h.b16 %v322
    %v1218 = vunpack.c.l.b16 %v323
    %v1219 = vunpack.c.h.b16 %v323
    %v1220 = vunpack.c.l.b16 %v324
    %v1221 = vunpack.c.h.b16 %v324
    %v1222 = vunpack.c.l.b16 %v325
    %v1223 = vunpack.c.h.b16 %v325
    %v1224 = vunpack.c.l.b16 %v326
    %v1225 = vunpack.c.h.b16 %v326
    %v1226 = vunpack.c.l.b16 %v327
    %v1227 = vunpack.c.h.b16 %v327
    %v1228 = vunpack.c.l.b16 %v328
    %v1229 = vunpack.c.h.b16 %v328
    %v1230 = vunpack.c.l.b16 %v329
    %v1231 = vunpack.c.h.b16 %v329
    %v1232 = vunpack.c.l.b16 %v330
    %v1233 = vunpack.c.h.b16 %v330
    %v1234 = vunpack.c.l.b16 %v331
    %v1235 = vunpack.c.h.b16 %v331
    %v1236 = vunpack.c.l.b16 %v332
    %v1237 = vunpack.c.h.b16 %v332
    %v1238 = vunpack.c.l.b16 %v333
    %v1239 = vunpack.c.h.b16 %v333
    %v1240 = vunpack.c.l.b16 %v334
    %v1241 = vunpack.c.h.b16 %v334
    %v1242 = vunpack.c.l.b16 %v335
    %v1243 = vunpack.c.h.b16 %v335
    %v1244 = vunpack.c.l.b16 %v336
    %v1245 = vunpack.c.h.b16 %v336
    %v1246 = vunpack.c.l.b16 %v337
    %v1247 = vunpack.c.h.b16 %v337
    %v1248 = vunpack.c.l.b16 %v338
    %v1249 = vunpack.c.h.b16 %v338
    %v1250 = vunpack.c.l.b16 %v339
    %v1251 = vunpack.c.h.b16 %v339
    %v1252 = vunpack.c.l.b16 %v340
    %v1253 = vunpack.c.h.b16 %v340
    %v1254 = vunpack.c.l.b16 %v341
    %v1255 = vunpack.c.h.b16 %v341
    %v1256 = vunpack.c.l.b16 %v342
    %v1257 = vunpack.c.h.b16 %v342
    %v1258 = vunpack.c.l.b16 %v343
    %v1259 = vunpack.c.h.b16 %v343
    %v1260 = vunpack.c.l.b16 %v344
    %v1261 = vunpack.c.h.b16 %v344
    %v1262 = vunpack.c.l.b16 %v345
    %v1263 = vunpack.c.h.b16 %v345
    %v1264 = vunpack.c.l.b16 %v346
    %v1265 = vunpack.c.h.b16 %v346
    %v1266 = vunpack.c.l.b16 %v347
    %v1267 = vunpack.c.h.b16 %v347
    %v1268 = vunpack.c.l.b16 %v348
    %v1269 = vunpack.c.h.b16 %v348
    %v1270 = vunpack.c.l.b16 %v349
    %v1271 = vunpack.c.h.b16 %v349
    %v1272 = vunpack.c.l.b16 %v350
    %v1273 = vunpack.c.h.b16 %v350
    %v1274 = vunpack.c.l.b16 %v351
    %v1275 = vunpack.c.h.b16 %v351
    %v1276 = vunpack.c.l.b16 %v352
    %v1277 = vunpack.c.h.b16 %v352
    %v1278 = vunpack.c.l.b16 %v353
    %v1279 = vunpack.c.h.b16 %v353
    %v1280 = vunpack.c.l.b16 %v354
    %v1281 = vunpack.c.h.b16 %v354
    %v1282 = vunpack.c.l.b16 %v355
    %v1283 = vunpack.c.h.b16 %v355
    %v1284 = vunpack.c.l.b16 %v356
    %v1285 = vunpack.c.h.b16 %v356
    %v1286 = vunpack.c.l.b16 %v357
    %v1287 = vunpack.c.h.b16 %v357
    %v1288 = vunpack.c.l.b16 %v358
    %v1289 = vunpack.c.h.b16 %v358
    %v1290 = vunpack.c.l.b16 %v359
    %v1291 = vunpack.c.h.b16 %v359
    %v1292 = vunpack.c.l.b16 %v360
    %v1293 = vunpack.c.h.b16 %v360
    %v1294 = vunpack.c.l.b16 %v361
    %v1295 = vunpack.c.h.b16 %v361
    %v1296 = vunpack.c.l.b16 %v362
    %v1297 = vunpack.c.h.b16 %v362
    %v1298 = vunpack.c.l.b16 %v363
    %v1299 = vunpack.c.h.b16 %v363
    %v1300 = vunpack.c.l.b16 %v364
    %v1301 = vunpack.c.h.b16 %v364
    %v1302 = vunpack.c.l.b16 %v365
    %v1303 = vunpack.c.h.b16 %v365
    %v1304 = vunpack.c.l.b16 %v366
    %v1305 = vunpack.c.h.b16 %v366
    %v1306 = vunpack.c.l.b16 %v367
    %v1307 = vunpack.c.h.b16 %v367
    %v1308 = vunpack.c.l.b16 %v368
    %v1309 = vunpack.c.h.b16 %v368
    %v1310 = vunpack.c.l.b16 %v369
    %v1311 = vunpack.c.h.b16 %v369
    %v1312 = vunpack.c.l.b16 %v370
    %v1313 = vunpack.c.h.b16 %v370
    %v1314 = vunpack.c.l.b16 %v371
    %v1315 = vunpack.c.h.b16 %v371
    %v1316 = vunpack.c.l.b16 %v372
    %v1317 = vunpack.c.h.b16 %v372
    %v1318 = vunpack.c.l.b16 %v373
    %v1319 = vunpack.c.h.b16 %v373
    %v1320 = vunpack.c.l.b16 %v374
    %v1321 = vunpack.c.h.b16 %v374
    %v1322 = vunpack.c.l.b16 %v375
    %v1323 = vunpack.c.h.b16 %v375
    %v1324 = vunpack.c.l.b16 %v376
    %v1325 = vunpack.c.h.b16 %v376
    %v1326 = vunpack.c.l.b16 %v377
    %v1327 = vunpack.c.h.b16 %v377
    %v1328 = vunpack.c.l.b16 %v378
    %v1329 = vunpack.c.h.b16 %v378
    %v1330 = vunpack.c.l.b16 %v379
    %v1331 = vunpack.c.h.b16 %v379
    %v1332 = vunpack.c.l.b16 %v380
    %v1333 = vunpack.c.h.b16 %v380
    %v1334 = vunpack.c.l.b16 %v381
    %v1335 = vunpack.c.h.b16 %v381
    %v1336 = vunpack.c.l.b16 %v382
    %v1337 = vunpack.c.h.b16 %v382
    %v1338 = vunpack.c.l.b16 %v383
    %v1339 = vunpack.c.h.b16 %v383
    %v1340 = vpack.c.b16 %v776, %v764
    %v1341 = vpack.c.b16 %v777, %v765
    %v1342 = vpack.c.b16 %v778, %v766
    %v1343 = vpack.c.b16 %v779, %v767
    %v1344 = vpack.c.b16 %v780, %v768
    %v1345 = vpack.c.b16 %v781, %v769
    %v1346 = vpack.c.b16 %v782, %v770
    %v1347 = vpack.c.b16 %v783, %v771
    %v1348 = vpack.c.b16 %v784, %v772
    %v1349 = vpack.c.b16 %v785, %v773
    %v1350 = vpack.c.b16 %v786, %v774
    %v1351 = vpack.c.b16 %v787, %v775
    %v1352 = vpack.c.b16 %v800, %v788
    %v1353 = vpack.c.b16 %v801, %v789
    %v1354 = vpack.c.b16 %v802, %v790
    %v1355 = vpack.c.b16 %v803, %v791
    %v1356 = vpack.c.b16 %v804, %v792
    %v1357 = vpack.c.b16 %v805, %v793
    %v1358 = vpack.c.b16 %v806, %v794
    %v1359 = vpack.c.b16 %v807, %v795
    %v1360 = vpack.c.b16 %v808, %v796
    %v1361 = vpack.c.b16 %v809, %v797
    %v1362 = vpack.c.b16 %v810, %v798
    %v1363 = vpack.c.b16 %v811, %v799
    %v1364 = vpack.c.b16 %v824, %v812
    %v1365 = vpack.c.b16 %v825, %v813
    %v1366 = vpack.c.b16 %v826, %v814
    %v1367 = vpack.c.b16 %v827, %v815
    %v1368 = vpack.c.b16 %v828, %v816
    %v1369 = vpack.c.b16 %v829, %v817
    %v1370 = vpack.c.b16 %v830, %v818
    %v1371 = vpack.c.b16 %v831, %v819
    %v1372 = vpack.c.b16 %v832, %v820
    %v1373 = vpack.c.b16 %v833, %v821
    %v1374 = vpack.c.b16 %v834, %v822
    %v1375 = vpack.c.b16 %v835, %v823
    %v1376 = vpack.c.b16 %v848, %v836
    %v1377 = vpack.c.b16 %v849, %v837
    %v1378 = vpack.c.b16 %v850, %v838
    %v1379 = vpack.c.b16 %v851, %v839
    %v1380 = vpack.c.b16 %v852, %v840
    %v1381 = vpack.c.b16 %v853, %v841
    %v1382 = vpack.c.b16 %v854, %v842
    %v1383 = vpack.c.b16 %v855, %v843
    %v1384 = vpack.c.b16 %v856, %v844
    %v1385 = vpack.c.b16 %v857, %v845
    %v1386 = vpack.c.b16 %v858, %v846
    %v1387 = vpack.c.b16 %v859, %v847
    %v1388 = vpack.c.b16 %v872, %v860
    %v1389 = vpack.c.b16 %v873, %v861
    %v1390 = vpack.c.b16 %v874, %v862
    %v1391 = vpack.c.b16 %v875, %v863
    %v1392 = vpack.c.b16 %v876, %v864
    %v1393 = vpack.c.b16 %v877, %v865
    %v1394 = vpack.c.b16 %v878, %v866
    %v1395 = vpack.c.b16 %v879, %v867
    %v1396 = vpack.c.b16 %v880, %v868
    %v1397 = vpack.c.b16 %v881, %v869
    %v1398 = vpack.c.b16 %v882, %v870
    %v1399 = vpack.c.b16 %v883, %v871
    %v1400 = vpack.c.b16 %v896, %v884
    %v1401 = vpack.c.b16 %v897, %v885
    %v1402 = vpack.c.b16 %v898, %v886
    %v1403 = vpack.c.b16 %v899, %v887
    %v1404 = vpack.c.b16 %v900, %v888
    %v1405 = vpack.c.b16 %v901, %v889
    %v1406 = vpack.c.b16 %v902, %v890
    %v1407 = vpack.c.b16 %v903, %v891
    %v1408 = vpack.c.b16 %v904, %v892
    %v1409 = vpack.c.b16 %v905, %v893
    %v1410 = vpack.c.b16 %v906, %v894
    %v1411 = vpack.c.b16 %v907, %v895
    %v1412 = vpack.c.b16 %v920, %v908
    %v1413 = vpack.c.b16 %v921, %v909
    %v1414 = vpack.c.b16 %v922, %v910
    %v1415 = vpack.c.b16 %v923, %v911
    %v1416 = vpack.c.b16 %v924, %v912
    %v1417 = vpack.c.b16 %v925, %v913
    %v1418 = vpack.c.b16 %v926, %v914
    %v1419 = vpack.c.b16 %v927, %v915
    %v1420 = vpack.c.b16 %v928, %v916
    %v1421 = vpack.c.b16 %v929, %v917
    %v1422 = vpack.c.b16 %v930, %v918
    %v1423 = vpack.c.b16 %v931, %v919
    %v1424 = vpack.c.b16 %v944, %v932
    %v1425 = vpack.c.b16 %v945, %v933
    %v1426 = vpack.c.b16 %v946, %v934
    %v1427 = vpack.c.b16 %v947, %v935
    %v1428 = vpack.c.b16 %v948, %v936
    %v1429 = vpack.c.b16 %v949, %v937
    %v1430 = vpack.c.b16 %v950, %v938
    %v1431 = vpack.c.b16 %v951, %v939
    %v1432 = vpack.c.b16 %v952, %v940
    %v1433 = vpack.c.b16 %v953, %v941
    %v1434 = vpack.c.b16 %v954, %v942
    %v1435 = vpack.c.b16 %v955, %v943
    %v1436 = vpack.c.b16 %v968, %v956
    %v1437 = vpack.c.b16 %v969, %v957
    %v1438 = vpack.c.b16 %v970, %v958
    %v1439 = vpack.c.b16 %v971, %v959
    %v1440 = vpack.c.b16 %v972, %v960
    %v1441 = vpack.c.b16 %v973, %v961
    %v1442 = vpack.c.b16 %v974, %v962
    %v1443 = vpack.c.b16 %v975, %v963
    %v1444 = vpack.c.b16 %v976, %v964
    %v1445 = vpack.c.b16 %v977, %v965
    %v1446 = vpack.c.b16 %v978, %v966
    %v1447 = vpack.c.b16 %v979, %v967
    %v1448 = vpack.c.b16 %v992, %v980
    %v1449 = vpack.c.b16 %v993, %v981
    %v1450 = vpack.c.b16 %v994, %v982
    %v1451 = vpack.c.b16 %v995, %v983
    %v1452 = vpack.c.b16 %v996, %v984
    %v1453 = vpack.c.b16 %v997, %v985
    %v1454 = vpack.c.b16 %v998, %v986
    %v1455 = vpack.c.b16 %v999, %v987
    %v1456 = vpack.c.b16 %v1000, %v988
    %v1457 = vpack.c.b16 %v1001, %v989
    %v1458 = vpack.c.b16 %v1002, %v990
    %v1459 = vpack.c.b16 %v1003, %v991
    %v1460 = vpack.c.b16 %v1016, %v1004
    %v1461 = vpack.c.b16 %v1017, %v1005
    %v1462 = vpack.c.b16 %v1018, %v1006
    %v1463 = vpack.c.b16 %v1019, %v1007
    %v1464 = vpack.c.b16 %v1020, %v1008
    %v1465 = vpack.c.b16 %v1021, %v1009
    %v1466 = vpack.c.b16 %v1022, %v1010
    %v1467 = vpack.c.b16 %v1023, %v1011
    %v1468 = vpack.c.b16 %v1024, %v1012
    %v1469 = vpack.c.b16 %v1025, %v1013
    %v1470 = vpack.c.b16 %v1026, %v1014
    %v1471 = vpack.c.b16 %v1027, %v1015
    %v1472 = vpack.c.b16 %v1040, %v1028
    %v1473 = vpack.c.b16 %v1041, %v1029
    %v1474 = vpack.c.b16 %v1042, %v1030
    %v1475 = vpack.c.b16 %v1043, %v1031
    %v1476 = vpack.c.b16 %v1044, %v1032
    %v1477 = vpack.c.b16 %v1045, %v1033
    %v1478 = vpack.c.b16 %v1046, %v1034
    %v1479 = vpack.c.b16 %v1047, %v1035
    %v1480 = vpack.c.b16 %v1048, %v1036
    %v1481 = vpack.c.b16 %v1049, %v1037
    %v1482 = vpack.c.b16 %v1050, %v1038
    %v1483 = vpack.c.b16 %v1051, %v1039
    %v1484 = vpack.c.b16 %v1064, %v1052
    %v1485 = vpack.c.b16 %v1065, %v1053
    %v1486 = vpack.c.b16 %v1066, %v1054
    %v1487 = vpack.c.b16 %v1067, %v1055
    %v1488 = vpack.c.b16 %v1068, %v1056
    %v1489 = vpack.c.b16 %v1069, %v1057
    %v1490 = vpack.c.b16 %v1070, %v1058
    %v1491 = vpack.c.b16 %v1071, %v1059
    %v1492 = vpack.c.b16 %v1072, %v1060
    %v1493 = vpack.c.b16 %v1073, %v1061
    %v1494 = vpack.c.b16 %v1074, %v1062
    %v1495 = vpack.c.b16 %v1075, %v1063
    %v1496 = vpack.c.b16 %v1088, %v1076
    %v1497 = vpack.c.b16 %v1089, %v1077
    %v1498 = vpack.c.b16 %v1090, %v1078
    %v1499 = vpack.c.b16 %v1091, %v1079
    %v1500 = vpack.c.b16 %v1092, %v1080
    %v1501 = vpack.c.b16 %v1093, %v1081
    %v1502 = vpack.c.b16 %v1094, %v1082
    %v1503 = vpack.c.b16 %v1095, %v1083
    %v1504 = vpack.c.b16 %v1096, %v1084
    %v1505 = vpack.c.b16 %v1097, %v1085
    %v1506 = vpack.c.b16 %v1098, %v1086
    %v1507 = vpack.c.b16 %v1099, %v1087
    %v1508 = vpack.c.b16 %v1112, %v1100
    %v1509 = vpack.c.b16 %v1113, %v1101
    %v1510 = vpack.c.b16 %v1114, %v1102
    %v1511 = vpack.c.b16 %v1115, %v1103
    %v1512 = vpack.c.b16 %v1116, %v1104
    %v1513 = vpack.c.b16 %v1117, %v1105
    %v1514 = vpack.c.b16 %v1118, %v1106
    %v1515 = vpack.c.b16 %v1119, %v1107
    %v1516 = vpack.c.b16 %v1120, %v1108
    %v1517 = vpack.c.b16 %v1121, %v1109
    %v1518 = vpack.c.b16 %v1122, %v1110
    %v1519 = vpack.c.b16 %v1123, %v1111
    %v1520 = vpack.c.b16 %v1136, %v1124
    %v1521 = vpack.c.b16 %v1137, %v1125
    %v1522 = vpack.c.b16 %v1138, %v1126
    %v1523 = vpack.c.b16 %v1139, %v1127
    %v1524 = vpack.c.b16 %v1140, %v1128
    %v1525 = vpack.c.b16 %v1141, %v1129
    %v1526 = vpack.c.b16 %v1142, %v1130
    %v1527 = vpack.c.b16 %v1143, %v1131
    %v1528 = vpack.c.b16 %v1144, %v1132
    %v1529 = vpack.c.b16 %v1145, %v1133
    %v1530 = vpack.c.b16 %v1146, %v1134
    %v1531 = vpack.c.b16 %v1147, %v1135
    %v1532 = vpack.c.b16 %v1160, %v1148
    %v1533 = vpack.c.b16 %v1161, %v1149
    %v1534 = vpack.c.b16 %v1162, %v1150
    %v1535 = vpack.c.b16 %v1163, %v1151
    %v1536 = vpack.c.b16 %v1164, %v1152
    %v1537 = vpack.c.b16 %v1165, %v1153
    %v1538 = vpack.c.b16 %v1166, %v1154
    %v1539 = vpack.c.b16 %v1167, %v1155
    %v1540 = vpack.c.b16 %v1168, %v1156
    %v1541 = vpack.c.b16 %v1169, %v1157
    %v1542 = vpack.c.b16 %v1170, %v1158
    %v1543 = vpack.c.b16 %v1171, %v1159
    %v1544 = vpack.c.b16 %v1184, %v1172
    %v1545 = vpack.c.b16 %v1185, %v1173
    %v1546 = vpack.c.b16 %v1186, %v1174
    %v1547 = vpack.c.b16 %v1187, %v1175
    %v1548 = vpack.c.b16 %v1188, %v1176
    %v1549 = vpack.c.b16 %v1189, %v1177
    %v1550 = vpack.c.b16 %v1190, %v1178
    %v1551 = vpack.c.b16 %v1191, %v1179
    %v1552 = vpack.c.b16 %v1192, %v1180
    %v1553 = vpack.c.b16 %v1193, %v1181
    %v1554 = vpack.c.b16 %v1194, %v1182
    %v1555 = vpack.c.b16 %v1195, %v1183
    %v1556 = vpack.c.b16 %v1208, %v1196
    %v1557 = vpack.c.b16 %v1209, %v1197
    %v1558 = vpack.c.b16 %v1210, %v1198
    %v1559 = vpack.c.b16 %v1211, %v1199
    %v1560 = vpack.c.b16 %v1212, %v1200
    %v1561 = vpack.c.b16 %v1213, %v1201
    %v1562 = vpack.c.b16 %v1214, %v1202
    %v1563 = vpack.c.b16 %v1215, %v1203
    %v1564 = vpack.c.b16 %v1216, %v1204
    %v1565 = vpack.c.b16 %v1217, %v1205
    %v1566 = vpack.c.b16 %v1218, %v1206
    %v1567 = vpack.c.b16 %v1219, %v1207
    %v1568 = vpack.c.b16 %v1232, %v1220
    %v1569 = vpack.c.b16 %v1233, %v1221
    %v1570 = vpack.c.b16 %v1234, %v1222
    %v1571 = vpack.c.b16 %v1235, %v1223
    %v1572 = vpack.c.b16 %v1236, %v1224
    %v1573 = vpack.c.b16 %v1237, %v1225
    %v1574 = vpack.c.b16 %v1238, %v1226
    %v1575 = vpack.c.b16 %v1239, %v1227
    %v1576 = vpack.c.b16 %v1240, %v1228
    %v1577 = vpack.c.b16 %v1241, %v1229
    %v1578 = vpack.c.b16 %v1242, %v1230
    %v1579 = vpack.c.b16 %v1243, %v1231
    %v1580 = vpack.c.b16 %v1256, %v1244
    %v1581 = vpack.c.b16 %v1257, %v1245
    %v1582 = vpack.c.b16 %v1258, %v1246
    %v1583 = vpack.c.b16 %v1259, %v1247
    %v1584 = vpack.c.b16 %v1260, %v1248
    %v1585 = vpack.c.b16 %v1261, %v1249
    %v1586 = vpack.c.b16 %v1262, %v1250
    %v1587 = vpack.c.b16 %v1263, %v1251
    %v1588 = vpack.c.b16 %v1264, %v1252
    %v1589 = vpack.c.b16 %v1265, %v1253
    %v1590 = vpack.c.b16 %v1266, %v1254
    %v1591 = vpack.c.b16 %v1267, %v1255
    %v1592 = vpack.c.b16 %v1280, %v1268
    %v1593 = vpack.c.b16 %v1281, %v1269
    %v1594 = vpack.c.b16 %v1282, %v1270
    %v1595 = vpack.c.b16 %v1283, %v1271
    %v1596 = vpack.c.b16 %v1284, %v1272
    %v1597 = vpack.c.b16 %v1285, %v1273
    %v1598 = vpack.c.b16 %v1286, %v1274
    %v1599 = vpack.c.b16 %v1287, %v1275
    %v1600 = vpack.c.b16 %v1288, %v1276
    %v1601 = vpack.c.b16 %v1289, %v1277
    %v1602 = vpack.c.b16 %v1290, %v1278
    %v1603 = vpack.c.b16 %v1291, %v1279
    %v1604 = vpack.c.b16 %v1304, %v1292
    %v1605 = vpack.c.b16 %v1305, %v1293
    %v1606 = vpack.c.b16 %v1306, %v1294
    %v1607 = vpack.c.b16 %v1307, %v1295
    %v1608 = vpack.c.b16 %v1308, %v1296
    %v1609 = vpack.c.b16 %v1309, %v1297
    %v1610 = vpack.c.b16 %v1310, %v1298
    %v1611 = vpack.c.b16 %v1311, %v1299
    %v1612 = vpack.c.b16 %v1312, %v1300
    %v1613 = vpack.c.b16 %v1313, %v1301
    %v1614 = vpack.c.b16 %v1314, %v1302
    %v1615 = vpack.c.b16 %v1315, %v1303
    %v1616 = vpack.c.b16 %v1328, %v1316
    %v1617 = vpack.c.b16 %v1329, %v1317
    %v1618 = vpack.c.b16 %v1330, %v1318
    %v1619 = vpack.c.b16 %v1331, %v1319
    %v1620 = vpack.c.b16 %v1332, %v1320
    %v1621 = vpack.c.b16 %v1333, %v1321
    %v1622 = vpack.c.b16 %v1334, %v1322
    %v1623 = vpack.c.b16 %v1335, %v1323
    %v1624 = vpack.c.b16 %v1336, %v1324
    %v1625 = vpack.c.b16 %v1337, %v1325
    %v1626 = vpack.c.b16 %v1338, %v1326
    %v1627 = vpack.c.b16 %v1339, %v1327
    %1916 = vmatpush.bf16.msra.mxu0 %v1424
    %1917 = vmatpush.bf16.msra.mxu0 %v1412
    %1918 = vmatpush.bf16.msra.mxu0 %v1400
    %1919 = vmatpush.bf16.msra.mxu0 %v1388
    %1920 = vmatpush.bf16.msra.mxu0 %v1376
    %1921 = vmatpush.bf16.msra.mxu0 %v1364
    %1922 = vmatpush.bf16.msra.mxu0 %v1352
    %1923 = vmatpush.bf16.msra.mxu0 %v1340
    %1924 = vmatmul.bf16.gmra.mxu0 %v452
    %v1925 = vpop.f32.mrf.mxu0
    %v1926 = vadd.f32 %v388, %v1925
    %v1927 = vpop.f32.mrf.mxu0
    %v1928 = vadd.f32 %v388, %v1927
    %1929 = vmatmul.bf16.gmra.mxu0 %v455
    %v1930 = vpop.f32.mrf.mxu0
    %v1931 = vadd.f32 %v388, %v1930
    %v1932 = vpop.f32.mrf.mxu0
    %v1933 = vadd.f32 %v388, %v1932
    %1934 = vmatmul.bf16.gmra.mxu0 %v458
    %v1935 = vpop.f32.mrf.mxu0
    %v1936 = vadd.f32 %v388, %v1935
    %v1937 = vpop.f32.mrf.mxu0
    %v1938 = vadd.f32 %v388, %v1937
    %1939 = vmatmul.bf16.gmra.mxu0 %v461
    %v1940 = vpop.f32.mrf.mxu0
    %v1941 = vadd.f32 %v388, %v1940
    %v1942 = vpop.f32.mrf.mxu0
    %v1943 = vadd.f32 %v388, %v1942
    %1944 = vdwg.mxu0
    %1945 = vmatpush.bf16.msra.mxu0 %v1520
    %1946 = vmatpush.bf16.msra.mxu0 %v1508
    %1947 = vmatpush.bf16.msra.mxu0 %v1496
    %1948 = vmatpush.bf16.msra.mxu0 %v1484
    %1949 = vmatpush.bf16.msra.mxu0 %v1472
    %1950 = vmatpush.bf16.msra.mxu0 %v1460
    %1951 = vmatpush.bf16.msra.mxu0 %v1448
    %1952 = vmatpush.bf16.msra.mxu0 %v1436
    %1953 = vmatmul.bf16.gmra.mxu0 %v453
    %v1954 = vpop.f32.mrf.mxu0
    %v1955 = vadd.f32 %v1926, %v1954
    %v1956 = vpop.f32.mrf.mxu0
    %v1957 = vadd.f32 %v1928, %v1956
    %1958 = vmatmul.bf16.gmra.mxu0 %v456
    %v1959 = vpop.f32.mrf.mxu0
    %v1960 = vadd.f32 %v1931, %v1959
    %v1961 = vpop.f32.mrf.mxu0
    %v1962 = vadd.f32 %v1933, %v1961
    %1963 = vmatmul.bf16.gmra.mxu0 %v459
    %v1964 = vpop.f32.mrf.mxu0
    %v1965 = vadd.f32 %v1936, %v1964
    %v1966 = vpop.f32.mrf.mxu0
    %v1967 = vadd.f32 %v1938, %v1966
    %1968 = vmatmul.bf16.gmra.mxu0 %v462
    %v1969 = vpop.f32.mrf.mxu0
    %v1970 = vadd.f32 %v1941, %v1969
    %v1971 = vpop.f32.mrf.mxu0
    %v1972 = vadd.f32 %v1943, %v1971
    %1973 = vdwg.mxu0
    %1974 = vmatpush.bf16.msra.mxu0 %v1616
    %1975 = vmatpush.bf16.msra.mxu0 %v1604
    %1976 = vmatpush.bf16.msra.mxu0 %v1592
    %1977 = vmatpush.bf16.msra.mxu0 %v1580
    %1978 = vmatpush.bf16.msra.mxu0 %v1568
    %1979 = vmatpush.bf16.msra.mxu0 %v1556
    %1980 = vmatpush.bf16.msra.mxu0 %v1544
    %1981 = vmatpush.bf16.msra.mxu0 %v1532
    %1982 = vmatmul.bf16.gmra.mxu0 %v454
    %v1983 = vpop.f32.mrf.mxu0
    %v1984 = vadd.f32 %v1955, %v1983
    %v1985 = vpop.f32.mrf.mxu0
    %v1986 = vadd.f32 %v1957, %v1985
    %1987 = vmatmul.bf16.gmra.mxu0 %v457
    %v1988 = vpop.f32.mrf.mxu0
    %v1989 = vadd.f32 %v1960, %v1988
    %v1990 = vpop.f32.mrf.mxu0
    %v1991 = vadd.f32 %v1962, %v1990
    %1992 = vmatmul.bf16.gmra.mxu0 %v460
    %v1993 = vpop.f32.mrf.mxu0
    %v1994 = vadd.f32 %v1965, %v1993
    %v1995 = vpop.f32.mrf.mxu0
    %v1996 = vadd.f32 %v1967, %v1995
    %1997 = vmatmul.bf16.gmra.mxu0 %v463
    %v1998 = vpop.f32.mrf.mxu0
    %v1999 = vadd.f32 %v1970, %v1998
    %v2000 = vpop.f32.mrf.mxu0
    %v2001 = vadd.f32 %v1972, %v2000
    %2002 = vdwg.mxu0
    %2003 = vmatpush.bf16.msra.mxu0 %v1425
    %2004 = vmatpush.bf16.msra.mxu0 %v1413
    %2005 = vmatpush.bf16.msra.mxu0 %v1401
    %2006 = vmatpush.bf16.msra.mxu0 %v1389
    %2007 = vmatpush.bf16.msra.mxu0 %v1377
    %2008 = vmatpush.bf16.msra.mxu0 %v1365
    %2009 = vmatpush.bf16.msra.mxu0 %v1353
    %2010 = vmatpush.bf16.msra.mxu0 %v1341
    %2011 = vmatmul.bf16.gmra.mxu0 %v452
    %v2012 = vpop.f32.mrf.mxu0
    %v2013 = vadd.f32 %v389, %v2012
    %v2014 = vpop.f32.mrf.mxu0
    %v2015 = vadd.f32 %v389, %v2014
    %2016 = vmatmul.bf16.gmra.mxu0 %v455
    %v2017 = vpop.f32.mrf.mxu0
    %v2018 = vadd.f32 %v389, %v2017
    %v2019 = vpop.f32.mrf.mxu0
    %v2020 = vadd.f32 %v389, %v2019
    %2021 = vmatmul.bf16.gmra.mxu0 %v458
    %v2022 = vpop.f32.mrf.mxu0
    %v2023 = vadd.f32 %v389, %v2022
    %v2024 = vpop.f32.mrf.mxu0
    %v2025 = vadd.f32 %v389, %v2024
    %2026 = vmatmul.bf16.gmra.mxu0 %v461
    %v2027 = vpop.f32.mrf.mxu0
    %v2028 = vadd.f32 %v389, %v2027
    %v2029 = vpop.f32.mrf.mxu0
    %v2030 = vadd.f32 %v389, %v2029
    %2031 = vdwg.mxu0
    %2032 = vmatpush.bf16.msra.mxu0 %v1521
    %2033 = vmatpush.bf16.msra.mxu0 %v1509
    %2034 = vmatpush.bf16.msra.mxu0 %v1497
    %2035 = vmatpush.bf16.msra.mxu0 %v1485
    %2036 = vmatpush.bf16.msra.mxu0 %v1473
    %2037 = vmatpush.bf16.msra.mxu0 %v1461
    %2038 = vmatpush.bf16.msra.mxu0 %v1449
    %2039 = vmatpush.bf16.msra.mxu0 %v1437
    %2040 = vmatmul.bf16.gmra.mxu0 %v453
    %v2041 = vpop.f32.mrf.mxu0
    %v2042 = vadd.f32 %v2013, %v2041
    %v2043 = vpop.f32.mrf.mxu0
    %v2044 = vadd.f32 %v2015, %v2043
    %2045 = vmatmul.bf16.gmra.mxu0 %v456
    %v2046 = vpop.f32.mrf.mxu0
    %v2047 = vadd.f32 %v2018, %v2046
    %v2048 = vpop.f32.mrf.mxu0
    %v2049 = vadd.f32 %v2020, %v2048
    %2050 = vmatmul.bf16.gmra.mxu0 %v459
    %v2051 = vpop.f32.mrf.mxu0
    %v2052 = vadd.f32 %v2023, %v2051
    %v2053 = vpop.f32.mrf.mxu0
    %v2054 = vadd.f32 %v2025, %v2053
    %2055 = vmatmul.bf16.gmra.mxu0 %v462
    %v2056 = vpop.f32.mrf.mxu0
    %v2057 = vadd.f32 %v2028, %v2056
    %v2058 = vpop.f32.mrf.mxu0
    %v2059 = vadd.f32 %v2030, %v2058
    %2060 = vdwg.mxu0
    %2061 = vmatpush.bf16.msra.mxu0 %v1617
    %2062 = vmatpush.bf16.msra.mxu0 %v1605
    %2063 = vmatpush.bf16.msra.mxu0 %v1593
    %2064 = vmatpush.bf16.msra.mxu0 %v1581
    %2065 = vmatpush.bf16.msra.mxu0 %v1569
    %2066 = vmatpush.bf16.msra.mxu0 %v1557
    %2067 = vmatpush.bf16.msra.mxu0 %v1545
    %2068 = vmatpush.bf16.msra.mxu0 %v1533
    %2069 = vmatmul.bf16.gmra.mxu0 %v454
    %v2070 = vpop.f32.mrf.mxu0
    %v2071 = vadd.f32 %v2042, %v2070
    %v2072 = vpop.f32.mrf.mxu0
    %v2073 = vadd.f32 %v2044, %v2072
    %2074 = vmatmul.bf16.gmra.mxu0 %v457
    %v2075 = vpop.f32.mrf.mxu0
    %v2076 = vadd.f32 %v2047, %v2075
    %v2077 = vpop.f32.mrf.mxu0
    %v2078 = vadd.f32 %v2049, %v2077
    %2079 = vmatmul.bf16.gmra.mxu0 %v460
    %v2080 = vpop.f32.mrf.mxu0
    %v2081 = vadd.f32 %v2052, %v2080
    %v2082 = vpop.f32.mrf.mxu0
    %v2083 = vadd.f32 %v2054, %v2082
    %2084 = vmatmul.bf16.gmra.mxu0 %v463
    %v2085 = vpop.f32.mrf.mxu0
    %v2086 = vadd.f32 %v2057, %v2085
    %v2087 = vpop.f32.mrf.mxu0
    %v2088 = vadd.f32 %v2059, %v2087
    %2089 = vdwg.mxu0
    %2090 = vmatpush.bf16.msra.mxu0 %v1426
    %2091 = vmatpush.bf16.msra.mxu0 %v1414
    %2092 = vmatpush.bf16.msra.mxu0 %v1402
    %2093 = vmatpush.bf16.msra.mxu0 %v1390
    %2094 = vmatpush.bf16.msra.mxu0 %v1378
    %2095 = vmatpush.bf16.msra.mxu0 %v1366
    %2096 = vmatpush.bf16.msra.mxu0 %v1354
    %2097 = vmatpush.bf16.msra.mxu0 %v1342
    %2098 = vmatmul.bf16.gmra.mxu0 %v452
    %v2099 = vpop.f32.mrf.mxu0
    %v2100 = vadd.f32 %v390, %v2099
    %v2101 = vpop.f32.mrf.mxu0
    %v2102 = vadd.f32 %v390, %v2101
    %2103 = vmatmul.bf16.gmra.mxu0 %v455
    %v2104 = vpop.f32.mrf.mxu0
    %v2105 = vadd.f32 %v390, %v2104
    %v2106 = vpop.f32.mrf.mxu0
    %v2107 = vadd.f32 %v390, %v2106
    %2108 = vmatmul.bf16.gmra.mxu0 %v458
    %v2109 = vpop.f32.mrf.mxu0
    %v2110 = vadd.f32 %v390, %v2109
    %v2111 = vpop.f32.mrf.mxu0
    %v2112 = vadd.f32 %v390, %v2111
    %2113 = vmatmul.bf16.gmra.mxu0 %v461
    %v2114 = vpop.f32.mrf.mxu0
    %v2115 = vadd.f32 %v390, %v2114
    %v2116 = vpop.f32.mrf.mxu0
    %v2117 = vadd.f32 %v390, %v2116
    %2118 = vdwg.mxu0
    %2119 = vmatpush.bf16.msra.mxu0 %v1522
    %2120 = vmatpush.bf16.msra.mxu0 %v1510
    %2121 = vmatpush.bf16.msra.mxu0 %v1498
    %2122 = vmatpush.bf16.msra.mxu0 %v1486
    %2123 = vmatpush.bf16.msra.mxu0 %v1474
    %2124 = vmatpush.bf16.msra.mxu0 %v1462
    %2125 = vmatpush.bf16.msra.mxu0 %v1450
    %2126 = vmatpush.bf16.msra.mxu0 %v1438
    %2127 = vmatmul.bf16.gmra.mxu0 %v453
    %v2128 = vpop.f32.mrf.mxu0
    %v2129 = vadd.f32 %v2100, %v2128
    %v2130 = vpop.f32.mrf.mxu0
    %v2131 = vadd.f32 %v2102, %v2130
    %2132 = vmatmul.bf16.gmra.mxu0 %v456
    %v2133 = vpop.f32.mrf.mxu0
    %v2134 = vadd.f32 %v2105, %v2133
    %v2135 = vpop.f32.mrf.mxu0
    %v2136 = vadd.f32 %v2107, %v2135
    %2137 = vmatmul.bf16.gmra.mxu0 %v459
    %v2138 = vpop.f32.mrf.mxu0
    %v2139 = vadd.f32 %v2110, %v2138
    %v2140 = vpop.f32.mrf.mxu0
    %v2141 = vadd.f32 %v2112, %v2140
    %2142 = vmatmul.bf16.gmra.mxu0 %v462
    %v2143 = vpop.f32.mrf.mxu0
    %v2144 = vadd.f32 %v2115, %v2143
    %v2145 = vpop.f32.mrf.mxu0
    %v2146 = vadd.f32 %v2117, %v2145
    %2147 = vdwg.mxu0
    %2148 = vmatpush.bf16.msra.mxu0 %v1618
    %2149 = vmatpush.bf16.msra.mxu0 %v1606
    %2150 = vmatpush.bf16.msra.mxu0 %v1594
    %2151 = vmatpush.bf16.msra.mxu0 %v1582
    %2152 = vmatpush.bf16.msra.mxu0 %v1570
    %2153 = vmatpush.bf16.msra.mxu0 %v1558
    %2154 = vmatpush.bf16.msra.mxu0 %v1546
    %2155 = vmatpush.bf16.msra.mxu0 %v1534
    %2156 = vmatmul.bf16.gmra.mxu0 %v454
    %v2157 = vpop.f32.mrf.mxu0
    %v2158 = vadd.f32 %v2129, %v2157
    %v2159 = vpop.f32.mrf.mxu0
    %v2160 = vadd.f32 %v2131, %v2159
    %2161 = vmatmul.bf16.gmra.mxu0 %v457
    %v2162 = vpop.f32.mrf.mxu0
    %v2163 = vadd.f32 %v2134, %v2162
    %v2164 = vpop.f32.mrf.mxu0
    %v2165 = vadd.f32 %v2136, %v2164
    %2166 = vmatmul.bf16.gmra.mxu0 %v460
    %v2167 = vpop.f32.mrf.mxu0
    %v2168 = vadd.f32 %v2139, %v2167
    %v2169 = vpop.f32.mrf.mxu0
    %v2170 = vadd.f32 %v2141, %v2169
    %2171 = vmatmul.bf16.gmra.mxu0 %v463
    %v2172 = vpop.f32.mrf.mxu0
    %v2173 = vadd.f32 %v2144, %v2172
    %v2174 = vpop.f32.mrf.mxu0
    %v2175 = vadd.f32 %v2146, %v2174
    %2176 = vdwg.mxu0
    %2177 = vmatpush.bf16.msra.mxu0 %v1427
    %2178 = vmatpush.bf16.msra.mxu0 %v1415
    %2179 = vmatpush.bf16.msra.mxu0 %v1403
    %2180 = vmatpush.bf16.msra.mxu0 %v1391
    %2181 = vmatpush.bf16.msra.mxu0 %v1379
    %2182 = vmatpush.bf16.msra.mxu0 %v1367
    %2183 = vmatpush.bf16.msra.mxu0 %v1355
    %2184 = vmatpush.bf16.msra.mxu0 %v1343
    %2185 = vmatmul.bf16.gmra.mxu0 %v452
    %v2186 = vpop.f32.mrf.mxu0
    %v2187 = vadd.f32 %v391, %v2186
    %v2188 = vpop.f32.mrf.mxu0
    %v2189 = vadd.f32 %v391, %v2188
    %2190 = vmatmul.bf16.gmra.mxu0 %v455
    %v2191 = vpop.f32.mrf.mxu0
    %v2192 = vadd.f32 %v391, %v2191
    %v2193 = vpop.f32.mrf.mxu0
    %v2194 = vadd.f32 %v391, %v2193
    %2195 = vmatmul.bf16.gmra.mxu0 %v458
    %v2196 = vpop.f32.mrf.mxu0
    %v2197 = vadd.f32 %v391, %v2196
    %v2198 = vpop.f32.mrf.mxu0
    %v2199 = vadd.f32 %v391, %v2198
    %2200 = vmatmul.bf16.gmra.mxu0 %v461
    %v2201 = vpop.f32.mrf.mxu0
    %v2202 = vadd.f32 %v391, %v2201
    %v2203 = vpop.f32.mrf.mxu0
    %v2204 = vadd.f32 %v391, %v2203
    %2205 = vdwg.mxu0
    %2206 = vmatpush.bf16.msra.mxu0 %v1523
    %2207 = vmatpush.bf16.msra.mxu0 %v1511
    %2208 = vmatpush.bf16.msra.mxu0 %v1499
    %2209 = vmatpush.bf16.msra.mxu0 %v1487
    %2210 = vmatpush.bf16.msra.mxu0 %v1475
    %2211 = vmatpush.bf16.msra.mxu0 %v1463
    %2212 = vmatpush.bf16.msra.mxu0 %v1451
    %2213 = vmatpush.bf16.msra.mxu0 %v1439
    %2214 = vmatmul.bf16.gmra.mxu0 %v453
    %v2215 = vpop.f32.mrf.mxu0
    %v2216 = vadd.f32 %v2187, %v2215
    %v2217 = vpop.f32.mrf.mxu0
    %v2218 = vadd.f32 %v2189, %v2217
    %2219 = vmatmul.bf16.gmra.mxu0 %v456
    %v2220 = vpop.f32.mrf.mxu0
    %v2221 = vadd.f32 %v2192, %v2220
    %v2222 = vpop.f32.mrf.mxu0
    %v2223 = vadd.f32 %v2194, %v2222
    %2224 = vmatmul.bf16.gmra.mxu0 %v459
    %v2225 = vpop.f32.mrf.mxu0
    %v2226 = vadd.f32 %v2197, %v2225
    %v2227 = vpop.f32.mrf.mxu0
    %v2228 = vadd.f32 %v2199, %v2227
    %2229 = vmatmul.bf16.gmra.mxu0 %v462
    %v2230 = vpop.f32.mrf.mxu0
    %v2231 = vadd.f32 %v2202, %v2230
    %v2232 = vpop.f32.mrf.mxu0
    %v2233 = vadd.f32 %v2204, %v2232
    %2234 = vdwg.mxu0
    %2235 = vmatpush.bf16.msra.mxu0 %v1619
    %2236 = vmatpush.bf16.msra.mxu0 %v1607
    %2237 = vmatpush.bf16.msra.mxu0 %v1595
    %2238 = vmatpush.bf16.msra.mxu0 %v1583
    %2239 = vmatpush.bf16.msra.mxu0 %v1571
    %2240 = vmatpush.bf16.msra.mxu0 %v1559
    %2241 = vmatpush.bf16.msra.mxu0 %v1547
    %2242 = vmatpush.bf16.msra.mxu0 %v1535
    %2243 = vmatmul.bf16.gmra.mxu0 %v454
    %v2244 = vpop.f32.mrf.mxu0
    %v2245 = vadd.f32 %v2216, %v2244
    %v2246 = vpop.f32.mrf.mxu0
    %v2247 = vadd.f32 %v2218, %v2246
    %2248 = vmatmul.bf16.gmra.mxu0 %v457
    %v2249 = vpop.f32.mrf.mxu0
    %v2250 = vadd.f32 %v2221, %v2249
    %v2251 = vpop.f32.mrf.mxu0
    %v2252 = vadd.f32 %v2223, %v2251
    %2253 = vmatmul.bf16.gmra.mxu0 %v460
    %v2254 = vpop.f32.mrf.mxu0
    %v2255 = vadd.f32 %v2226, %v2254
    %v2256 = vpop.f32.mrf.mxu0
    %v2257 = vadd.f32 %v2228, %v2256
    %2258 = vmatmul.bf16.gmra.mxu0 %v463
    %v2259 = vpop.f32.mrf.mxu0
    %v2260 = vadd.f32 %v2231, %v2259
    %v2261 = vpop.f32.mrf.mxu0
    %v2262 = vadd.f32 %v2233, %v2261
    %2263 = vdwg.mxu0
    %2264 = vmatpush.bf16.msra.mxu0 %v1428
    %2265 = vmatpush.bf16.msra.mxu0 %v1416
    %2266 = vmatpush.bf16.msra.mxu0 %v1404
    %2267 = vmatpush.bf16.msra.mxu0 %v1392
    %2268 = vmatpush.bf16.msra.mxu0 %v1380
    %2269 = vmatpush.bf16.msra.mxu0 %v1368
    %2270 = vmatpush.bf16.msra.mxu0 %v1356
    %2271 = vmatpush.bf16.msra.mxu0 %v1344
    %2272 = vmatmul.bf16.gmra.mxu0 %v452
    %v2273 = vpop.f32.mrf.mxu0
    %v2274 = vadd.f32 %v392, %v2273
    %v2275 = vpop.f32.mrf.mxu0
    %v2276 = vadd.f32 %v392, %v2275
    %2277 = vmatmul.bf16.gmra.mxu0 %v455
    %v2278 = vpop.f32.mrf.mxu0
    %v2279 = vadd.f32 %v392, %v2278
    %v2280 = vpop.f32.mrf.mxu0
    %v2281 = vadd.f32 %v392, %v2280
    %2282 = vmatmul.bf16.gmra.mxu0 %v458
    %v2283 = vpop.f32.mrf.mxu0
    %v2284 = vadd.f32 %v392, %v2283
    %v2285 = vpop.f32.mrf.mxu0
    %v2286 = vadd.f32 %v392, %v2285
    %2287 = vmatmul.bf16.gmra.mxu0 %v461
    %v2288 = vpop.f32.mrf.mxu0
    %v2289 = vadd.f32 %v392, %v2288
    %v2290 = vpop.f32.mrf.mxu0
    %v2291 = vadd.f32 %v392, %v2290
    %2292 = vdwg.mxu0
    %2293 = vmatpush.bf16.msra.mxu0 %v1524
    %2294 = vmatpush.bf16.msra.mxu0 %v1512
    %2295 = vmatpush.bf16.msra.mxu0 %v1500
    %2296 = vmatpush.bf16.msra.mxu0 %v1488
    %2297 = vmatpush.bf16.msra.mxu0 %v1476
    %2298 = vmatpush.bf16.msra.mxu0 %v1464
    %2299 = vmatpush.bf16.msra.mxu0 %v1452
    %2300 = vmatpush.bf16.msra.mxu0 %v1440
    %2301 = vmatmul.bf16.gmra.mxu0 %v453
    %v2302 = vpop.f32.mrf.mxu0
    %v2303 = vadd.f32 %v2274, %v2302
    %v2304 = vpop.f32.mrf.mxu0
    %v2305 = vadd.f32 %v2276, %v2304
    %2306 = vmatmul.bf16.gmra.mxu0 %v456
    %v2307 = vpop.f32.mrf.mxu0
    %v2308 = vadd.f32 %v2279, %v2307
    %v2309 = vpop.f32.mrf.mxu0
    %v2310 = vadd.f32 %v2281, %v2309
    %2311 = vmatmul.bf16.gmra.mxu0 %v459
    %v2312 = vpop.f32.mrf.mxu0
    %v2313 = vadd.f32 %v2284, %v2312
    %v2314 = vpop.f32.mrf.mxu0
    %v2315 = vadd.f32 %v2286, %v2314
    %2316 = vmatmul.bf16.gmra.mxu0 %v462
    %v2317 = vpop.f32.mrf.mxu0
    %v2318 = vadd.f32 %v2289, %v2317
    %v2319 = vpop.f32.mrf.mxu0
    %v2320 = vadd.f32 %v2291, %v2319
    %2321 = vdwg.mxu0
    %2322 = vmatpush.bf16.msra.mxu0 %v1620
    %2323 = vmatpush.bf16.msra.mxu0 %v1608
    %2324 = vmatpush.bf16.msra.mxu0 %v1596
    %2325 = vmatpush.bf16.msra.mxu0 %v1584
    %2326 = vmatpush.bf16.msra.mxu0 %v1572
    %2327 = vmatpush.bf16.msra.mxu0 %v1560
    %2328 = vmatpush.bf16.msra.mxu0 %v1548
    %2329 = vmatpush.bf16.msra.mxu0 %v1536
    %2330 = vmatmul.bf16.gmra.mxu0 %v454
    %v2331 = vpop.f32.mrf.mxu0
    %v2332 = vadd.f32 %v2303, %v2331
    %v2333 = vpop.f32.mrf.mxu0
    %v2334 = vadd.f32 %v2305, %v2333
    %2335 = vmatmul.bf16.gmra.mxu0 %v457
    %v2336 = vpop.f32.mrf.mxu0
    %v2337 = vadd.f32 %v2308, %v2336
    %v2338 = vpop.f32.mrf.mxu0
    %v2339 = vadd.f32 %v2310, %v2338
    %2340 = vmatmul.bf16.gmra.mxu0 %v460
    %v2341 = vpop.f32.mrf.mxu0
    %v2342 = vadd.f32 %v2313, %v2341
    %v2343 = vpop.f32.mrf.mxu0
    %v2344 = vadd.f32 %v2315, %v2343
    %2345 = vmatmul.bf16.gmra.mxu0 %v463
    %v2346 = vpop.f32.mrf.mxu0
    %v2347 = vadd.f32 %v2318, %v2346
    %v2348 = vpop.f32.mrf.mxu0
    %v2349 = vadd.f32 %v2320, %v2348
    %2350 = vdwg.mxu0
    %2351 = vmatpush.bf16.msra.mxu0 %v1429
    %2352 = vmatpush.bf16.msra.mxu0 %v1417
    %2353 = vmatpush.bf16.msra.mxu0 %v1405
    %2354 = vmatpush.bf16.msra.mxu0 %v1393
    %2355 = vmatpush.bf16.msra.mxu0 %v1381
    %2356 = vmatpush.bf16.msra.mxu0 %v1369
    %2357 = vmatpush.bf16.msra.mxu0 %v1357
    %2358 = vmatpush.bf16.msra.mxu0 %v1345
    %2359 = vmatmul.bf16.gmra.mxu0 %v452
    %v2360 = vpop.f32.mrf.mxu0
    %v2361 = vadd.f32 %v393, %v2360
    %v2362 = vpop.f32.mrf.mxu0
    %v2363 = vadd.f32 %v393, %v2362
    %2364 = vmatmul.bf16.gmra.mxu0 %v455
    %v2365 = vpop.f32.mrf.mxu0
    %v2366 = vadd.f32 %v393, %v2365
    %v2367 = vpop.f32.mrf.mxu0
    %v2368 = vadd.f32 %v393, %v2367
    %2369 = vmatmul.bf16.gmra.mxu0 %v458
    %v2370 = vpop.f32.mrf.mxu0
    %v2371 = vadd.f32 %v393, %v2370
    %v2372 = vpop.f32.mrf.mxu0
    %v2373 = vadd.f32 %v393, %v2372
    %2374 = vmatmul.bf16.gmra.mxu0 %v461
    %v2375 = vpop.f32.mrf.mxu0
    %v2376 = vadd.f32 %v393, %v2375
    %v2377 = vpop.f32.mrf.mxu0
    %v2378 = vadd.f32 %v393, %v2377
    %2379 = vdwg.mxu0
    %2380 = vmatpush.bf16.msra.mxu0 %v1525
    %2381 = vmatpush.bf16.msra.mxu0 %v1513
    %2382 = vmatpush.bf16.msra.mxu0 %v1501
    %2383 = vmatpush.bf16.msra.mxu0 %v1489
    %2384 = vmatpush.bf16.msra.mxu0 %v1477
    %2385 = vmatpush.bf16.msra.mxu0 %v1465
    %2386 = vmatpush.bf16.msra.mxu0 %v1453
    %2387 = vmatpush.bf16.msra.mxu0 %v1441
    %2388 = vmatmul.bf16.gmra.mxu0 %v453
    %v2389 = vpop.f32.mrf.mxu0
    %v2390 = vadd.f32 %v2361, %v2389
    %v2391 = vpop.f32.mrf.mxu0
    %v2392 = vadd.f32 %v2363, %v2391
    %2393 = vmatmul.bf16.gmra.mxu0 %v456
    %v2394 = vpop.f32.mrf.mxu0
    %v2395 = vadd.f32 %v2366, %v2394
    %v2396 = vpop.f32.mrf.mxu0
    %v2397 = vadd.f32 %v2368, %v2396
    %2398 = vmatmul.bf16.gmra.mxu0 %v459
    %v2399 = vpop.f32.mrf.mxu0
    %v2400 = vadd.f32 %v2371, %v2399
    %v2401 = vpop.f32.mrf.mxu0
    %v2402 = vadd.f32 %v2373, %v2401
    %2403 = vmatmul.bf16.gmra.mxu0 %v462
    %v2404 = vpop.f32.mrf.mxu0
    %v2405 = vadd.f32 %v2376, %v2404
    %v2406 = vpop.f32.mrf.mxu0
    %v2407 = vadd.f32 %v2378, %v2406
    %2408 = vdwg.mxu0
    %2409 = vmatpush.bf16.msra.mxu0 %v1621
    %2410 = vmatpush.bf16.msra.mxu0 %v1609
    %2411 = vmatpush.bf16.msra.mxu0 %v1597
    %2412 = vmatpush.bf16.msra.mxu0 %v1585
    %2413 = vmatpush.bf16.msra.mxu0 %v1573
    %2414 = vmatpush.bf16.msra.mxu0 %v1561
    %2415 = vmatpush.bf16.msra.mxu0 %v1549
    %2416 = vmatpush.bf16.msra.mxu0 %v1537
    %2417 = vmatmul.bf16.gmra.mxu0 %v454
    %v2418 = vpop.f32.mrf.mxu0
    %v2419 = vadd.f32 %v2390, %v2418
    %v2420 = vpop.f32.mrf.mxu0
    %v2421 = vadd.f32 %v2392, %v2420
    %2422 = vmatmul.bf16.gmra.mxu0 %v457
    %v2423 = vpop.f32.mrf.mxu0
    %v2424 = vadd.f32 %v2395, %v2423
    %v2425 = vpop.f32.mrf.mxu0
    %v2426 = vadd.f32 %v2397, %v2425
    %2427 = vmatmul.bf16.gmra.mxu0 %v460
    %v2428 = vpop.f32.mrf.mxu0
    %v2429 = vadd.f32 %v2400, %v2428
    %v2430 = vpop.f32.mrf.mxu0
    %v2431 = vadd.f32 %v2402, %v2430
    %2432 = vmatmul.bf16.gmra.mxu0 %v463
    %v2433 = vpop.f32.mrf.mxu0
    %v2434 = vadd.f32 %v2405, %v2433
    %v2435 = vpop.f32.mrf.mxu0
    %v2436 = vadd.f32 %v2407, %v2435
    %2437 = vdwg.mxu0
    %2438 = vmatpush.bf16.msra.mxu0 %v1430
    %2439 = vmatpush.bf16.msra.mxu0 %v1418
    %2440 = vmatpush.bf16.msra.mxu0 %v1406
    %2441 = vmatpush.bf16.msra.mxu0 %v1394
    %2442 = vmatpush.bf16.msra.mxu0 %v1382
    %2443 = vmatpush.bf16.msra.mxu0 %v1370
    %2444 = vmatpush.bf16.msra.mxu0 %v1358
    %2445 = vmatpush.bf16.msra.mxu0 %v1346
    %2446 = vmatmul.bf16.gmra.mxu0 %v452
    %v2447 = vpop.f32.mrf.mxu0
    %v2448 = vadd.f32 %v394, %v2447
    %v2449 = vpop.f32.mrf.mxu0
    %v2450 = vadd.f32 %v394, %v2449
    %2451 = vmatmul.bf16.gmra.mxu0 %v455
    %v2452 = vpop.f32.mrf.mxu0
    %v2453 = vadd.f32 %v394, %v2452
    %v2454 = vpop.f32.mrf.mxu0
    %v2455 = vadd.f32 %v394, %v2454
    %2456 = vmatmul.bf16.gmra.mxu0 %v458
    %v2457 = vpop.f32.mrf.mxu0
    %v2458 = vadd.f32 %v394, %v2457
    %v2459 = vpop.f32.mrf.mxu0
    %v2460 = vadd.f32 %v394, %v2459
    %2461 = vmatmul.bf16.gmra.mxu0 %v461
    %v2462 = vpop.f32.mrf.mxu0
    %v2463 = vadd.f32 %v394, %v2462
    %v2464 = vpop.f32.mrf.mxu0
    %v2465 = vadd.f32 %v394, %v2464
    %2466 = vdwg.mxu0
    %2467 = vmatpush.bf16.msra.mxu0 %v1526
    %2468 = vmatpush.bf16.msra.mxu0 %v1514
    %2469 = vmatpush.bf16.msra.mxu0 %v1502
    %2470 = vmatpush.bf16.msra.mxu0 %v1490
    %2471 = vmatpush.bf16.msra.mxu0 %v1478
    %2472 = vmatpush.bf16.msra.mxu0 %v1466
    %2473 = vmatpush.bf16.msra.mxu0 %v1454
    %2474 = vmatpush.bf16.msra.mxu0 %v1442
    %2475 = vmatmul.bf16.gmra.mxu0 %v453
    %v2476 = vpop.f32.mrf.mxu0
    %v2477 = vadd.f32 %v2448, %v2476
    %v2478 = vpop.f32.mrf.mxu0
    %v2479 = vadd.f32 %v2450, %v2478
    %2480 = vmatmul.bf16.gmra.mxu0 %v456
    %v2481 = vpop.f32.mrf.mxu0
    %v2482 = vadd.f32 %v2453, %v2481
    %v2483 = vpop.f32.mrf.mxu0
    %v2484 = vadd.f32 %v2455, %v2483
    %2485 = vmatmul.bf16.gmra.mxu0 %v459
    %v2486 = vpop.f32.mrf.mxu0
    %v2487 = vadd.f32 %v2458, %v2486
    %v2488 = vpop.f32.mrf.mxu0
    %v2489 = vadd.f32 %v2460, %v2488
    %2490 = vmatmul.bf16.gmra.mxu0 %v462
    %v2491 = vpop.f32.mrf.mxu0
    %v2492 = vadd.f32 %v2463, %v2491
    %v2493 = vpop.f32.mrf.mxu0
    %v2494 = vadd.f32 %v2465, %v2493
    %2495 = vdwg.mxu0
    %2496 = vmatpush.bf16.msra.mxu0 %v1622
    %2497 = vmatpush.bf16.msra.mxu0 %v1610
    %2498 = vmatpush.bf16.msra.mxu0 %v1598
    %2499 = vmatpush.bf16.msra.mxu0 %v1586
    %2500 = vmatpush.bf16.msra.mxu0 %v1574
    %2501 = vmatpush.bf16.msra.mxu0 %v1562
    %2502 = vmatpush.bf16.msra.mxu0 %v1550
    %2503 = vmatpush.bf16.msra.mxu0 %v1538
    %2504 = vmatmul.bf16.gmra.mxu0 %v454
    %v2505 = vpop.f32.mrf.mxu0
    %v2506 = vadd.f32 %v2477, %v2505
    %v2507 = vpop.f32.mrf.mxu0
    %v2508 = vadd.f32 %v2479, %v2507
    %2509 = vmatmul.bf16.gmra.mxu0 %v457
    %v2510 = vpop.f32.mrf.mxu0
    %v2511 = vadd.f32 %v2482, %v2510
    %v2512 = vpop.f32.mrf.mxu0
    %v2513 = vadd.f32 %v2484, %v2512
    %2514 = vmatmul.bf16.gmra.mxu0 %v460
    %v2515 = vpop.f32.mrf.mxu0
    %v2516 = vadd.f32 %v2487, %v2515
    %v2517 = vpop.f32.mrf.mxu0
    %v2518 = vadd.f32 %v2489, %v2517
    %2519 = vmatmul.bf16.gmra.mxu0 %v463
    %v2520 = vpop.f32.mrf.mxu0
    %v2521 = vadd.f32 %v2492, %v2520
    %v2522 = vpop.f32.mrf.mxu0
    %v2523 = vadd.f32 %v2494, %v2522
    %2524 = vdwg.mxu0
    %2525 = vmatpush.bf16.msra.mxu0 %v1431
    %2526 = vmatpush.bf16.msra.mxu0 %v1419
    %2527 = vmatpush.bf16.msra.mxu0 %v1407
    %2528 = vmatpush.bf16.msra.mxu0 %v1395
    %2529 = vmatpush.bf16.msra.mxu0 %v1383
    %2530 = vmatpush.bf16.msra.mxu0 %v1371
    %2531 = vmatpush.bf16.msra.mxu0 %v1359
    %2532 = vmatpush.bf16.msra.mxu0 %v1347
    %2533 = vmatmul.bf16.gmra.mxu0 %v452
    %v2534 = vpop.f32.mrf.mxu0
    %v2535 = vadd.f32 %v395, %v2534
    %v2536 = vpop.f32.mrf.mxu0
    %v2537 = vadd.f32 %v395, %v2536
    %2538 = vmatmul.bf16.gmra.mxu0 %v455
    %v2539 = vpop.f32.mrf.mxu0
    %v2540 = vadd.f32 %v395, %v2539
    %v2541 = vpop.f32.mrf.mxu0
    %v2542 = vadd.f32 %v395, %v2541
    %2543 = vmatmul.bf16.gmra.mxu0 %v458
    %v2544 = vpop.f32.mrf.mxu0
    %v2545 = vadd.f32 %v395, %v2544
    %v2546 = vpop.f32.mrf.mxu0
    %v2547 = vadd.f32 %v395, %v2546
    %2548 = vmatmul.bf16.gmra.mxu0 %v461
    %v2549 = vpop.f32.mrf.mxu0
    %v2550 = vadd.f32 %v395, %v2549
    %v2551 = vpop.f32.mrf.mxu0
    %v2552 = vadd.f32 %v395, %v2551
    %2553 = vdwg.mxu0
    %2554 = vmatpush.bf16.msra.mxu0 %v1527
    %2555 = vmatpush.bf16.msra.mxu0 %v1515
    %2556 = vmatpush.bf16.msra.mxu0 %v1503
    %2557 = vmatpush.bf16.msra.mxu0 %v1491
    %2558 = vmatpush.bf16.msra.mxu0 %v1479
    %2559 = vmatpush.bf16.msra.mxu0 %v1467
    %2560 = vmatpush.bf16.msra.mxu0 %v1455
    %2561 = vmatpush.bf16.msra.mxu0 %v1443
    %2562 = vmatmul.bf16.gmra.mxu0 %v453
    %v2563 = vpop.f32.mrf.mxu0
    %v2564 = vadd.f32 %v2535, %v2563
    %v2565 = vpop.f32.mrf.mxu0
    %v2566 = vadd.f32 %v2537, %v2565
    %2567 = vmatmul.bf16.gmra.mxu0 %v456
    %v2568 = vpop.f32.mrf.mxu0
    %v2569 = vadd.f32 %v2540, %v2568
    %v2570 = vpop.f32.mrf.mxu0
    %v2571 = vadd.f32 %v2542, %v2570
    %2572 = vmatmul.bf16.gmra.mxu0 %v459
    %v2573 = vpop.f32.mrf.mxu0
    %v2574 = vadd.f32 %v2545, %v2573
    %v2575 = vpop.f32.mrf.mxu0
    %v2576 = vadd.f32 %v2547, %v2575
    %2577 = vmatmul.bf16.gmra.mxu0 %v462
    %v2578 = vpop.f32.mrf.mxu0
    %v2579 = vadd.f32 %v2550, %v2578
    %v2580 = vpop.f32.mrf.mxu0
    %v2581 = vadd.f32 %v2552, %v2580
    %2582 = vdwg.mxu0
    %2583 = vmatpush.bf16.msra.mxu0 %v1623
    %2584 = vmatpush.bf16.msra.mxu0 %v1611
    %2585 = vmatpush.bf16.msra.mxu0 %v1599
    %2586 = vmatpush.bf16.msra.mxu0 %v1587
    %2587 = vmatpush.bf16.msra.mxu0 %v1575
    %2588 = vmatpush.bf16.msra.mxu0 %v1563
    %2589 = vmatpush.bf16.msra.mxu0 %v1551
    %2590 = vmatpush.bf16.msra.mxu0 %v1539
    %2591 = vmatmul.bf16.gmra.mxu0 %v454
    %v2592 = vpop.f32.mrf.mxu0
    %v2593 = vadd.f32 %v2564, %v2592
    %v2594 = vpop.f32.mrf.mxu0
    %v2595 = vadd.f32 %v2566, %v2594
    %2596 = vmatmul.bf16.gmra.mxu0 %v457
    %v2597 = vpop.f32.mrf.mxu0
    %v2598 = vadd.f32 %v2569, %v2597
    %v2599 = vpop.f32.mrf.mxu0
    %v2600 = vadd.f32 %v2571, %v2599
    %2601 = vmatmul.bf16.gmra.mxu0 %v460
    %v2602 = vpop.f32.mrf.mxu0
    %v2603 = vadd.f32 %v2574, %v2602
    %v2604 = vpop.f32.mrf.mxu0
    %v2605 = vadd.f32 %v2576, %v2604
    %2606 = vmatmul.bf16.gmra.mxu0 %v463
    %v2607 = vpop.f32.mrf.mxu0
    %v2608 = vadd.f32 %v2579, %v2607
    %v2609 = vpop.f32.mrf.mxu0
    %v2610 = vadd.f32 %v2581, %v2609
    %2611 = vdwg.mxu0
    %2612 = vmatpush.bf16.msra.mxu0 %v1432
    %2613 = vmatpush.bf16.msra.mxu0 %v1420
    %2614 = vmatpush.bf16.msra.mxu0 %v1408
    %2615 = vmatpush.bf16.msra.mxu0 %v1396
    %2616 = vmatpush.bf16.msra.mxu0 %v1384
    %2617 = vmatpush.bf16.msra.mxu0 %v1372
    %2618 = vmatpush.bf16.msra.mxu0 %v1360
    %2619 = vmatpush.bf16.msra.mxu0 %v1348
    %2620 = vmatmul.bf16.gmra.mxu0 %v452
    %v2621 = vpop.f32.mrf.mxu0
    %v2622 = vadd.f32 %v396, %v2621
    %v2623 = vpop.f32.mrf.mxu0
    %v2624 = vadd.f32 %v396, %v2623
    %2625 = vmatmul.bf16.gmra.mxu0 %v455
    %v2626 = vpop.f32.mrf.mxu0
    %v2627 = vadd.f32 %v396, %v2626
    %v2628 = vpop.f32.mrf.mxu0
    %v2629 = vadd.f32 %v396, %v2628
    %2630 = vmatmul.bf16.gmra.mxu0 %v458
    %v2631 = vpop.f32.mrf.mxu0
    %v2632 = vadd.f32 %v396, %v2631
    %v2633 = vpop.f32.mrf.mxu0
    %v2634 = vadd.f32 %v396, %v2633
    %2635 = vmatmul.bf16.gmra.mxu0 %v461
    %v2636 = vpop.f32.mrf.mxu0
    %v2637 = vadd.f32 %v396, %v2636
    %v2638 = vpop.f32.mrf.mxu0
    %v2639 = vadd.f32 %v396, %v2638
    %2640 = vdwg.mxu0
    %2641 = vmatpush.bf16.msra.mxu0 %v1528
    %2642 = vmatpush.bf16.msra.mxu0 %v1516
    %2643 = vmatpush.bf16.msra.mxu0 %v1504
    %2644 = vmatpush.bf16.msra.mxu0 %v1492
    %2645 = vmatpush.bf16.msra.mxu0 %v1480
    %2646 = vmatpush.bf16.msra.mxu0 %v1468
    %2647 = vmatpush.bf16.msra.mxu0 %v1456
    %2648 = vmatpush.bf16.msra.mxu0 %v1444
    %2649 = vmatmul.bf16.gmra.mxu0 %v453
    %v2650 = vpop.f32.mrf.mxu0
    %v2651 = vadd.f32 %v2622, %v2650
    %v2652 = vpop.f32.mrf.mxu0
    %v2653 = vadd.f32 %v2624, %v2652
    %2654 = vmatmul.bf16.gmra.mxu0 %v456
    %v2655 = vpop.f32.mrf.mxu0
    %v2656 = vadd.f32 %v2627, %v2655
    %v2657 = vpop.f32.mrf.mxu0
    %v2658 = vadd.f32 %v2629, %v2657
    %2659 = vmatmul.bf16.gmra.mxu0 %v459
    %v2660 = vpop.f32.mrf.mxu0
    %v2661 = vadd.f32 %v2632, %v2660
    %v2662 = vpop.f32.mrf.mxu0
    %v2663 = vadd.f32 %v2634, %v2662
    %2664 = vmatmul.bf16.gmra.mxu0 %v462
    %v2665 = vpop.f32.mrf.mxu0
    %v2666 = vadd.f32 %v2637, %v2665
    %v2667 = vpop.f32.mrf.mxu0
    %v2668 = vadd.f32 %v2639, %v2667
    %2669 = vdwg.mxu0
    %2670 = vmatpush.bf16.msra.mxu0 %v1624
    %2671 = vmatpush.bf16.msra.mxu0 %v1612
    %2672 = vmatpush.bf16.msra.mxu0 %v1600
    %2673 = vmatpush.bf16.msra.mxu0 %v1588
    %2674 = vmatpush.bf16.msra.mxu0 %v1576
    %2675 = vmatpush.bf16.msra.mxu0 %v1564
    %2676 = vmatpush.bf16.msra.mxu0 %v1552
    %2677 = vmatpush.bf16.msra.mxu0 %v1540
    %2678 = vmatmul.bf16.gmra.mxu0 %v454
    %v2679 = vpop.f32.mrf.mxu0
    %v2680 = vadd.f32 %v2651, %v2679
    %v2681 = vpop.f32.mrf.mxu0
    %v2682 = vadd.f32 %v2653, %v2681
    %2683 = vmatmul.bf16.gmra.mxu0 %v457
    %v2684 = vpop.f32.mrf.mxu0
    %v2685 = vadd.f32 %v2656, %v2684
    %v2686 = vpop.f32.mrf.mxu0
    %v2687 = vadd.f32 %v2658, %v2686
    %2688 = vmatmul.bf16.gmra.mxu0 %v460
    %v2689 = vpop.f32.mrf.mxu0
    %v2690 = vadd.f32 %v2661, %v2689
    %v2691 = vpop.f32.mrf.mxu0
    %v2692 = vadd.f32 %v2663, %v2691
    %2693 = vmatmul.bf16.gmra.mxu0 %v463
    %v2694 = vpop.f32.mrf.mxu0
    %v2695 = vadd.f32 %v2666, %v2694
    %v2696 = vpop.f32.mrf.mxu0
    %v2697 = vadd.f32 %v2668, %v2696
    %2698 = vdwg.mxu0
    %2699 = vmatpush.bf16.msra.mxu0 %v1433
    %2700 = vmatpush.bf16.msra.mxu0 %v1421
    %2701 = vmatpush.bf16.msra.mxu0 %v1409
    %2702 = vmatpush.bf16.msra.mxu0 %v1397
    %2703 = vmatpush.bf16.msra.mxu0 %v1385
    %2704 = vmatpush.bf16.msra.mxu0 %v1373
    %2705 = vmatpush.bf16.msra.mxu0 %v1361
    %2706 = vmatpush.bf16.msra.mxu0 %v1349
    %2707 = vmatmul.bf16.gmra.mxu0 %v452
    %v2708 = vpop.f32.mrf.mxu0
    %v2709 = vadd.f32 %v397, %v2708
    %v2710 = vpop.f32.mrf.mxu0
    %v2711 = vadd.f32 %v397, %v2710
    %2712 = vmatmul.bf16.gmra.mxu0 %v455
    %v2713 = vpop.f32.mrf.mxu0
    %v2714 = vadd.f32 %v397, %v2713
    %v2715 = vpop.f32.mrf.mxu0
    %v2716 = vadd.f32 %v397, %v2715
    %2717 = vmatmul.bf16.gmra.mxu0 %v458
    %v2718 = vpop.f32.mrf.mxu0
    %v2719 = vadd.f32 %v397, %v2718
    %v2720 = vpop.f32.mrf.mxu0
    %v2721 = vadd.f32 %v397, %v2720
    %2722 = vmatmul.bf16.gmra.mxu0 %v461
    %v2723 = vpop.f32.mrf.mxu0
    %v2724 = vadd.f32 %v397, %v2723
    %v2725 = vpop.f32.mrf.mxu0
    %v2726 = vadd.f32 %v397, %v2725
    %2727 = vdwg.mxu0
    %2728 = vmatpush.bf16.msra.mxu0 %v1529
    %2729 = vmatpush.bf16.msra.mxu0 %v1517
    %2730 = vmatpush.bf16.msra.mxu0 %v1505
    %2731 = vmatpush.bf16.msra.mxu0 %v1493
    %2732 = vmatpush.bf16.msra.mxu0 %v1481
    %2733 = vmatpush.bf16.msra.mxu0 %v1469
    %2734 = vmatpush.bf16.msra.mxu0 %v1457
    %2735 = vmatpush.bf16.msra.mxu0 %v1445
    %2736 = vmatmul.bf16.gmra.mxu0 %v453
    %v2737 = vpop.f32.mrf.mxu0
    %v2738 = vadd.f32 %v2709, %v2737
    %v2739 = vpop.f32.mrf.mxu0
    %v2740 = vadd.f32 %v2711, %v2739
    %2741 = vmatmul.bf16.gmra.mxu0 %v456
    %v2742 = vpop.f32.mrf.mxu0
    %v2743 = vadd.f32 %v2714, %v2742
    %v2744 = vpop.f32.mrf.mxu0
    %v2745 = vadd.f32 %v2716, %v2744
    %2746 = vmatmul.bf16.gmra.mxu0 %v459
    %v2747 = vpop.f32.mrf.mxu0
    %v2748 = vadd.f32 %v2719, %v2747
    %v2749 = vpop.f32.mrf.mxu0
    %v2750 = vadd.f32 %v2721, %v2749
    %2751 = vmatmul.bf16.gmra.mxu0 %v462
    %v2752 = vpop.f32.mrf.mxu0
    %v2753 = vadd.f32 %v2724, %v2752
    %v2754 = vpop.f32.mrf.mxu0
    %v2755 = vadd.f32 %v2726, %v2754
    %2756 = vdwg.mxu0
    %2757 = vmatpush.bf16.msra.mxu0 %v1625
    %2758 = vmatpush.bf16.msra.mxu0 %v1613
    %2759 = vmatpush.bf16.msra.mxu0 %v1601
    %2760 = vmatpush.bf16.msra.mxu0 %v1589
    %2761 = vmatpush.bf16.msra.mxu0 %v1577
    %2762 = vmatpush.bf16.msra.mxu0 %v1565
    %2763 = vmatpush.bf16.msra.mxu0 %v1553
    %2764 = vmatpush.bf16.msra.mxu0 %v1541
    %2765 = vmatmul.bf16.gmra.mxu0 %v454
    %v2766 = vpop.f32.mrf.mxu0
    %v2767 = vadd.f32 %v2738, %v2766
    %v2768 = vpop.f32.mrf.mxu0
    %v2769 = vadd.f32 %v2740, %v2768
    %2770 = vmatmul.bf16.gmra.mxu0 %v457
    %v2771 = vpop.f32.mrf.mxu0
    %v2772 = vadd.f32 %v2743, %v2771
    %v2773 = vpop.f32.mrf.mxu0
    %v2774 = vadd.f32 %v2745, %v2773
    %2775 = vmatmul.bf16.gmra.mxu0 %v460
    %v2776 = vpop.f32.mrf.mxu0
    %v2777 = vadd.f32 %v2748, %v2776
    %v2778 = vpop.f32.mrf.mxu0
    %v2779 = vadd.f32 %v2750, %v2778
    %2780 = vmatmul.bf16.gmra.mxu0 %v463
    %v2781 = vpop.f32.mrf.mxu0
    %v2782 = vadd.f32 %v2753, %v2781
    %v2783 = vpop.f32.mrf.mxu0
    %v2784 = vadd.f32 %v2755, %v2783
    %2785 = vdwg.mxu0
    %2786 = vmatpush.bf16.msra.mxu0 %v1434
    %2787 = vmatpush.bf16.msra.mxu0 %v1422
    %2788 = vmatpush.bf16.msra.mxu0 %v1410
    %2789 = vmatpush.bf16.msra.mxu0 %v1398
    %2790 = vmatpush.bf16.msra.mxu0 %v1386
    %2791 = vmatpush.bf16.msra.mxu0 %v1374
    %2792 = vmatpush.bf16.msra.mxu0 %v1362
    %2793 = vmatpush.bf16.msra.mxu0 %v1350
    %2794 = vmatmul.bf16.gmra.mxu0 %v452
    %v2795 = vpop.f32.mrf.mxu0
    %v2796 = vadd.f32 %v398, %v2795
    %v2797 = vpop.f32.mrf.mxu0
    %v2798 = vadd.f32 %v398, %v2797
    %2799 = vmatmul.bf16.gmra.mxu0 %v455
    %v2800 = vpop.f32.mrf.mxu0
    %v2801 = vadd.f32 %v398, %v2800
    %v2802 = vpop.f32.mrf.mxu0
    %v2803 = vadd.f32 %v398, %v2802
    %2804 = vmatmul.bf16.gmra.mxu0 %v458
    %v2805 = vpop.f32.mrf.mxu0
    %v2806 = vadd.f32 %v398, %v2805
    %v2807 = vpop.f32.mrf.mxu0
    %v2808 = vadd.f32 %v398, %v2807
    %2809 = vmatmul.bf16.gmra.mxu0 %v461
    %v2810 = vpop.f32.mrf.mxu0
    %v2811 = vadd.f32 %v398, %v2810
    %v2812 = vpop.f32.mrf.mxu0
    %v2813 = vadd.f32 %v398, %v2812
    %2814 = vdwg.mxu0
    %2815 = vmatpush.bf16.msra.mxu0 %v1530
    %2816 = vmatpush.bf16.msra.mxu0 %v1518
    %2817 = vmatpush.bf16.msra.mxu0 %v1506
    %2818 = vmatpush.bf16.msra.mxu0 %v1494
    %2819 = vmatpush.bf16.msra.mxu0 %v1482
    %2820 = vmatpush.bf16.msra.mxu0 %v1470
    %2821 = vmatpush.bf16.msra.mxu0 %v1458
    %2822 = vmatpush.bf16.msra.mxu0 %v1446
    %2823 = vmatmul.bf16.gmra.mxu0 %v453
    %v2824 = vpop.f32.mrf.mxu0
    %v2825 = vadd.f32 %v2796, %v2824
    %v2826 = vpop.f32.mrf.mxu0
    %v2827 = vadd.f32 %v2798, %v2826
    %2828 = vmatmul.bf16.gmra.mxu0 %v456
    %v2829 = vpop.f32.mrf.mxu0
    %v2830 = vadd.f32 %v2801, %v2829
    %v2831 = vpop.f32.mrf.mxu0
    %v2832 = vadd.f32 %v2803, %v2831
    %2833 = vmatmul.bf16.gmra.mxu0 %v459
    %v2834 = vpop.f32.mrf.mxu0
    %v2835 = vadd.f32 %v2806, %v2834
    %v2836 = vpop.f32.mrf.mxu0
    %v2837 = vadd.f32 %v2808, %v2836
    %2838 = vmatmul.bf16.gmra.mxu0 %v462
    %v2839 = vpop.f32.mrf.mxu0
    %v2840 = vadd.f32 %v2811, %v2839
    %v2841 = vpop.f32.mrf.mxu0
    %v2842 = vadd.f32 %v2813, %v2841
    %2843 = vdwg.mxu0
    %2844 = vmatpush.bf16.msra.mxu0 %v1626
    %2845 = vmatpush.bf16.msra.mxu0 %v1614
    %2846 = vmatpush.bf16.msra.mxu0 %v1602
    %2847 = vmatpush.bf16.msra.mxu0 %v1590
    %2848 = vmatpush.bf16.msra.mxu0 %v1578
    %2849 = vmatpush.bf16.msra.mxu0 %v1566
    %2850 = vmatpush.bf16.msra.mxu0 %v1554
    %2851 = vmatpush.bf16.msra.mxu0 %v1542
    %2852 = vmatmul.bf16.gmra.mxu0 %v454
    %v2853 = vpop.f32.mrf.mxu0
    %v2854 = vadd.f32 %v2825, %v2853
    %v2855 = vpop.f32.mrf.mxu0
    %v2856 = vadd.f32 %v2827, %v2855
    %2857 = vmatmul.bf16.gmra.mxu0 %v457
    %v2858 = vpop.f32.mrf.mxu0
    %v2859 = vadd.f32 %v2830, %v2858
    %v2860 = vpop.f32.mrf.mxu0
    %v2861 = vadd.f32 %v2832, %v2860
    %2862 = vmatmul.bf16.gmra.mxu0 %v460
    %v2863 = vpop.f32.mrf.mxu0
    %v2864 = vadd.f32 %v2835, %v2863
    %v2865 = vpop.f32.mrf.mxu0
    %v2866 = vadd.f32 %v2837, %v2865
    %2867 = vmatmul.bf16.gmra.mxu0 %v463
    %v2868 = vpop.f32.mrf.mxu0
    %v2869 = vadd.f32 %v2840, %v2868
    %v2870 = vpop.f32.mrf.mxu0
    %v2871 = vadd.f32 %v2842, %v2870
    %2872 = vdwg.mxu0
    %2873 = vmatpush.bf16.msra.mxu0 %v1435
    %2874 = vmatpush.bf16.msra.mxu0 %v1423
    %2875 = vmatpush.bf16.msra.mxu0 %v1411
    %2876 = vmatpush.bf16.msra.mxu0 %v1399
    %2877 = vmatpush.bf16.msra.mxu0 %v1387
    %2878 = vmatpush.bf16.msra.mxu0 %v1375
    %2879 = vmatpush.bf16.msra.mxu0 %v1363
    %2880 = vmatpush.bf16.msra.mxu0 %v1351
    %2881 = vmatmul.bf16.gmra.mxu0 %v452
    %v2882 = vpop.f32.mrf.mxu0
    %v2883 = vadd.f32 %v399, %v2882
    %v2884 = vpop.f32.mrf.mxu0
    %v2885 = vadd.f32 %v399, %v2884
    %2886 = vmatmul.bf16.gmra.mxu0 %v455
    %v2887 = vpop.f32.mrf.mxu0
    %v2888 = vadd.f32 %v399, %v2887
    %v2889 = vpop.f32.mrf.mxu0
    %v2890 = vadd.f32 %v399, %v2889
    %2891 = vmatmul.bf16.gmra.mxu0 %v458
    %v2892 = vpop.f32.mrf.mxu0
    %v2893 = vadd.f32 %v399, %v2892
    %v2894 = vpop.f32.mrf.mxu0
    %v2895 = vadd.f32 %v399, %v2894
    %2896 = vmatmul.bf16.gmra.mxu0 %v461
    %v2897 = vpop.f32.mrf.mxu0
    %v2898 = vadd.f32 %v399, %v2897
    %v2899 = vpop.f32.mrf.mxu0
    %v2900 = vadd.f32 %v399, %v2899
    %2901 = vdwg.mxu0
    %2902 = vmatpush.bf16.msra.mxu0 %v1531
    %2903 = vmatpush.bf16.msra.mxu0 %v1519
    %2904 = vmatpush.bf16.msra.mxu0 %v1507
    %2905 = vmatpush.bf16.msra.mxu0 %v1495
    %2906 = vmatpush.bf16.msra.mxu0 %v1483
    %2907 = vmatpush.bf16.msra.mxu0 %v1471
    %2908 = vmatpush.bf16.msra.mxu0 %v1459
    %2909 = vmatpush.bf16.msra.mxu0 %v1447
    %2910 = vmatmul.bf16.gmra.mxu0 %v453
    %v2911 = vpop.f32.mrf.mxu0
    %v2912 = vadd.f32 %v2883, %v2911
    %v2913 = vpop.f32.mrf.mxu0
    %v2914 = vadd.f32 %v2885, %v2913
    %2915 = vmatmul.bf16.gmra.mxu0 %v456
    %v2916 = vpop.f32.mrf.mxu0
    %v2917 = vadd.f32 %v2888, %v2916
    %v2918 = vpop.f32.mrf.mxu0
    %v2919 = vadd.f32 %v2890, %v2918
    %2920 = vmatmul.bf16.gmra.mxu0 %v459
    %v2921 = vpop.f32.mrf.mxu0
    %v2922 = vadd.f32 %v2893, %v2921
    %v2923 = vpop.f32.mrf.mxu0
    %v2924 = vadd.f32 %v2895, %v2923
    %2925 = vmatmul.bf16.gmra.mxu0 %v462
    %v2926 = vpop.f32.mrf.mxu0
    %v2927 = vadd.f32 %v2898, %v2926
    %v2928 = vpop.f32.mrf.mxu0
    %v2929 = vadd.f32 %v2900, %v2928
    %2930 = vdwg.mxu0
    %2931 = vmatpush.bf16.msra.mxu0 %v1627
    %2932 = vmatpush.bf16.msra.mxu0 %v1615
    %2933 = vmatpush.bf16.msra.mxu0 %v1603
    %2934 = vmatpush.bf16.msra.mxu0 %v1591
    %2935 = vmatpush.bf16.msra.mxu0 %v1579
    %2936 = vmatpush.bf16.msra.mxu0 %v1567
    %2937 = vmatpush.bf16.msra.mxu0 %v1555
    %2938 = vmatpush.bf16.msra.mxu0 %v1543
    %2939 = vmatmul.bf16.gmra.mxu0 %v454
    %v2940 = vpop.f32.mrf.mxu0
    %v2941 = vadd.f32 %v2912, %v2940
    %v2942 = vpop.f32.mrf.mxu0
    %v2943 = vadd.f32 %v2914, %v2942
    %2944 = vmatmul.bf16.gmra.mxu0 %v457
    %v2945 = vpop.f32.mrf.mxu0
    %v2946 = vadd.f32 %v2917, %v2945
    %v2947 = vpop.f32.mrf.mxu0
    %v2948 = vadd.f32 %v2919, %v2947
    %2949 = vmatmul.bf16.gmra.mxu0 %v460
    %v2950 = vpop.f32.mrf.mxu0
    %v2951 = vadd.f32 %v2922, %v2950
    %v2952 = vpop.f32.mrf.mxu0
    %v2953 = vadd.f32 %v2924, %v2952
    %2954 = vmatmul.bf16.gmra.mxu0 %v463
    %v2955 = vpop.f32.mrf.mxu0
    %v2956 = vadd.f32 %v2927, %v2955
    %v2957 = vpop.f32.mrf.mxu0
    %v2958 = vadd.f32 %v2929, %v2957
    %2959 = vdwg.mxu0
    %v2960 = vpack.c.bf16 %v2071, %v1984
    %v2961 = vpack.c.bf16 %v2245, %v2158
    %v2962 = vpack.c.bf16 %v2419, %v2332
    %v2963 = vpack.c.bf16 %v2593, %v2506
    %v2964 = vpack.c.bf16 %v2767, %v2680
    %v2965 = vpack.c.bf16 %v2941, %v2854
    %v2966 = vpack.c.bf16 %v2073, %v1986
    %v2967 = vpack.c.bf16 %v2247, %v2160
    %v2968 = vpack.c.bf16 %v2421, %v2334
    %v2969 = vpack.c.bf16 %v2595, %v2508
    %v2970 = vpack.c.bf16 %v2769, %v2682
    %v2971 = vpack.c.bf16 %v2943, %v2856
    %v2972 = vpack.c.bf16 %v2076, %v1989
    %v2973 = vpack.c.bf16 %v2250, %v2163
    %v2974 = vpack.c.bf16 %v2424, %v2337
    %v2975 = vpack.c.bf16 %v2598, %v2511
    %v2976 = vpack.c.bf16 %v2772, %v2685
    %v2977 = vpack.c.bf16 %v2946, %v2859
    %v2978 = vpack.c.bf16 %v2078, %v1991
    %v2979 = vpack.c.bf16 %v2252, %v2165
    %v2980 = vpack.c.bf16 %v2426, %v2339
    %v2981 = vpack.c.bf16 %v2600, %v2513
    %v2982 = vpack.c.bf16 %v2774, %v2687
    %v2983 = vpack.c.bf16 %v2948, %v2861
    %v2984 = vpack.c.bf16 %v2081, %v1994
    %v2985 = vpack.c.bf16 %v2255, %v2168
    %v2986 = vpack.c.bf16 %v2429, %v2342
    %v2987 = vpack.c.bf16 %v2603, %v2516
    %v2988 = vpack.c.bf16 %v2777, %v2690
    %v2989 = vpack.c.bf16 %v2951, %v2864
    %v2990 = vpack.c.bf16 %v2083, %v1996
    %v2991 = vpack.c.bf16 %v2257, %v2170
    %v2992 = vpack.c.bf16 %v2431, %v2344
    %v2993 = vpack.c.bf16 %v2605, %v2518
    %v2994 = vpack.c.bf16 %v2779, %v2692
    %v2995 = vpack.c.bf16 %v2953, %v2866
    %v2996 = vpack.c.bf16 %v2086, %v1999
    %v2997 = vpack.c.bf16 %v2260, %v2173
    %v2998 = vpack.c.bf16 %v2434, %v2347
    %v2999 = vpack.c.bf16 %v2608, %v2521
    %v3000 = vpack.c.bf16 %v2782, %v2695
    %v3001 = vpack.c.bf16 %v2956, %v2869
    %v3002 = vpack.c.bf16 %v2088, %v2001
    %v3003 = vpack.c.bf16 %v2262, %v2175
    %v3004 = vpack.c.bf16 %v2436, %v2349
    %v3005 = vpack.c.bf16 %v2610, %v2523
    %v3006 = vpack.c.bf16 %v2784, %v2697
    %v3007 = vpack.c.bf16 %v2958, %v2871
    %v3009 = vunpack.c.l.b16 %v2960
    %v3010 = vunpack.c.h.b16 %v2960
    %v3011 = vpack.c.b16 %v3009, %v3009
    %v3012 = vpack.c.b16 %v3010, %v3010
    %v3016 = vunpack.c.l.b16 %v2962
    %v3017 = vunpack.c.h.b16 %v2962
    %v3018 = vpack.c.b16 %v3016, %v3016
    %v3019 = vpack.c.b16 %v3017, %v3017
    %3022 = vmatpush.bf16.xpose.msra.mxu0 0
    %3023 = vmatpush.bf16.xpose.msra.mxu0 0
    %3024 = vmatpush.bf16.xpose.msra.mxu0 0
    %3025 = vmatpush.bf16.xpose.msra.mxu0 0
    %3026 = vmatpush.bf16.xpose.msra.mxu0 0
    %3027 = vmatpush.bf16.xpose.msra.mxu0 0
    %3028 = vmatpush.bf16.xpose.msra.mxu0 0
    %3029 = vmatpush.bf16.xpose.msra.mxu0 %v3018
    %3030 = vmatmul.bf16.gmra.mxu0 %v3011
    %v3031 = vpop.f32.mrf.mxu0
    %v3032 = vadd.f32 0.0, %v3031
    %v3033 = vpop.f32.mrf.mxu0
    %3034 = vdwg.mxu0
    %3035 = vmatpush.bf16.xpose.msra.mxu0 0
    %3036 = vmatpush.bf16.xpose.msra.mxu0 0
    %3037 = vmatpush.bf16.xpose.msra.mxu0 0
    %3038 = vmatpush.bf16.xpose.msra.mxu0 0
    %3039 = vmatpush.bf16.xpose.msra.mxu0 0
    %3040 = vmatpush.bf16.xpose.msra.mxu0 0
    %3041 = vmatpush.bf16.xpose.msra.mxu0 0
    %3042 = vmatpush.bf16.xpose.msra.mxu0 %v3019
    %3043 = vmatmul.bf16.gmra.mxu0 %v3012
    %v3044 = vpop.f32.mrf.mxu0
    %v3045 = vadd.f32 %v3032, %v3044
    %v3046 = vpop.f32.mrf.mxu0
    %3047 = vdwg.mxu0
    %v3049 = vunpack.c.l.b16 %v2966
    %v3050 = vunpack.c.h.b16 %v2966
    %v3051 = vpack.c.b16 %v3049, %v3049
    %v3052 = vpack.c.b16 %v3050, %v3050
    %v3056 = vunpack.c.l.b16 %v2968
    %v3057 = vunpack.c.h.b16 %v2968
    %v3058 = vpack.c.b16 %v3056, %v3056
    %v3059 = vpack.c.b16 %v3057, %v3057
    %3062 = vmatpush.bf16.xpose.msra.mxu0 0
    %3063 = vmatpush.bf16.xpose.msra.mxu0 0
    %3064 = vmatpush.bf16.xpose.msra.mxu0 0
    %3065 = vmatpush.bf16.xpose.msra.mxu0 0
    %3066 = vmatpush.bf16.xpose.msra.mxu0 0
    %3067 = vmatpush.bf16.xpose.msra.mxu0 0
    %3068 = vmatpush.bf16.xpose.msra.mxu0 0
    %3069 = vmatpush.bf16.xpose.msra.mxu0 %v3058
    %3070 = vmatmul.bf16.gmra.mxu0 %v3051
    %v3071 = vpop.f32.mrf.mxu0
    %v3072 = vadd.f32 0.0, %v3071
    %v3073 = vpop.f32.mrf.mxu0
    %3074 = vdwg.mxu0
    %3075 = vmatpush.bf16.xpose.msra.mxu0 0
    %3076 = vmatpush.bf16.xpose.msra.mxu0 0
    %3077 = vmatpush.bf16.xpose.msra.mxu0 0
    %3078 = vmatpush.bf16.xpose.msra.mxu0 0
    %3079 = vmatpush.bf16.xpose.msra.mxu0 0
    %3080 = vmatpush.bf16.xpose.msra.mxu0 0
    %3081 = vmatpush.bf16.xpose.msra.mxu0 0
    %3082 = vmatpush.bf16.xpose.msra.mxu0 %v3059
    %3083 = vmatmul.bf16.gmra.mxu0 %v3052
    %v3084 = vpop.f32.mrf.mxu0
    %v3085 = vadd.f32 %v3072, %v3084
    %v3086 = vpop.f32.mrf.mxu0
    %3087 = vdwg.mxu0
    %v3089 = vunpack.c.l.b16 %v2972
    %v3090 = vunpack.c.h.b16 %v2972
    %v3091 = vpack.c.b16 %v3089, %v3089
    %v3092 = vpack.c.b16 %v3090, %v3090
    %v3096 = vunpack.c.l.b16 %v2974
    %v3097 = vunpack.c.h.b16 %v2974
    %v3098 = vpack.c.b16 %v3096, %v3096
    %v3099 = vpack.c.b16 %v3097, %v3097
    %3102 = vmatpush.bf16.xpose.msra.mxu0 0
    %3103 = vmatpush.bf16.xpose.msra.mxu0 0
    %3104 = vmatpush.bf16.xpose.msra.mxu0 0
    %3105 = vmatpush.bf16.xpose.msra.mxu0 0
    %3106 = vmatpush.bf16.xpose.msra.mxu0 0
    %3107 = vmatpush.bf16.xpose.msra.mxu0 0
    %3108 = vmatpush.bf16.xpose.msra.mxu0 0
    %3109 = vmatpush.bf16.xpose.msra.mxu0 %v3098
    %3110 = vmatmul.bf16.gmra.mxu0 %v3091
    %v3111 = vpop.f32.mrf.mxu0
    %v3112 = vadd.f32 0.0, %v3111
    %v3113 = vpop.f32.mrf.mxu0
    %3114 = vdwg.mxu0
    %3115 = vmatpush.bf16.xpose.msra.mxu0 0
    %3116 = vmatpush.bf16.xpose.msra.mxu0 0
    %3117 = vmatpush.bf16.xpose.msra.mxu0 0
    %3118 = vmatpush.bf16.xpose.msra.mxu0 0
    %3119 = vmatpush.bf16.xpose.msra.mxu0 0
    %3120 = vmatpush.bf16.xpose.msra.mxu0 0
    %3121 = vmatpush.bf16.xpose.msra.mxu0 0
    %3122 = vmatpush.bf16.xpose.msra.mxu0 %v3099
    %3123 = vmatmul.bf16.gmra.mxu0 %v3092
    %v3124 = vpop.f32.mrf.mxu0
    %v3125 = vadd.f32 %v3112, %v3124
    %v3126 = vpop.f32.mrf.mxu0
    %3127 = vdwg.mxu0
    %v3129 = vunpack.c.l.b16 %v2978
    %v3130 = vunpack.c.h.b16 %v2978
    %v3131 = vpack.c.b16 %v3129, %v3129
    %v3132 = vpack.c.b16 %v3130, %v3130
    %v3136 = vunpack.c.l.b16 %v2980
    %v3137 = vunpack.c.h.b16 %v2980
    %v3138 = vpack.c.b16 %v3136, %v3136
    %v3139 = vpack.c.b16 %v3137, %v3137
    %3142 = vmatpush.bf16.xpose.msra.mxu0 0
    %3143 = vmatpush.bf16.xpose.msra.mxu0 0
    %3144 = vmatpush.bf16.xpose.msra.mxu0 0
    %3145 = vmatpush.bf16.xpose.msra.mxu0 0
    %3146 = vmatpush.bf16.xpose.msra.mxu0 0
    %3147 = vmatpush.bf16.xpose.msra.mxu0 0
    %3148 = vmatpush.bf16.xpose.msra.mxu0 0
    %3149 = vmatpush.bf16.xpose.msra.mxu0 %v3138
    %3150 = vmatmul.bf16.gmra.mxu0 %v3131
    %v3151 = vpop.f32.mrf.mxu0
    %v3152 = vadd.f32 0.0, %v3151
    %v3153 = vpop.f32.mrf.mxu0
    %3154 = vdwg.mxu0
    %3155 = vmatpush.bf16.xpose.msra.mxu0 0
    %3156 = vmatpush.bf16.xpose.msra.mxu0 0
    %3157 = vmatpush.bf16.xpose.msra.mxu0 0
    %3158 = vmatpush.bf16.xpose.msra.mxu0 0
    %3159 = vmatpush.bf16.xpose.msra.mxu0 0
    %3160 = vmatpush.bf16.xpose.msra.mxu0 0
    %3161 = vmatpush.bf16.xpose.msra.mxu0 0
    %3162 = vmatpush.bf16.xpose.msra.mxu0 %v3139
    %3163 = vmatmul.bf16.gmra.mxu0 %v3132
    %v3164 = vpop.f32.mrf.mxu0
    %v3165 = vadd.f32 %v3152, %v3164
    %v3166 = vpop.f32.mrf.mxu0
    %3167 = vdwg.mxu0
    %v3169 = vunpack.c.l.b16 %v2984
    %v3170 = vunpack.c.h.b16 %v2984
    %v3171 = vpack.c.b16 %v3169, %v3169
    %v3172 = vpack.c.b16 %v3170, %v3170
    %v3176 = vunpack.c.l.b16 %v2986
    %v3177 = vunpack.c.h.b16 %v2986
    %v3178 = vpack.c.b16 %v3176, %v3176
    %v3179 = vpack.c.b16 %v3177, %v3177
    %3182 = vmatpush.bf16.xpose.msra.mxu0 0
    %3183 = vmatpush.bf16.xpose.msra.mxu0 0
    %3184 = vmatpush.bf16.xpose.msra.mxu0 0
    %3185 = vmatpush.bf16.xpose.msra.mxu0 0
    %3186 = vmatpush.bf16.xpose.msra.mxu0 0
    %3187 = vmatpush.bf16.xpose.msra.mxu0 0
    %3188 = vmatpush.bf16.xpose.msra.mxu0 0
    %3189 = vmatpush.bf16.xpose.msra.mxu0 %v3178
    %3190 = vmatmul.bf16.gmra.mxu0 %v3171
    %v3191 = vpop.f32.mrf.mxu0
    %v3192 = vadd.f32 0.0, %v3191
    %v3193 = vpop.f32.mrf.mxu0
    %3194 = vdwg.mxu0
    %3195 = vmatpush.bf16.xpose.msra.mxu0 0
    %3196 = vmatpush.bf16.xpose.msra.mxu0 0
    %3197 = vmatpush.bf16.xpose.msra.mxu0 0
    %3198 = vmatpush.bf16.xpose.msra.mxu0 0
    %3199 = vmatpush.bf16.xpose.msra.mxu0 0
    %3200 = vmatpush.bf16.xpose.msra.mxu0 0
    %3201 = vmatpush.bf16.xpose.msra.mxu0 0
    %3202 = vmatpush.bf16.xpose.msra.mxu0 %v3179
    %3203 = vmatmul.bf16.gmra.mxu0 %v3172
    %v3204 = vpop.f32.mrf.mxu0
    %v3205 = vadd.f32 %v3192, %v3204
    %v3206 = vpop.f32.mrf.mxu0
    %3207 = vdwg.mxu0
    %v3209 = vunpack.c.l.b16 %v2990
    %v3210 = vunpack.c.h.b16 %v2990
    %v3211 = vpack.c.b16 %v3209, %v3209
    %v3212 = vpack.c.b16 %v3210, %v3210
    %v3216 = vunpack.c.l.b16 %v2992
    %v3217 = vunpack.c.h.b16 %v2992
    %v3218 = vpack.c.b16 %v3216, %v3216
    %v3219 = vpack.c.b16 %v3217, %v3217
    %3222 = vmatpush.bf16.xpose.msra.mxu0 0
    %3223 = vmatpush.bf16.xpose.msra.mxu0 0
    %3224 = vmatpush.bf16.xpose.msra.mxu0 0
    %3225 = vmatpush.bf16.xpose.msra.mxu0 0
    %3226 = vmatpush.bf16.xpose.msra.mxu0 0
    %3227 = vmatpush.bf16.xpose.msra.mxu0 0
    %3228 = vmatpush.bf16.xpose.msra.mxu0 0
    %3229 = vmatpush.bf16.xpose.msra.mxu0 %v3218
    %3230 = vmatmul.bf16.gmra.mxu0 %v3211
    %v3231 = vpop.f32.mrf.mxu0
    %v3232 = vadd.f32 0.0, %v3231
    %v3233 = vpop.f32.mrf.mxu0
    %3234 = vdwg.mxu0
    %3235 = vmatpush.bf16.xpose.msra.mxu0 0
    %3236 = vmatpush.bf16.xpose.msra.mxu0 0
    %3237 = vmatpush.bf16.xpose.msra.mxu0 0
    %3238 = vmatpush.bf16.xpose.msra.mxu0 0
    %3239 = vmatpush.bf16.xpose.msra.mxu0 0
    %3240 = vmatpush.bf16.xpose.msra.mxu0 0
    %3241 = vmatpush.bf16.xpose.msra.mxu0 0
    %3242 = vmatpush.bf16.xpose.msra.mxu0 %v3219
    %3243 = vmatmul.bf16.gmra.mxu0 %v3212
    %v3244 = vpop.f32.mrf.mxu0
    %v3245 = vadd.f32 %v3232, %v3244
    %v3246 = vpop.f32.mrf.mxu0
    %3247 = vdwg.mxu0
    %v3249 = vunpack.c.l.b16 %v2996
    %v3250 = vunpack.c.h.b16 %v2996
    %v3251 = vpack.c.b16 %v3249, %v3249
    %v3252 = vpack.c.b16 %v3250, %v3250
    %v3256 = vunpack.c.l.b16 %v2998
    %v3257 = vunpack.c.h.b16 %v2998
    %v3258 = vpack.c.b16 %v3256, %v3256
    %v3259 = vpack.c.b16 %v3257, %v3257
    %3262 = vmatpush.bf16.xpose.msra.mxu0 0
    %3263 = vmatpush.bf16.xpose.msra.mxu0 0
    %3264 = vmatpush.bf16.xpose.msra.mxu0 0
    %3265 = vmatpush.bf16.xpose.msra.mxu0 0
    %3266 = vmatpush.bf16.xpose.msra.mxu0 0
    %3267 = vmatpush.bf16.xpose.msra.mxu0 0
    %3268 = vmatpush.bf16.xpose.msra.mxu0 0
    %3269 = vmatpush.bf16.xpose.msra.mxu0 %v3258
    %3270 = vmatmul.bf16.gmra.mxu0 %v3251
    %v3271 = vpop.f32.mrf.mxu0
    %v3272 = vadd.f32 0.0, %v3271
    %v3273 = vpop.f32.mrf.mxu0
    %3274 = vdwg.mxu0
    %3275 = vmatpush.bf16.xpose.msra.mxu0 0
    %3276 = vmatpush.bf16.xpose.msra.mxu0 0
    %3277 = vmatpush.bf16.xpose.msra.mxu0 0
    %3278 = vmatpush.bf16.xpose.msra.mxu0 0
    %3279 = vmatpush.bf16.xpose.msra.mxu0 0
    %3280 = vmatpush.bf16.xpose.msra.mxu0 0
    %3281 = vmatpush.bf16.xpose.msra.mxu0 0
    %3282 = vmatpush.bf16.xpose.msra.mxu0 %v3259
    %3283 = vmatmul.bf16.gmra.mxu0 %v3252
    %v3284 = vpop.f32.mrf.mxu0
    %v3285 = vadd.f32 %v3272, %v3284
    %v3286 = vpop.f32.mrf.mxu0
    %3287 = vdwg.mxu0
    %v3289 = vunpack.c.l.b16 %v3002
    %v3290 = vunpack.c.h.b16 %v3002
    %v3291 = vpack.c.b16 %v3289, %v3289
    %v3292 = vpack.c.b16 %v3290, %v3290
    %v3296 = vunpack.c.l.b16 %v3004
    %v3297 = vunpack.c.h.b16 %v3004
    %v3298 = vpack.c.b16 %v3296, %v3296
    %v3299 = vpack.c.b16 %v3297, %v3297
    %3302 = vmatpush.bf16.xpose.msra.mxu0 0
    %3303 = vmatpush.bf16.xpose.msra.mxu0 0
    %3304 = vmatpush.bf16.xpose.msra.mxu0 0
    %3305 = vmatpush.bf16.xpose.msra.mxu0 0
    %3306 = vmatpush.bf16.xpose.msra.mxu0 0
    %3307 = vmatpush.bf16.xpose.msra.mxu0 0
    %3308 = vmatpush.bf16.xpose.msra.mxu0 0
    %3309 = vmatpush.bf16.xpose.msra.mxu0 %v3298
    %3310 = vmatmul.bf16.gmra.mxu0 %v3291
    %v3311 = vpop.f32.mrf.mxu0
    %v3312 = vadd.f32 0.0, %v3311
    %v3313 = vpop.f32.mrf.mxu0
    %3314 = vdwg.mxu0
    %3315 = vmatpush.bf16.xpose.msra.mxu0 0
    %3316 = vmatpush.bf16.xpose.msra.mxu0 0
    %3317 = vmatpush.bf16.xpose.msra.mxu0 0
    %3318 = vmatpush.bf16.xpose.msra.mxu0 0
    %3319 = vmatpush.bf16.xpose.msra.mxu0 0
    %3320 = vmatpush.bf16.xpose.msra.mxu0 0
    %3321 = vmatpush.bf16.xpose.msra.mxu0 0
    %3322 = vmatpush.bf16.xpose.msra.mxu0 %v3299
    %3323 = vmatmul.bf16.gmra.mxu0 %v3292
    %v3324 = vpop.f32.mrf.mxu0
    %v3325 = vadd.f32 %v3312, %v3324
    %v3326 = vpop.f32.mrf.mxu0
    %3327 = vdwg.mxu0
    %vm3328 = vcmask 64512
    %v3329 = vsel %vm3328, %v3045, -inf
    %3330 = vmax.xlane.f32.xlu0 %v3329
    %v3331 = vpop.xlane.xlu0 %3330
    %v3332 = vsel %vm3328, %v3085, -inf
    %3333 = vmax.xlane.f32.xlu0 %v3332
    %v3334 = vpop.xlane.xlu0 %3333
    %v3335 = vsel %vm3328, %v3125, -inf
    %3336 = vmax.xlane.f32.xlu0 %v3335
    %v3337 = vpop.xlane.xlu0 %3336
    %v3338 = vsel %vm3328, %v3165, -inf
    %3339 = vmax.xlane.f32.xlu0 %v3338
    %v3340 = vpop.xlane.xlu0 %3339
    %v3341 = vsel %vm3328, %v3205, -inf
    %3342 = vmax.xlane.f32.xlu0 %v3341
    %v3343 = vpop.xlane.xlu0 %3342
    %v3344 = vsel %vm3328, %v3245, -inf
    %3345 = vmax.xlane.f32.xlu0 %v3344
    %v3346 = vpop.xlane.xlu0 %3345
    %v3347 = vsel %vm3328, %v3285, -inf
    %3348 = vmax.xlane.f32.xlu0 %v3347
    %v3349 = vpop.xlane.xlu0 %3348
    %v3350 = vsel %vm3328, %v3325, -inf
    %3351 = vmax.xlane.f32.xlu0 %v3350
    %v3352 = vpop.xlane.xlu0 %3351
    %v3353 = vsub.f32 %v3045, %v3331
    %v3354 = vsub.f32 %v3085, %v3334
    %v3355 = vsub.f32 %v3125, %v3337
    %v3356 = vsub.f32 %v3165, %v3340
    %v3357 = vsub.f32 %v3205, %v3343
    %v3358 = vsub.f32 %v3245, %v3346
    %v3359 = vsub.f32 %v3285, %v3349
    %v3360 = vsub.f32 %v3325, %v3352
    %v3361 = vmul.f32 %v3353, 1.442695
    %v3362 = vpow.pop %v3361
    %v3363 = vmul.f32 %v3354, 1.442695
    %v3364 = vpow.pop %v3363
    %v3365 = vmul.f32 %v3355, 1.442695
    %v3366 = vpow.pop %v3365
    %v3367 = vmul.f32 %v3356, 1.442695
    %v3368 = vpow.pop %v3367
    %v3369 = vmul.f32 %v3357, 1.442695
    %v3370 = vpow.pop %v3369
    %v3371 = vmul.f32 %v3358, 1.442695
    %v3372 = vpow.pop %v3371
    %v3373 = vmul.f32 %v3359, 1.442695
    %v3374 = vpow.pop %v3373
    %v3375 = vmul.f32 %v3360, 1.442695
    %v3376 = vpow.pop %v3375
    %v3377 = vsel %vm3328, %v3362, 0.0
    %3378 = vadd.xlane.f32.xlu0 %v3377
    %v3379 = vpop.xlane.xlu0 %3378
    %v3380 = vsel %vm3328, %v3364, 0.0
    %3381 = vadd.xlane.f32.xlu0 %v3380
    %v3382 = vpop.xlane.xlu0 %3381
    %v3383 = vsel %vm3328, %v3366, 0.0
    %3384 = vadd.xlane.f32.xlu0 %v3383
    %v3385 = vpop.xlane.xlu0 %3384
    %v3386 = vsel %vm3328, %v3368, 0.0
    %3387 = vadd.xlane.f32.xlu0 %v3386
    %v3388 = vpop.xlane.xlu0 %3387
    %v3389 = vsel %vm3328, %v3370, 0.0
    %3390 = vadd.xlane.f32.xlu0 %v3389
    %v3391 = vpop.xlane.xlu0 %3390
    %v3392 = vsel %vm3328, %v3372, 0.0
    %3393 = vadd.xlane.f32.xlu0 %v3392
    %v3394 = vpop.xlane.xlu0 %3393
    %v3395 = vsel %vm3328, %v3374, 0.0
    %3396 = vadd.xlane.f32.xlu0 %v3395
    %v3397 = vpop.xlane.xlu0 %3396
    %v3398 = vsel %vm3328, %v3376, 0.0
    %3399 = vadd.xlane.f32.xlu0 %v3398
    %v3400 = vpop.xlane.xlu0 %3399
    %v3401 = vrcp.pop %v3379
    %v3402 = vrcp.pop %v3382
    %v3403 = vrcp.pop %v3385
    %v3404 = vrcp.pop %v3388
    %v3405 = vrcp.pop %v3391
    %v3406 = vrcp.pop %v3394
    %v3407 = vrcp.pop %v3397
    %v3408 = vrcp.pop %v3400
    %v3409 = vmul.f32 %v3362, %v3401
    %v3410 = vmul.f32 %v3364, %v3402
    %v3411 = vmul.f32 %v3366, %v3403
    %v3412 = vmul.f32 %v3368, %v3404
    %v3413 = vmul.f32 %v3370, %v3405
    %v3414 = vmul.f32 %v3372, %v3406
    %v3415 = vmul.f32 %v3374, %v3407
    %v3416 = vmul.f32 %v3376, %v3408
    %v3417 = vsel %vm3328, %v3409, 0.0
    %v3418 = vrot.slane %v3417, 4
    %v3419 = vadd.f32 %v3417, %v3418
    %v3420 = vrot.slane %v3419, 2
    %v3421 = vadd.f32 %v3419, %v3420
    %v3422 = vrot.slane %v3421, 1
    %v3423 = vadd.f32 %v3421, %v3422
    %v3424 = vsel %vm3328, %v3410, 0.0
    %v3425 = vrot.slane %v3424, 4
    %v3426 = vadd.f32 %v3424, %v3425
    %v3427 = vrot.slane %v3426, 2
    %v3428 = vadd.f32 %v3426, %v3427
    %v3429 = vrot.slane %v3428, 1
    %v3430 = vadd.f32 %v3428, %v3429
    %v3431 = vsel %vm3328, %v3411, 0.0
    %v3432 = vrot.slane %v3431, 4
    %v3433 = vadd.f32 %v3431, %v3432
    %v3434 = vrot.slane %v3433, 2
    %v3435 = vadd.f32 %v3433, %v3434
    %v3436 = vrot.slane %v3435, 1
    %v3437 = vadd.f32 %v3435, %v3436
    %v3438 = vsel %vm3328, %v3412, 0.0
    %v3439 = vrot.slane %v3438, 4
    %v3440 = vadd.f32 %v3438, %v3439
    %v3441 = vrot.slane %v3440, 2
    %v3442 = vadd.f32 %v3440, %v3441
    %v3443 = vrot.slane %v3442, 1
    %v3444 = vadd.f32 %v3442, %v3443
    %v3445 = vsel %vm3328, %v3413, 0.0
    %v3446 = vrot.slane %v3445, 4
    %v3447 = vadd.f32 %v3445, %v3446
    %v3448 = vrot.slane %v3447, 2
    %v3449 = vadd.f32 %v3447, %v3448
    %v3450 = vrot.slane %v3449, 1
    %v3451 = vadd.f32 %v3449, %v3450
    %v3452 = vsel %vm3328, %v3414, 0.0
    %v3453 = vrot.slane %v3452, 4
    %v3454 = vadd.f32 %v3452, %v3453
    %v3455 = vrot.slane %v3454, 2
    %v3456 = vadd.f32 %v3454, %v3455
    %v3457 = vrot.slane %v3456, 1
    %v3458 = vadd.f32 %v3456, %v3457
    %v3459 = vsel %vm3328, %v3415, 0.0
    %v3460 = vrot.slane %v3459, 4
    %v3461 = vadd.f32 %v3459, %v3460
    %v3462 = vrot.slane %v3461, 2
    %v3463 = vadd.f32 %v3461, %v3462
    %v3464 = vrot.slane %v3463, 1
    %v3465 = vadd.f32 %v3463, %v3464
    %v3466 = vsel %vm3328, %v3416, 0.0
    %v3467 = vrot.slane %v3466, 4
    %v3468 = vadd.f32 %v3466, %v3467
    %v3469 = vrot.slane %v3468, 2
    %v3470 = vadd.f32 %v3468, %v3469
    %v3471 = vrot.slane %v3470, 1
    %v3472 = vadd.f32 %v3470, %v3471
    %v3473 = vrcp.pop 8.0
    %v3474 = vmul.f32 8.0, %v3473
    %v3475 = vsub.f32 1.0, %v3474
    %v3476 = vmul.f32 %v3473, %v3475
    %v3477 = vadd.f32 %v3473, %v3476
    %vm3478 = vweird.f32 %v3473
    %v3479 = vsel %vm3478, %v3473, %v3477
    %v3480 = vmul.f32 %v3423, %v3479
    %v3481 = vmul.f32 %v3430, %v3479
    %v3482 = vmul.f32 %v3437, %v3479
    %v3483 = vmul.f32 %v3444, %v3479
    %v3484 = vmul.f32 %v3451, %v3479
    %v3485 = vmul.f32 %v3458, %v3479
    %v3486 = vmul.f32 %v3465, %v3479
    %v3487 = vmul.f32 %v3472, %v3479
    %v3488 = vlaneseq
    %v3489 = vshrl.u32 %v3488, 7
    %3491 = vset.pattern.permute.xlu0 %v3489
    %3492 = vperm.xlu0 %3491, %v3480
    %v3493 = vpop.permute.xlu0 %3492
    %v3494 = vlaneseq
    %v3495 = vshrl.u32 %v3494, 7
    %3497 = vset.pattern.permute.xlu0 %v3495
    %3498 = vperm.xlu0 %3497, %v3481
    %v3499 = vpop.permute.xlu0 %3498
    %v3500 = vlaneseq
    %v3501 = vshrl.u32 %v3500, 7
    %3503 = vset.pattern.permute.xlu0 %v3501
    %3504 = vperm.xlu0 %3503, %v3482
    %v3505 = vpop.permute.xlu0 %3504
    %v3506 = vlaneseq
    %v3507 = vshrl.u32 %v3506, 7
    %3509 = vset.pattern.permute.xlu0 %v3507
    %3510 = vperm.xlu0 %3509, %v3483
    %v3511 = vpop.permute.xlu0 %3510
    %v3512 = vlaneseq
    %v3513 = vshrl.u32 %v3512, 7
    %3515 = vset.pattern.permute.xlu0 %v3513
    %3516 = vperm.xlu0 %3515, %v3484
    %v3517 = vpop.permute.xlu0 %3516
    %v3518 = vlaneseq
    %v3519 = vshrl.u32 %v3518, 7
    %3521 = vset.pattern.permute.xlu0 %v3519
    %3522 = vperm.xlu0 %3521, %v3485
    %v3523 = vpop.permute.xlu0 %3522
    %v3524 = vlaneseq
    %v3525 = vshrl.u32 %v3524, 7
    %3527 = vset.pattern.permute.xlu0 %v3525
    %3528 = vperm.xlu0 %3527, %v3486
    %v3529 = vpop.permute.xlu0 %3528
    %v3530 = vlaneseq
    %v3531 = vshrl.u32 %v3530, 7
    %3533 = vset.pattern.permute.xlu0 %v3531
    %3534 = vperm.xlu0 %3533, %v3487
    %v3535 = vpop.permute.xlu0 %3534
    %v3536 = vunpack.c.l.bf16 %v2964
    %v3537 = vunpack.c.h.bf16 %v2964
    %v3538 = vunpack.c.l.bf16 %v2970
    %v3539 = vunpack.c.h.bf16 %v2970
    %v3540 = vunpack.c.l.bf16 %v2976
    %v3541 = vunpack.c.h.bf16 %v2976
    %v3542 = vunpack.c.l.bf16 %v2982
    %v3543 = vunpack.c.h.bf16 %v2982
    %v3544 = vunpack.c.l.bf16 %v2988
    %v3545 = vunpack.c.h.bf16 %v2988
    %v3546 = vunpack.c.l.bf16 %v2994
    %v3547 = vunpack.c.h.bf16 %v2994
    %v3548 = vunpack.c.l.bf16 %v3000
    %v3549 = vunpack.c.h.bf16 %v3000
    %v3550 = vunpack.c.l.bf16 %v3006
    %v3551 = vunpack.c.h.bf16 %v3006
    %v3552 = vmul.f32 %v3493, %v3536
    %v3553 = vmul.f32 %v3493, %v3537
    %v3554 = vmul.f32 %v3499, %v3538
    %v3555 = vmul.f32 %v3499, %v3539
    %v3556 = vmul.f32 %v3505, %v3540
    %v3557 = vmul.f32 %v3505, %v3541
    %v3558 = vmul.f32 %v3511, %v3542
    %v3559 = vmul.f32 %v3511, %v3543
    %v3560 = vmul.f32 %v3517, %v3544
    %v3561 = vmul.f32 %v3517, %v3545
    %v3562 = vmul.f32 %v3523, %v3546
    %v3563 = vmul.f32 %v3523, %v3547
    %v3564 = vmul.f32 %v3529, %v3548
    %v3565 = vmul.f32 %v3529, %v3549
    %v3566 = vmul.f32 %v3535, %v3550
    %v3567 = vmul.f32 %v3535, %v3551
    %v3568 = vrot.slane %v3552, 4
    %v3569 = vadd.f32 %v3552, %v3568
    %v3570 = vrot.slane %v3569, 2
    %v3571 = vadd.f32 %v3569, %v3570
    %v3572 = vrot.slane %v3571, 1
    %v3573 = vadd.f32 %v3571, %v3572
    %v3574 = vrot.slane %v3553, 4
    %v3575 = vadd.f32 %v3553, %v3574
    %v3576 = vrot.slane %v3575, 2
    %v3577 = vadd.f32 %v3575, %v3576
    %v3578 = vrot.slane %v3577, 1
    %v3579 = vadd.f32 %v3577, %v3578
    %v3580 = vrot.slane %v3554, 4
    %v3581 = vadd.f32 %v3554, %v3580
    %v3582 = vrot.slane %v3581, 2
    %v3583 = vadd.f32 %v3581, %v3582
    %v3584 = vrot.slane %v3583, 1
    %v3585 = vadd.f32 %v3583, %v3584
    %v3586 = vrot.slane %v3555, 4
    %v3587 = vadd.f32 %v3555, %v3586
    %v3588 = vrot.slane %v3587, 2
    %v3589 = vadd.f32 %v3587, %v3588
    %v3590 = vrot.slane %v3589, 1
    %v3591 = vadd.f32 %v3589, %v3590
    %v3592 = vrot.slane %v3556, 4
    %v3593 = vadd.f32 %v3556, %v3592
    %v3594 = vrot.slane %v3593, 2
    %v3595 = vadd.f32 %v3593, %v3594
    %v3596 = vrot.slane %v3595, 1
    %v3597 = vadd.f32 %v3595, %v3596
    %v3598 = vrot.slane %v3557, 4
    %v3599 = vadd.f32 %v3557, %v3598
    %v3600 = vrot.slane %v3599, 2
    %v3601 = vadd.f32 %v3599, %v3600
    %v3602 = vrot.slane %v3601, 1
    %v3603 = vadd.f32 %v3601, %v3602
    %v3604 = vrot.slane %v3558, 4
    %v3605 = vadd.f32 %v3558, %v3604
    %v3606 = vrot.slane %v3605, 2
    %v3607 = vadd.f32 %v3605, %v3606
    %v3608 = vrot.slane %v3607, 1
    %v3609 = vadd.f32 %v3607, %v3608
    %v3610 = vrot.slane %v3559, 4
    %v3611 = vadd.f32 %v3559, %v3610
    %v3612 = vrot.slane %v3611, 2
    %v3613 = vadd.f32 %v3611, %v3612
    %v3614 = vrot.slane %v3613, 1
    %v3615 = vadd.f32 %v3613, %v3614
    %v3616 = vrot.slane %v3560, 4
    %v3617 = vadd.f32 %v3560, %v3616
    %v3618 = vrot.slane %v3617, 2
    %v3619 = vadd.f32 %v3617, %v3618
    %v3620 = vrot.slane %v3619, 1
    %v3621 = vadd.f32 %v3619, %v3620
    %v3622 = vrot.slane %v3561, 4
    %v3623 = vadd.f32 %v3561, %v3622
    %v3624 = vrot.slane %v3623, 2
    %v3625 = vadd.f32 %v3623, %v3624
    %v3626 = vrot.slane %v3625, 1
    %v3627 = vadd.f32 %v3625, %v3626
    %v3628 = vrot.slane %v3562, 4
    %v3629 = vadd.f32 %v3562, %v3628
    %v3630 = vrot.slane %v3629, 2
    %v3631 = vadd.f32 %v3629, %v3630
    %v3632 = vrot.slane %v3631, 1
    %v3633 = vadd.f32 %v3631, %v3632
    %v3634 = vrot.slane %v3563, 4
    %v3635 = vadd.f32 %v3563, %v3634
    %v3636 = vrot.slane %v3635, 2
    %v3637 = vadd.f32 %v3635, %v3636
    %v3638 = vrot.slane %v3637, 1
    %v3639 = vadd.f32 %v3637, %v3638
    %v3640 = vrot.slane %v3564, 4
    %v3641 = vadd.f32 %v3564, %v3640
    %v3642 = vrot.slane %v3641, 2
    %v3643 = vadd.f32 %v3641, %v3642
    %v3644 = vrot.slane %v3643, 1
    %v3645 = vadd.f32 %v3643, %v3644
    %v3646 = vrot.slane %v3565, 4
    %v3647 = vadd.f32 %v3565, %v3646
    %v3648 = vrot.slane %v3647, 2
    %v3649 = vadd.f32 %v3647, %v3648
    %v3650 = vrot.slane %v3649, 1
    %v3651 = vadd.f32 %v3649, %v3650
    %v3652 = vrot.slane %v3566, 4
    %v3653 = vadd.f32 %v3566, %v3652
    %v3654 = vrot.slane %v3653, 2
    %v3655 = vadd.f32 %v3653, %v3654
    %v3656 = vrot.slane %v3655, 1
    %v3657 = vadd.f32 %v3655, %v3656
    %v3658 = vrot.slane %v3567, 4
    %v3659 = vadd.f32 %v3567, %v3658
    %v3660 = vrot.slane %v3659, 2
    %v3661 = vadd.f32 %v3659, %v3660
    %v3662 = vrot.slane %v3661, 1
    %v3663 = vadd.f32 %v3661, %v3662
    %v3665 = vunpack.c.l.b16 %v2961
    %v3666 = vunpack.c.h.b16 %v2961
    %v3667 = vpack.c.b16 %v3665, %v3665
    %v3668 = vpack.c.b16 %v3666, %v3666
    %v3672 = vunpack.c.l.b16 %v2963
    %v3673 = vunpack.c.h.b16 %v2963
    %v3674 = vpack.c.b16 %v3672, %v3672
    %v3675 = vpack.c.b16 %v3673, %v3673
    %3678 = vmatpush.bf16.xpose.msra.mxu0 0
    %3679 = vmatpush.bf16.xpose.msra.mxu0 0
    %3680 = vmatpush.bf16.xpose.msra.mxu0 0
    %3681 = vmatpush.bf16.xpose.msra.mxu0 0
    %3682 = vmatpush.bf16.xpose.msra.mxu0 0
    %3683 = vmatpush.bf16.xpose.msra.mxu0 0
    %3684 = vmatpush.bf16.xpose.msra.mxu0 0
    %3685 = vmatpush.bf16.xpose.msra.mxu0 %v3674
    %3686 = vmatmul.bf16.gmra.mxu0 %v3667
    %v3687 = vpop.f32.mrf.mxu0
    %v3688 = vadd.f32 0.0, %v3687
    %v3689 = vpop.f32.mrf.mxu0
    %3690 = vdwg.mxu0
    %3691 = vmatpush.bf16.xpose.msra.mxu0 0
    %3692 = vmatpush.bf16.xpose.msra.mxu0 0
    %3693 = vmatpush.bf16.xpose.msra.mxu0 0
    %3694 = vmatpush.bf16.xpose.msra.mxu0 0
    %3695 = vmatpush.bf16.xpose.msra.mxu0 0
    %3696 = vmatpush.bf16.xpose.msra.mxu0 0
    %3697 = vmatpush.bf16.xpose.msra.mxu0 0
    %3698 = vmatpush.bf16.xpose.msra.mxu0 %v3675
    %3699 = vmatmul.bf16.gmra.mxu0 %v3668
    %v3700 = vpop.f32.mrf.mxu0
    %v3701 = vadd.f32 %v3688, %v3700
    %v3702 = vpop.f32.mrf.mxu0
    %3703 = vdwg.mxu0
    %v3705 = vunpack.c.l.b16 %v2967
    %v3706 = vunpack.c.h.b16 %v2967
    %v3707 = vpack.c.b16 %v3705, %v3705
    %v3708 = vpack.c.b16 %v3706, %v3706
    %v3712 = vunpack.c.l.b16 %v2969
    %v3713 = vunpack.c.h.b16 %v2969
    %v3714 = vpack.c.b16 %v3712, %v3712
    %v3715 = vpack.c.b16 %v3713, %v3713
    %3718 = vmatpush.bf16.xpose.msra.mxu0 0
    %3719 = vmatpush.bf16.xpose.msra.mxu0 0
    %3720 = vmatpush.bf16.xpose.msra.mxu0 0
    %3721 = vmatpush.bf16.xpose.msra.mxu0 0
    %3722 = vmatpush.bf16.xpose.msra.mxu0 0
    %3723 = vmatpush.bf16.xpose.msra.mxu0 0
    %3724 = vmatpush.bf16.xpose.msra.mxu0 0
    %3725 = vmatpush.bf16.xpose.msra.mxu0 %v3714
    %3726 = vmatmul.bf16.gmra.mxu0 %v3707
    %v3727 = vpop.f32.mrf.mxu0
    %v3728 = vadd.f32 0.0, %v3727
    %v3729 = vpop.f32.mrf.mxu0
    %3730 = vdwg.mxu0
    %3731 = vmatpush.bf16.xpose.msra.mxu0 0
    %3732 = vmatpush.bf16.xpose.msra.mxu0 0
    %3733 = vmatpush.bf16.xpose.msra.mxu0 0
    %3734 = vmatpush.bf16.xpose.msra.mxu0 0
    %3735 = vmatpush.bf16.xpose.msra.mxu0 0
    %3736 = vmatpush.bf16.xpose.msra.mxu0 0
    %3737 = vmatpush.bf16.xpose.msra.mxu0 0
    %3738 = vmatpush.bf16.xpose.msra.mxu0 %v3715
    %3739 = vmatmul.bf16.gmra.mxu0 %v3708
    %v3740 = vpop.f32.mrf.mxu0
    %v3741 = vadd.f32 %v3728, %v3740
    %v3742 = vpop.f32.mrf.mxu0
    %3743 = vdwg.mxu0
    %v3745 = vunpack.c.l.b16 %v2973
    %v3746 = vunpack.c.h.b16 %v2973
    %v3747 = vpack.c.b16 %v3745, %v3745
    %v3748 = vpack.c.b16 %v3746, %v3746
    %v3752 = vunpack.c.l.b16 %v2975
    %v3753 = vunpack.c.h.b16 %v2975
    %v3754 = vpack.c.b16 %v3752, %v3752
    %v3755 = vpack.c.b16 %v3753, %v3753
    %3758 = vmatpush.bf16.xpose.msra.mxu0 0
    %3759 = vmatpush.bf16.xpose.msra.mxu0 0
    %3760 = vmatpush.bf16.xpose.msra.mxu0 0
    %3761 = vmatpush.bf16.xpose.msra.mxu0 0
    %3762 = vmatpush.bf16.xpose.msra.mxu0 0
    %3763 = vmatpush.bf16.xpose.msra.mxu0 0
    %3764 = vmatpush.bf16.xpose.msra.mxu0 0
    %3765 = vmatpush.bf16.xpose.msra.mxu0 %v3754
    %3766 = vmatmul.bf16.gmra.mxu0 %v3747
    %v3767 = vpop.f32.mrf.mxu0
    %v3768 = vadd.f32 0.0, %v3767
    %v3769 = vpop.f32.mrf.mxu0
    %3770 = vdwg.mxu0
    %3771 = vmatpush.bf16.xpose.msra.mxu0 0
    %3772 = vmatpush.bf16.xpose.msra.mxu0 0
    %3773 = vmatpush.bf16.xpose.msra.mxu0 0
    %3774 = vmatpush.bf16.xpose.msra.mxu0 0
    %3775 = vmatpush.bf16.xpose.msra.mxu0 0
    %3776 = vmatpush.bf16.xpose.msra.mxu0 0
    %3777 = vmatpush.bf16.xpose.msra.mxu0 0
    %3778 = vmatpush.bf16.xpose.msra.mxu0 %v3755
    %3779 = vmatmul.bf16.gmra.mxu0 %v3748
    %v3780 = vpop.f32.mrf.mxu0
    %v3781 = vadd.f32 %v3768, %v3780
    %v3782 = vpop.f32.mrf.mxu0
    %3783 = vdwg.mxu0
    %v3785 = vunpack.c.l.b16 %v2979
    %v3786 = vunpack.c.h.b16 %v2979
    %v3787 = vpack.c.b16 %v3785, %v3785
    %v3788 = vpack.c.b16 %v3786, %v3786
    %v3792 = vunpack.c.l.b16 %v2981
    %v3793 = vunpack.c.h.b16 %v2981
    %v3794 = vpack.c.b16 %v3792, %v3792
    %v3795 = vpack.c.b16 %v3793, %v3793
    %3798 = vmatpush.bf16.xpose.msra.mxu0 0
    %3799 = vmatpush.bf16.xpose.msra.mxu0 0
    %3800 = vmatpush.bf16.xpose.msra.mxu0 0
    %3801 = vmatpush.bf16.xpose.msra.mxu0 0
    %3802 = vmatpush.bf16.xpose.msra.mxu0 0
    %3803 = vmatpush.bf16.xpose.msra.mxu0 0
    %3804 = vmatpush.bf16.xpose.msra.mxu0 0
    %3805 = vmatpush.bf16.xpose.msra.mxu0 %v3794
    %3806 = vmatmul.bf16.gmra.mxu0 %v3787
    %v3807 = vpop.f32.mrf.mxu0
    %v3808 = vadd.f32 0.0, %v3807
    %v3809 = vpop.f32.mrf.mxu0
    %3810 = vdwg.mxu0
    %3811 = vmatpush.bf16.xpose.msra.mxu0 0
    %3812 = vmatpush.bf16.xpose.msra.mxu0 0
    %3813 = vmatpush.bf16.xpose.msra.mxu0 0
    %3814 = vmatpush.bf16.xpose.msra.mxu0 0
    %3815 = vmatpush.bf16.xpose.msra.mxu0 0
    %3816 = vmatpush.bf16.xpose.msra.mxu0 0
    %3817 = vmatpush.bf16.xpose.msra.mxu0 0
    %3818 = vmatpush.bf16.xpose.msra.mxu0 %v3795
    %3819 = vmatmul.bf16.gmra.mxu0 %v3788
    %v3820 = vpop.f32.mrf.mxu0
    %v3821 = vadd.f32 %v3808, %v3820
    %v3822 = vpop.f32.mrf.mxu0
    %3823 = vdwg.mxu0
    %v3825 = vunpack.c.l.b16 %v2985
    %v3826 = vunpack.c.h.b16 %v2985
    %v3827 = vpack.c.b16 %v3825, %v3825
    %v3828 = vpack.c.b16 %v3826, %v3826
    %v3832 = vunpack.c.l.b16 %v2987
    %v3833 = vunpack.c.h.b16 %v2987
    %v3834 = vpack.c.b16 %v3832, %v3832
    %v3835 = vpack.c.b16 %v3833, %v3833
    %3838 = vmatpush.bf16.xpose.msra.mxu0 0
    %3839 = vmatpush.bf16.xpose.msra.mxu0 0
    %3840 = vmatpush.bf16.xpose.msra.mxu0 0
    %3841 = vmatpush.bf16.xpose.msra.mxu0 0
    %3842 = vmatpush.bf16.xpose.msra.mxu0 0
    %3843 = vmatpush.bf16.xpose.msra.mxu0 0
    %3844 = vmatpush.bf16.xpose.msra.mxu0 0
    %3845 = vmatpush.bf16.xpose.msra.mxu0 %v3834
    %3846 = vmatmul.bf16.gmra.mxu0 %v3827
    %v3847 = vpop.f32.mrf.mxu0
    %v3848 = vadd.f32 0.0, %v3847
    %v3849 = vpop.f32.mrf.mxu0
    %3850 = vdwg.mxu0
    %3851 = vmatpush.bf16.xpose.msra.mxu0 0
    %3852 = vmatpush.bf16.xpose.msra.mxu0 0
    %3853 = vmatpush.bf16.xpose.msra.mxu0 0
    %3854 = vmatpush.bf16.xpose.msra.mxu0 0
    %3855 = vmatpush.bf16.xpose.msra.mxu0 0
    %3856 = vmatpush.bf16.xpose.msra.mxu0 0
    %3857 = vmatpush.bf16.xpose.msra.mxu0 0
    %3858 = vmatpush.bf16.xpose.msra.mxu0 %v3835
    %3859 = vmatmul.bf16.gmra.mxu0 %v3828
    %v3860 = vpop.f32.mrf.mxu0
    %v3861 = vadd.f32 %v3848, %v3860
    %v3862 = vpop.f32.mrf.mxu0
    %3863 = vdwg.mxu0
    %v3865 = vunpack.c.l.b16 %v2991
    %v3866 = vunpack.c.h.b16 %v2991
    %v3867 = vpack.c.b16 %v3865, %v3865
    %v3868 = vpack.c.b16 %v3866, %v3866
    %v3872 = vunpack.c.l.b16 %v2993
    %v3873 = vunpack.c.h.b16 %v2993
    %v3874 = vpack.c.b16 %v3872, %v3872
    %v3875 = vpack.c.b16 %v3873, %v3873
    %3878 = vmatpush.bf16.xpose.msra.mxu0 0
    %3879 = vmatpush.bf16.xpose.msra.mxu0 0
    %3880 = vmatpush.bf16.xpose.msra.mxu0 0
    %3881 = vmatpush.bf16.xpose.msra.mxu0 0
    %3882 = vmatpush.bf16.xpose.msra.mxu0 0
    %3883 = vmatpush.bf16.xpose.msra.mxu0 0
    %3884 = vmatpush.bf16.xpose.msra.mxu0 0
    %3885 = vmatpush.bf16.xpose.msra.mxu0 %v3874
    %3886 = vmatmul.bf16.gmra.mxu0 %v3867
    %v3887 = vpop.f32.mrf.mxu0
    %v3888 = vadd.f32 0.0, %v3887
    %v3889 = vpop.f32.mrf.mxu0
    %3890 = vdwg.mxu0
    %3891 = vmatpush.bf16.xpose.msra.mxu0 0
    %3892 = vmatpush.bf16.xpose.msra.mxu0 0
    %3893 = vmatpush.bf16.xpose.msra.mxu0 0
    %3894 = vmatpush.bf16.xpose.msra.mxu0 0
    %3895 = vmatpush.bf16.xpose.msra.mxu0 0
    %3896 = vmatpush.bf16.xpose.msra.mxu0 0
    %3897 = vmatpush.bf16.xpose.msra.mxu0 0
    %3898 = vmatpush.bf16.xpose.msra.mxu0 %v3875
    %3899 = vmatmul.bf16.gmra.mxu0 %v3868
    %v3900 = vpop.f32.mrf.mxu0
    %v3901 = vadd.f32 %v3888, %v3900
    %v3902 = vpop.f32.mrf.mxu0
    %3903 = vdwg.mxu0
    %v3905 = vunpack.c.l.b16 %v2997
    %v3906 = vunpack.c.h.b16 %v2997
    %v3907 = vpack.c.b16 %v3905, %v3905
    %v3908 = vpack.c.b16 %v3906, %v3906
    %v3912 = vunpack.c.l.b16 %v2999
    %v3913 = vunpack.c.h.b16 %v2999
    %v3914 = vpack.c.b16 %v3912, %v3912
    %v3915 = vpack.c.b16 %v3913, %v3913
    %3918 = vmatpush.bf16.xpose.msra.mxu0 0
    %3919 = vmatpush.bf16.xpose.msra.mxu0 0
    %3920 = vmatpush.bf16.xpose.msra.mxu0 0
    %3921 = vmatpush.bf16.xpose.msra.mxu0 0
    %3922 = vmatpush.bf16.xpose.msra.mxu0 0
    %3923 = vmatpush.bf16.xpose.msra.mxu0 0
    %3924 = vmatpush.bf16.xpose.msra.mxu0 0
    %3925 = vmatpush.bf16.xpose.msra.mxu0 %v3914
    %3926 = vmatmul.bf16.gmra.mxu0 %v3907
    %v3927 = vpop.f32.mrf.mxu0
    %v3928 = vadd.f32 0.0, %v3927
    %v3929 = vpop.f32.mrf.mxu0
    %3930 = vdwg.mxu0
    %3931 = vmatpush.bf16.xpose.msra.mxu0 0
    %3932 = vmatpush.bf16.xpose.msra.mxu0 0
    %3933 = vmatpush.bf16.xpose.msra.mxu0 0
    %3934 = vmatpush.bf16.xpose.msra.mxu0 0
    %3935 = vmatpush.bf16.xpose.msra.mxu0 0
    %3936 = vmatpush.bf16.xpose.msra.mxu0 0
    %3937 = vmatpush.bf16.xpose.msra.mxu0 0
    %3938 = vmatpush.bf16.xpose.msra.mxu0 %v3915
    %3939 = vmatmul.bf16.gmra.mxu0 %v3908
    %v3940 = vpop.f32.mrf.mxu0
    %v3941 = vadd.f32 %v3928, %v3940
    %v3942 = vpop.f32.mrf.mxu0
    %3943 = vdwg.mxu0
    %v3945 = vunpack.c.l.b16 %v3003
    %v3946 = vunpack.c.h.b16 %v3003
    %v3947 = vpack.c.b16 %v3945, %v3945
    %v3948 = vpack.c.b16 %v3946, %v3946
    %v3952 = vunpack.c.l.b16 %v3005
    %v3953 = vunpack.c.h.b16 %v3005
    %v3954 = vpack.c.b16 %v3952, %v3952
    %v3955 = vpack.c.b16 %v3953, %v3953
    %3958 = vmatpush.bf16.xpose.msra.mxu0 0
    %3959 = vmatpush.bf16.xpose.msra.mxu0 0
    %3960 = vmatpush.bf16.xpose.msra.mxu0 0
    %3961 = vmatpush.bf16.xpose.msra.mxu0 0
    %3962 = vmatpush.bf16.xpose.msra.mxu0 0
    %3963 = vmatpush.bf16.xpose.msra.mxu0 0
    %3964 = vmatpush.bf16.xpose.msra.mxu0 0
    %3965 = vmatpush.bf16.xpose.msra.mxu0 %v3954
    %3966 = vmatmul.bf16.gmra.mxu0 %v3947
    %v3967 = vpop.f32.mrf.mxu0
    %v3968 = vadd.f32 0.0, %v3967
    %v3969 = vpop.f32.mrf.mxu0
    %3970 = vdwg.mxu0
    %3971 = vmatpush.bf16.xpose.msra.mxu0 0
    %3972 = vmatpush.bf16.xpose.msra.mxu0 0
    %3973 = vmatpush.bf16.xpose.msra.mxu0 0
    %3974 = vmatpush.bf16.xpose.msra.mxu0 0
    %3975 = vmatpush.bf16.xpose.msra.mxu0 0
    %3976 = vmatpush.bf16.xpose.msra.mxu0 0
    %3977 = vmatpush.bf16.xpose.msra.mxu0 0
    %3978 = vmatpush.bf16.xpose.msra.mxu0 %v3955
    %3979 = vmatmul.bf16.gmra.mxu0 %v3948
    %v3980 = vpop.f32.mrf.mxu0
    %v3981 = vadd.f32 %v3968, %v3980
    %v3982 = vpop.f32.mrf.mxu0
    %3983 = vdwg.mxu0
    %v3984 = vsel %vm3328, %v3701, -inf
    %3985 = vmax.xlane.f32.xlu0 %v3984
    %v3986 = vpop.xlane.xlu0 %3985
    %v3987 = vsel %vm3328, %v3741, -inf
    %3988 = vmax.xlane.f32.xlu0 %v3987
    %v3989 = vpop.xlane.xlu0 %3988
    %v3990 = vsel %vm3328, %v3781, -inf
    %3991 = vmax.xlane.f32.xlu0 %v3990
    %v3992 = vpop.xlane.xlu0 %3991
    %v3993 = vsel %vm3328, %v3821, -inf
    %3994 = vmax.xlane.f32.xlu0 %v3993
    %v3995 = vpop.xlane.xlu0 %3994
    %v3996 = vsel %vm3328, %v3861, -inf
    %3997 = vmax.xlane.f32.xlu0 %v3996
    %v3998 = vpop.xlane.xlu0 %3997
    %v3999 = vsel %vm3328, %v3901, -inf
    %4000 = vmax.xlane.f32.xlu0 %v3999
    %v4001 = vpop.xlane.xlu0 %4000
    %v4002 = vsel %vm3328, %v3941, -inf
    %4003 = vmax.xlane.f32.xlu0 %v4002
    %v4004 = vpop.xlane.xlu0 %4003
    %v4005 = vsel %vm3328, %v3981, -inf
    %4006 = vmax.xlane.f32.xlu0 %v4005
    %v4007 = vpop.xlane.xlu0 %4006
    %v4008 = vsub.f32 %v3701, %v3986
    %v4009 = vsub.f32 %v3741, %v3989
    %v4010 = vsub.f32 %v3781, %v3992
    %v4011 = vsub.f32 %v3821, %v3995
    %v4012 = vsub.f32 %v3861, %v3998
    %v4013 = vsub.f32 %v3901, %v4001
    %v4014 = vsub.f32 %v3941, %v4004
    %v4015 = vsub.f32 %v3981, %v4007
    %v4016 = vmul.f32 %v4008, 1.442695
    %v4017 = vpow.pop %v4016
    %v4018 = vmul.f32 %v4009, 1.442695
    %v4019 = vpow.pop %v4018
    %v4020 = vmul.f32 %v4010, 1.442695
    %v4021 = vpow.pop %v4020
    %v4022 = vmul.f32 %v4011, 1.442695
    %v4023 = vpow.pop %v4022
    %v4024 = vmul.f32 %v4012, 1.442695
    %v4025 = vpow.pop %v4024
    %v4026 = vmul.f32 %v4013, 1.442695
    %v4027 = vpow.pop %v4026
    %v4028 = vmul.f32 %v4014, 1.442695
    %v4029 = vpow.pop %v4028
    %v4030 = vmul.f32 %v4015, 1.442695
    %v4031 = vpow.pop %v4030
    %v4032 = vsel %vm3328, %v4017, 0.0
    %4033 = vadd.xlane.f32.xlu0 %v4032
    %v4034 = vpop.xlane.xlu0 %4033
    %v4035 = vsel %vm3328, %v4019, 0.0
    %4036 = vadd.xlane.f32.xlu0 %v4035
    %v4037 = vpop.xlane.xlu0 %4036
    %v4038 = vsel %vm3328, %v4021, 0.0
    %4039 = vadd.xlane.f32.xlu0 %v4038
    %v4040 = vpop.xlane.xlu0 %4039
    %v4041 = vsel %vm3328, %v4023, 0.0
    %4042 = vadd.xlane.f32.xlu0 %v4041
    %v4043 = vpop.xlane.xlu0 %4042
    %v4044 = vsel %vm3328, %v4025, 0.0
    %4045 = vadd.xlane.f32.xlu0 %v4044
    %v4046 = vpop.xlane.xlu0 %4045
    %v4047 = vsel %vm3328, %v4027, 0.0
    %4048 = vadd.xlane.f32.xlu0 %v4047
    %v4049 = vpop.xlane.xlu0 %4048
    %v4050 = vsel %vm3328, %v4029, 0.0
    %4051 = vadd.xlane.f32.xlu0 %v4050
    %v4052 = vpop.xlane.xlu0 %4051
    %v4053 = vsel %vm3328, %v4031, 0.0
    %4054 = vadd.xlane.f32.xlu0 %v4053
    %v4055 = vpop.xlane.xlu0 %4054
    %v4056 = vrcp.pop %v4034
    %v4057 = vrcp.pop %v4037
    %v4058 = vrcp.pop %v4040
    %v4059 = vrcp.pop %v4043
    %v4060 = vrcp.pop %v4046
    %v4061 = vrcp.pop %v4049
    %v4062 = vrcp.pop %v4052
    %v4063 = vrcp.pop %v4055
    %v4064 = vmul.f32 %v4017, %v4056
    %v4065 = vmul.f32 %v4019, %v4057
    %v4066 = vmul.f32 %v4021, %v4058
    %v4067 = vmul.f32 %v4023, %v4059
    %v4068 = vmul.f32 %v4025, %v4060
    %v4069 = vmul.f32 %v4027, %v4061
    %v4070 = vmul.f32 %v4029, %v4062
    %v4071 = vmul.f32 %v4031, %v4063
    %v4072 = vsel %vm3328, %v4064, 0.0
    %v4073 = vrot.slane %v4072, 4
    %v4074 = vadd.f32 %v4072, %v4073
    %v4075 = vrot.slane %v4074, 2
    %v4076 = vadd.f32 %v4074, %v4075
    %v4077 = vrot.slane %v4076, 1
    %v4078 = vadd.f32 %v4076, %v4077
    %v4079 = vsel %vm3328, %v4065, 0.0
    %v4080 = vrot.slane %v4079, 4
    %v4081 = vadd.f32 %v4079, %v4080
    %v4082 = vrot.slane %v4081, 2
    %v4083 = vadd.f32 %v4081, %v4082
    %v4084 = vrot.slane %v4083, 1
    %v4085 = vadd.f32 %v4083, %v4084
    %v4086 = vsel %vm3328, %v4066, 0.0
    %v4087 = vrot.slane %v4086, 4
    %v4088 = vadd.f32 %v4086, %v4087
    %v4089 = vrot.slane %v4088, 2
    %v4090 = vadd.f32 %v4088, %v4089
    %v4091 = vrot.slane %v4090, 1
    %v4092 = vadd.f32 %v4090, %v4091
    %v4093 = vsel %vm3328, %v4067, 0.0
    %v4094 = vrot.slane %v4093, 4
    %v4095 = vadd.f32 %v4093, %v4094
    %v4096 = vrot.slane %v4095, 2
    %v4097 = vadd.f32 %v4095, %v4096
    %v4098 = vrot.slane %v4097, 1
    %v4099 = vadd.f32 %v4097, %v4098
    %v4100 = vsel %vm3328, %v4068, 0.0
    %v4101 = vrot.slane %v4100, 4
    %v4102 = vadd.f32 %v4100, %v4101
    %v4103 = vrot.slane %v4102, 2
    %v4104 = vadd.f32 %v4102, %v4103
    %v4105 = vrot.slane %v4104, 1
    %v4106 = vadd.f32 %v4104, %v4105
    %v4107 = vsel %vm3328, %v4069, 0.0
    %v4108 = vrot.slane %v4107, 4
    %v4109 = vadd.f32 %v4107, %v4108
    %v4110 = vrot.slane %v4109, 2
    %v4111 = vadd.f32 %v4109, %v4110
    %v4112 = vrot.slane %v4111, 1
    %v4113 = vadd.f32 %v4111, %v4112
    %v4114 = vsel %vm3328, %v4070, 0.0
    %v4115 = vrot.slane %v4114, 4
    %v4116 = vadd.f32 %v4114, %v4115
    %v4117 = vrot.slane %v4116, 2
    %v4118 = vadd.f32 %v4116, %v4117
    %v4119 = vrot.slane %v4118, 1
    %v4120 = vadd.f32 %v4118, %v4119
    %v4121 = vsel %vm3328, %v4071, 0.0
    %v4122 = vrot.slane %v4121, 4
    %v4123 = vadd.f32 %v4121, %v4122
    %v4124 = vrot.slane %v4123, 2
    %v4125 = vadd.f32 %v4123, %v4124
    %v4126 = vrot.slane %v4125, 1
    %v4127 = vadd.f32 %v4125, %v4126
    %v4128 = vmul.f32 %v4078, %v3479
    %v4129 = vmul.f32 %v4085, %v3479
    %v4130 = vmul.f32 %v4092, %v3479
    %v4131 = vmul.f32 %v4099, %v3479
    %v4132 = vmul.f32 %v4106, %v3479
    %v4133 = vmul.f32 %v4113, %v3479
    %v4134 = vmul.f32 %v4120, %v3479
    %v4135 = vmul.f32 %v4127, %v3479
    %v4136 = vlaneseq
    %v4137 = vshrl.u32 %v4136, 7
    %4139 = vset.pattern.permute.xlu0 %v4137
    %4140 = vperm.xlu0 %4139, %v4128
    %v4141 = vpop.permute.xlu0 %4140
    %v4142 = vlaneseq
    %v4143 = vshrl.u32 %v4142, 7
    %4145 = vset.pattern.permute.xlu0 %v4143
    %4146 = vperm.xlu0 %4145, %v4129
    %v4147 = vpop.permute.xlu0 %4146
    %v4148 = vlaneseq
    %v4149 = vshrl.u32 %v4148, 7
    %4151 = vset.pattern.permute.xlu0 %v4149
    %4152 = vperm.xlu0 %4151, %v4130
    %v4153 = vpop.permute.xlu0 %4152
    %v4154 = vlaneseq
    %v4155 = vshrl.u32 %v4154, 7
    %4157 = vset.pattern.permute.xlu0 %v4155
    %4158 = vperm.xlu0 %4157, %v4131
    %v4159 = vpop.permute.xlu0 %4158
    %v4160 = vlaneseq
    %v4161 = vshrl.u32 %v4160, 7
    %4163 = vset.pattern.permute.xlu0 %v4161
    %4164 = vperm.xlu0 %4163, %v4132
    %v4165 = vpop.permute.xlu0 %4164
    %v4166 = vlaneseq
    %v4167 = vshrl.u32 %v4166, 7
    %4169 = vset.pattern.permute.xlu0 %v4167
    %4170 = vperm.xlu0 %4169, %v4133
    %v4171 = vpop.permute.xlu0 %4170
    %v4172 = vlaneseq
    %v4173 = vshrl.u32 %v4172, 7
    %4175 = vset.pattern.permute.xlu0 %v4173
    %4176 = vperm.xlu0 %4175, %v4134
    %v4177 = vpop.permute.xlu0 %4176
    %v4178 = vlaneseq
    %v4179 = vshrl.u32 %v4178, 7
    %4181 = vset.pattern.permute.xlu0 %v4179
    %4182 = vperm.xlu0 %4181, %v4135
    %v4183 = vpop.permute.xlu0 %4182
    %v4184 = vunpack.c.l.bf16 %v2965
    %v4185 = vunpack.c.h.bf16 %v2965
    %v4186 = vunpack.c.l.bf16 %v2971
    %v4187 = vunpack.c.h.bf16 %v2971
    %v4188 = vunpack.c.l.bf16 %v2977
    %v4189 = vunpack.c.h.bf16 %v2977
    %v4190 = vunpack.c.l.bf16 %v2983
    %v4191 = vunpack.c.h.bf16 %v2983
    %v4192 = vunpack.c.l.bf16 %v2989
    %v4193 = vunpack.c.h.bf16 %v2989
    %v4194 = vunpack.c.l.bf16 %v2995
    %v4195 = vunpack.c.h.bf16 %v2995
    %v4196 = vunpack.c.l.bf16 %v3001
    %v4197 = vunpack.c.h.bf16 %v3001
    %v4198 = vunpack.c.l.bf16 %v3007
    %v4199 = vunpack.c.h.bf16 %v3007
    %v4200 = vmul.f32 %v4141, %v4184
    %v4201 = vmul.f32 %v4141, %v4185
    %v4202 = vmul.f32 %v4147, %v4186
    %v4203 = vmul.f32 %v4147, %v4187
    %v4204 = vmul.f32 %v4153, %v4188
    %v4205 = vmul.f32 %v4153, %v4189
    %v4206 = vmul.f32 %v4159, %v4190
    %v4207 = vmul.f32 %v4159, %v4191
    %v4208 = vmul.f32 %v4165, %v4192
    %v4209 = vmul.f32 %v4165, %v4193
    %v4210 = vmul.f32 %v4171, %v4194
    %v4211 = vmul.f32 %v4171, %v4195
    %v4212 = vmul.f32 %v4177, %v4196
    %v4213 = vmul.f32 %v4177, %v4197
    %v4214 = vmul.f32 %v4183, %v4198
    %v4215 = vmul.f32 %v4183, %v4199
    %v4216 = vrot.slane %v4200, 4
    %v4217 = vadd.f32 %v4200, %v4216
    %v4218 = vrot.slane %v4217, 2
    %v4219 = vadd.f32 %v4217, %v4218
    %v4220 = vrot.slane %v4219, 1
    %v4221 = vadd.f32 %v4219, %v4220
    %v4222 = vrot.slane %v4201, 4
    %v4223 = vadd.f32 %v4201, %v4222
    %v4224 = vrot.slane %v4223, 2
    %v4225 = vadd.f32 %v4223, %v4224
    %v4226 = vrot.slane %v4225, 1
    %v4227 = vadd.f32 %v4225, %v4226
    %v4228 = vrot.slane %v4202, 4
    %v4229 = vadd.f32 %v4202, %v4228
    %v4230 = vrot.slane %v4229, 2
    %v4231 = vadd.f32 %v4229, %v4230
    %v4232 = vrot.slane %v4231, 1
    %v4233 = vadd.f32 %v4231, %v4232
    %v4234 = vrot.slane %v4203, 4
    %v4235 = vadd.f32 %v4203, %v4234
    %v4236 = vrot.slane %v4235, 2
    %v4237 = vadd.f32 %v4235, %v4236
    %v4238 = vrot.slane %v4237, 1
    %v4239 = vadd.f32 %v4237, %v4238
    %v4240 = vrot.slane %v4204, 4
    %v4241 = vadd.f32 %v4204, %v4240
    %v4242 = vrot.slane %v4241, 2
    %v4243 = vadd.f32 %v4241, %v4242
    %v4244 = vrot.slane %v4243, 1
    %v4245 = vadd.f32 %v4243, %v4244
    %v4246 = vrot.slane %v4205, 4
    %v4247 = vadd.f32 %v4205, %v4246
    %v4248 = vrot.slane %v4247, 2
    %v4249 = vadd.f32 %v4247, %v4248
    %v4250 = vrot.slane %v4249, 1
    %v4251 = vadd.f32 %v4249, %v4250
    %v4252 = vrot.slane %v4206, 4
    %v4253 = vadd.f32 %v4206, %v4252
    %v4254 = vrot.slane %v4253, 2
    %v4255 = vadd.f32 %v4253, %v4254
    %v4256 = vrot.slane %v4255, 1
    %v4257 = vadd.f32 %v4255, %v4256
    %v4258 = vrot.slane %v4207, 4
    %v4259 = vadd.f32 %v4207, %v4258
    %v4260 = vrot.slane %v4259, 2
    %v4261 = vadd.f32 %v4259, %v4260
    %v4262 = vrot.slane %v4261, 1
    %v4263 = vadd.f32 %v4261, %v4262
    %v4264 = vrot.slane %v4208, 4
    %v4265 = vadd.f32 %v4208, %v4264
    %v4266 = vrot.slane %v4265, 2
    %v4267 = vadd.f32 %v4265, %v4266
    %v4268 = vrot.slane %v4267, 1
    %v4269 = vadd.f32 %v4267, %v4268
    %v4270 = vrot.slane %v4209, 4
    %v4271 = vadd.f32 %v4209, %v4270
    %v4272 = vrot.slane %v4271, 2
    %v4273 = vadd.f32 %v4271, %v4272
    %v4274 = vrot.slane %v4273, 1
    %v4275 = vadd.f32 %v4273, %v4274
    %v4276 = vrot.slane %v4210, 4
    %v4277 = vadd.f32 %v4210, %v4276
    %v4278 = vrot.slane %v4277, 2
    %v4279 = vadd.f32 %v4277, %v4278
    %v4280 = vrot.slane %v4279, 1
    %v4281 = vadd.f32 %v4279, %v4280
    %v4282 = vrot.slane %v4211, 4
    %v4283 = vadd.f32 %v4211, %v4282
    %v4284 = vrot.slane %v4283, 2
    %v4285 = vadd.f32 %v4283, %v4284
    %v4286 = vrot.slane %v4285, 1
    %v4287 = vadd.f32 %v4285, %v4286
    %v4288 = vrot.slane %v4212, 4
    %v4289 = vadd.f32 %v4212, %v4288
    %v4290 = vrot.slane %v4289, 2
    %v4291 = vadd.f32 %v4289, %v4290
    %v4292 = vrot.slane %v4291, 1
    %v4293 = vadd.f32 %v4291, %v4292
    %v4294 = vrot.slane %v4213, 4
    %v4295 = vadd.f32 %v4213, %v4294
    %v4296 = vrot.slane %v4295, 2
    %v4297 = vadd.f32 %v4295, %v4296
    %v4298 = vrot.slane %v4297, 1
    %v4299 = vadd.f32 %v4297, %v4298
    %v4300 = vrot.slane %v4214, 4
    %v4301 = vadd.f32 %v4214, %v4300
    %v4302 = vrot.slane %v4301, 2
    %v4303 = vadd.f32 %v4301, %v4302
    %v4304 = vrot.slane %v4303, 1
    %v4305 = vadd.f32 %v4303, %v4304
    %v4306 = vrot.slane %v4215, 4
    %v4307 = vadd.f32 %v4215, %v4306
    %v4308 = vrot.slane %v4307, 2
    %v4309 = vadd.f32 %v4307, %v4308
    %v4310 = vrot.slane %v4309, 1
    %v4311 = vadd.f32 %v4309, %v4310
    %vm4328 = vcmask 1041409
    %v4329 = vsel %vm4328, %v3585, %v3573
    %vm4330 = vcmask 1042434
    %v4331 = vsel %vm4330, %v3597, %v4329
    %vm4332 = vcmask 1043459
    %v4333 = vsel %vm4332, %v3609, %v4331
    %vm4334 = vcmask 1044484
    %v4335 = vsel %vm4334, %v3621, %v4333
    %vm4336 = vcmask 1045509
    %v4337 = vsel %vm4336, %v3633, %v4335
    %vm4338 = vcmask 1046534
    %v4339 = vsel %vm4338, %v3645, %v4337
    %vm4340 = vcmask 1047559
    %v4341 = vsel %vm4340, %v3657, %v4339
    %v4342 = vsel %vm4328, %v3591, %v3579
    %v4343 = vsel %vm4330, %v3603, %v4342
    %v4344 = vsel %vm4332, %v3615, %v4343
    %v4345 = vsel %vm4334, %v3627, %v4344
    %v4346 = vsel %vm4336, %v3639, %v4345
    %v4347 = vsel %vm4338, %v3651, %v4346
    %v4348 = vsel %vm4340, %v3663, %v4347
    %v4367 = vsel %vm4328, %v4233, %v4221
    %v4368 = vsel %vm4330, %v4245, %v4367
    %v4369 = vsel %vm4332, %v4257, %v4368
    %v4370 = vsel %vm4334, %v4269, %v4369
    %v4371 = vsel %vm4336, %v4281, %v4370
    %v4372 = vsel %vm4338, %v4293, %v4371
    %v4373 = vsel %vm4340, %v4305, %v4372
    %v4374 = vsel %vm4328, %v4239, %v4227
    %v4375 = vsel %vm4330, %v4251, %v4374
    %v4376 = vsel %vm4332, %v4263, %v4375
    %v4377 = vsel %vm4334, %v4275, %v4376
    %v4378 = vsel %vm4336, %v4287, %v4377
    %v4379 = vsel %vm4338, %v4299, %v4378
    %v4380 = vsel %vm4340, %v4311, %v4379
    %v4383 = vpack.c.bf16 %v4341, %v4341
    %v4384 = vpack.c.bf16 %v4348, %v4348
    %v4385 = vpack.c.bf16 %v4373, %v4373
    %v4386 = vpack.c.bf16 %v4380, %v4380
    %v4387 = vld [vmem:[#allocation6] sm:$0xff]
    %v4388 = vld [vmem:[#allocation6 + $0x8] sm:$0xf]
    %v4389 = vld [vmem:[#allocation6 + $0xc] sm:$0xff]
    %v4390 = vld [vmem:[#allocation6 + $0x14] sm:$0xf]
    %v4391 = vld [vmem:[#allocation6 + $0x18] sm:$0xff]
    %v4392 = vld [vmem:[#allocation6 + $0x20] sm:$0xf]
    %v4393 = vld [vmem:[#allocation6 + $0x24] sm:$0xff]
    %v4394 = vld [vmem:[#allocation6 + $0x2c] sm:$0xf]
    %v4395 = vld [vmem:[#allocation6 + $0x30] sm:$0xff]
    %v4396 = vld [vmem:[#allocation6 + $0x38] sm:$0xf]
    %v4397 = vld [vmem:[#allocation6 + $0x3c] sm:$0xff]
    %v4398 = vld [vmem:[#allocation6 + $0x44] sm:$0xf]
    %v4399 = vld [vmem:[#allocation6 + $0x48] sm:$0xff]
    %v4400 = vld [vmem:[#allocation6 + $0x50] sm:$0xf]
    %v4401 = vld [vmem:[#allocation6 + $0x54] sm:$0xff]
    %v4402 = vld [vmem:[#allocation6 + $0x5c] sm:$0xf]
    %v4403 = vld [vmem:[#allocation6 + $0x60] sm:$0xff]
    %v4404 = vld [vmem:[#allocation6 + $0x68] sm:$0xf]
    %v4405 = vld [vmem:[#allocation6 + $0x6c] sm:$0xff]
    %v4406 = vld [vmem:[#allocation6 + $0x74] sm:$0xf]
    %v4407 = vld [vmem:[#allocation6 + $0x78] sm:$0xff]
    %v4408 = vld [vmem:[#allocation6 + $0x80] sm:$0xf]
    %v4409 = vld [vmem:[#allocation6 + $0x84] sm:$0xff]
    %v4410 = vld [vmem:[#allocation6 + $0x8c] sm:$0xf]
    %v4411 = vld [vmem:[#allocation6 + $0x90] sm:$0xff]
    %v4412 = vld [vmem:[#allocation6 + $0x98] sm:$0xf]
    %v4413 = vld [vmem:[#allocation6 + $0x9c] sm:$0xff]
    %v4414 = vld [vmem:[#allocation6 + $0xa4] sm:$0xf]
    %v4415 = vld [vmem:[#allocation6 + $0xa8] sm:$0xff]
    %v4416 = vld [vmem:[#allocation6 + $0xb0] sm:$0xf]
    %v4417 = vld [vmem:[#allocation6 + $0xb4] sm:$0xff]
    %v4418 = vld [vmem:[#allocation6 + $0xbc] sm:$0xf]
    %v4419 = vld [vmem:[#allocation6 + $0xc0] sm:$0xff]
    %v4420 = vld [vmem:[#allocation6 + $0xc8] sm:$0xf]
    %v4421 = vld [vmem:[#allocation6 + $0xcc] sm:$0xff]
    %v4422 = vld [vmem:[#allocation6 + $0xd4] sm:$0xf]
    %v4423 = vld [vmem:[#allocation6 + $0xd8] sm:$0xff]
    %v4424 = vld [vmem:[#allocation6 + $0xe0] sm:$0xf]
    %v4425 = vld [vmem:[#allocation6 + $0xe4] sm:$0xff]
    %v4426 = vld [vmem:[#allocation6 + $0xec] sm:$0xf]
    %v4427 = vld [vmem:[#allocation6 + $0xf0] sm:$0xff]
    %v4428 = vld [vmem:[#allocation6 + $0xf8] sm:$0xf]
    %v4429 = vld [vmem:[#allocation6 + $0xfc] sm:$0xff]
    %v4430 = vld [vmem:[#allocation6 + $0x104] sm:$0xf]
    %v4431 = vld [vmem:[#allocation6 + $0x108] sm:$0xff]
    %v4432 = vld [vmem:[#allocation6 + $0x110] sm:$0xf]
    %v4433 = vld [vmem:[#allocation6 + $0x114] sm:$0xff]
    %v4434 = vld [vmem:[#allocation6 + $0x11c] sm:$0xf]
    %v4435 = vld [vmem:[#allocation6 + $0x120] sm:$0xff]
    %v4436 = vld [vmem:[#allocation6 + $0x128] sm:$0xf]
    %v4437 = vld [vmem:[#allocation6 + $0x12c] sm:$0xff]
    %v4438 = vld [vmem:[#allocation6 + $0x134] sm:$0xf]
    %v4439 = vld [vmem:[#allocation6 + $0x138] sm:$0xff]
    %v4440 = vld [vmem:[#allocation6 + $0x140] sm:$0xf]
    %v4441 = vld [vmem:[#allocation6 + $0x144] sm:$0xff]
    %v4442 = vld [vmem:[#allocation6 + $0x14c] sm:$0xf]
    %v4443 = vld [vmem:[#allocation6 + $0x150] sm:$0xff]
    %v4444 = vld [vmem:[#allocation6 + $0x158] sm:$0xf]
    %v4445 = vld [vmem:[#allocation6 + $0x15c] sm:$0xff]
    %v4446 = vld [vmem:[#allocation6 + $0x164] sm:$0xf]
    %v4447 = vld [vmem:[#allocation6 + $0x168] sm:$0xff]
    %v4448 = vld [vmem:[#allocation6 + $0x170] sm:$0xf]
    %v4449 = vld [vmem:[#allocation6 + $0x174] sm:$0xff]
    %v4450 = vld [vmem:[#allocation6 + $0x17c] sm:$0xf]
    %v4451 = vld [vmem:[#allocation6 + $0x180] sm:$0xff]
    %v4452 = vld [vmem:[#allocation6 + $0x188] sm:$0xf]
    %v4453 = vld [vmem:[#allocation6 + $0x18c] sm:$0xff]
    %v4454 = vld [vmem:[#allocation6 + $0x194] sm:$0xf]
    %v4455 = vld [vmem:[#allocation6 + $0x198] sm:$0xff]
    %v4456 = vld [vmem:[#allocation6 + $0x1a0] sm:$0xf]
    %v4457 = vld [vmem:[#allocation6 + $0x1a4] sm:$0xff]
    %v4458 = vld [vmem:[#allocation6 + $0x1ac] sm:$0xf]
    %v4459 = vld [vmem:[#allocation6 + $0x1b0] sm:$0xff]
    %v4460 = vld [vmem:[#allocation6 + $0x1b8] sm:$0xf]
    %v4461 = vld [vmem:[#allocation6 + $0x1bc] sm:$0xff]
    %v4462 = vld [vmem:[#allocation6 + $0x1c4] sm:$0xf]
    %v4463 = vld [vmem:[#allocation6 + $0x1c8] sm:$0xff]
    %v4464 = vld [vmem:[#allocation6 + $0x1d0] sm:$0xf]
    %v4465 = vld [vmem:[#allocation6 + $0x1d4] sm:$0xff]
    %v4466 = vld [vmem:[#allocation6 + $0x1dc] sm:$0xf]
    %v4467 = vld [vmem:[#allocation6 + $0x1e0] sm:$0xff]
    %v4468 = vld [vmem:[#allocation6 + $0x1e8] sm:$0xf]
    %v4469 = vld [vmem:[#allocation6 + $0x1ec] sm:$0xff]
    %v4470 = vld [vmem:[#allocation6 + $0x1f4] sm:$0xf]
    %v4471 = vld [vmem:[#allocation6 + $0x1f8] sm:$0xff]
    %v4472 = vld [vmem:[#allocation6 + $0x200] sm:$0xf]
    %v4473 = vld [vmem:[#allocation6 + $0x204] sm:$0xff]
    %v4474 = vld [vmem:[#allocation6 + $0x20c] sm:$0xf]
    %v4475 = vld [vmem:[#allocation6 + $0x210] sm:$0xff]
    %v4476 = vld [vmem:[#allocation6 + $0x218] sm:$0xf]
    %v4477 = vld [vmem:[#allocation6 + $0x21c] sm:$0xff]
    %v4478 = vld [vmem:[#allocation6 + $0x224] sm:$0xf]
    %v4479 = vld [vmem:[#allocation6 + $0x228] sm:$0xff]
    %v4480 = vld [vmem:[#allocation6 + $0x230] sm:$0xf]
    %v4481 = vld [vmem:[#allocation6 + $0x234] sm:$0xff]
    %v4482 = vld [vmem:[#allocation6 + $0x23c] sm:$0xf]
    %v4483 = vld [vmem:[#allocation6 + $0x240] sm:$0xff]
    %v4484 = vld [vmem:[#allocation6 + $0x248] sm:$0xf]
    %v4485 = vld [vmem:[#allocation6 + $0x24c] sm:$0xff]
    %v4486 = vld [vmem:[#allocation6 + $0x254] sm:$0xf]
    %v4487 = vld [vmem:[#allocation6 + $0x258] sm:$0xff]
    %v4488 = vld [vmem:[#allocation6 + $0x260] sm:$0xf]
    %v4489 = vld [vmem:[#allocation6 + $0x264] sm:$0xff]
    %v4490 = vld [vmem:[#allocation6 + $0x26c] sm:$0xf]
    %v4491 = vld [vmem:[#allocation6 + $0x270] sm:$0xff]
    %v4492 = vld [vmem:[#allocation6 + $0x278] sm:$0xf]
    %v4493 = vld [vmem:[#allocation6 + $0x27c] sm:$0xff]
    %v4494 = vld [vmem:[#allocation6 + $0x284] sm:$0xf]
    %v4495 = vld [vmem:[#allocation6 + $0x288] sm:$0xff]
    %v4496 = vld [vmem:[#allocation6 + $0x290] sm:$0xf]
    %v4497 = vld [vmem:[#allocation6 + $0x294] sm:$0xff]
    %v4498 = vld [vmem:[#allocation6 + $0x29c] sm:$0xf]
    %v4499 = vld [vmem:[#allocation6 + $0x2a0] sm:$0xff]
    %v4500 = vld [vmem:[#allocation6 + $0x2a8] sm:$0xf]
    %v4501 = vld [vmem:[#allocation6 + $0x2ac] sm:$0xff]
    %v4502 = vld [vmem:[#allocation6 + $0x2b4] sm:$0xf]
    %v4503 = vld [vmem:[#allocation6 + $0x2b8] sm:$0xff]
    %v4504 = vld [vmem:[#allocation6 + $0x2c0] sm:$0xf]
    %v4505 = vld [vmem:[#allocation6 + $0x2c4] sm:$0xff]
    %v4506 = vld [vmem:[#allocation6 + $0x2cc] sm:$0xf]
    %v4507 = vld [vmem:[#allocation6 + $0x2d0] sm:$0xff]
    %v4508 = vld [vmem:[#allocation6 + $0x2d8] sm:$0xf]
    %v4509 = vld [vmem:[#allocation6 + $0x2dc] sm:$0xff]
    %v4510 = vld [vmem:[#allocation6 + $0x2e4] sm:$0xf]
    %v4511 = vld [vmem:[#allocation6 + $0x2e8] sm:$0xff]
    %v4512 = vld [vmem:[#allocation6 + $0x2f0] sm:$0xf]
    %v4513 = vld [vmem:[#allocation6 + $0x2f4] sm:$0xff]
    %v4514 = vld [vmem:[#allocation6 + $0x2fc] sm:$0xf]
    %v4515 = vld [vmem:[#allocation7] sm:$0x7]
    %v4517 = vperm.slane %v4515, 0
    %v4518 = vperm.slane %v4515, 1
    %v4519 = vperm.slane %v4515, 2
    %v4651 = vunpack.c.l.b16 %v4387
    %v4652 = vunpack.c.h.b16 %v4387
    %v4653 = vunpack.c.l.b16 %v4388
    %v4654 = vunpack.c.l.b16 %v4389
    %v4655 = vunpack.c.h.b16 %v4389
    %v4656 = vunpack.c.l.b16 %v4390
    %v4657 = vunpack.c.l.b16 %v4391
    %v4658 = vunpack.c.h.b16 %v4391
    %v4659 = vunpack.c.l.b16 %v4392
    %v4660 = vunpack.c.l.b16 %v4393
    %v4661 = vunpack.c.h.b16 %v4393
    %v4662 = vunpack.c.l.b16 %v4394
    %v4663 = vunpack.c.l.b16 %v4395
    %v4664 = vunpack.c.h.b16 %v4395
    %v4665 = vunpack.c.l.b16 %v4396
    %v4666 = vunpack.c.l.b16 %v4397
    %v4667 = vunpack.c.h.b16 %v4397
    %v4668 = vunpack.c.l.b16 %v4398
    %v4669 = vunpack.c.l.b16 %v4399
    %v4670 = vunpack.c.h.b16 %v4399
    %v4671 = vunpack.c.l.b16 %v4400
    %v4672 = vunpack.c.l.b16 %v4401
    %v4673 = vunpack.c.h.b16 %v4401
    %v4674 = vunpack.c.l.b16 %v4402
    %v4675 = vunpack.c.l.b16 %v4403
    %v4676 = vunpack.c.h.b16 %v4403
    %v4677 = vunpack.c.l.b16 %v4404
    %v4678 = vunpack.c.l.b16 %v4405
    %v4679 = vunpack.c.h.b16 %v4405
    %v4680 = vunpack.c.l.b16 %v4406
    %v4681 = vunpack.c.l.b16 %v4407
    %v4682 = vunpack.c.h.b16 %v4407
    %v4683 = vunpack.c.l.b16 %v4408
    %v4684 = vunpack.c.l.b16 %v4409
    %v4685 = vunpack.c.h.b16 %v4409
    %v4686 = vunpack.c.l.b16 %v4410
    %v4687 = vunpack.c.l.b16 %v4411
    %v4688 = vunpack.c.h.b16 %v4411
    %v4689 = vunpack.c.l.b16 %v4412
    %v4690 = vunpack.c.l.b16 %v4413
    %v4691 = vunpack.c.h.b16 %v4413
    %v4692 = vunpack.c.l.b16 %v4414
    %v4693 = vunpack.c.l.b16 %v4415
    %v4694 = vunpack.c.h.b16 %v4415
    %v4695 = vunpack.c.l.b16 %v4416
    %v4696 = vunpack.c.l.b16 %v4417
    %v4697 = vunpack.c.h.b16 %v4417
    %v4698 = vunpack.c.l.b16 %v4418
    %v4699 = vunpack.c.l.b16 %v4419
    %v4700 = vunpack.c.h.b16 %v4419
    %v4701 = vunpack.c.l.b16 %v4420
    %v4702 = vunpack.c.l.b16 %v4421
    %v4703 = vunpack.c.h.b16 %v4421
    %v4704 = vunpack.c.l.b16 %v4422
    %v4705 = vunpack.c.l.b16 %v4423
    %v4706 = vunpack.c.h.b16 %v4423
    %v4707 = vunpack.c.l.b16 %v4424
    %v4708 = vunpack.c.l.b16 %v4425
    %v4709 = vunpack.c.h.b16 %v4425
    %v4710 = vunpack.c.l.b16 %v4426
    %v4711 = vunpack.c.l.b16 %v4427
    %v4712 = vunpack.c.h.b16 %v4427
    %v4713 = vunpack.c.l.b16 %v4428
    %v4714 = vunpack.c.l.b16 %v4429
    %v4715 = vunpack.c.h.b16 %v4429
    %v4716 = vunpack.c.l.b16 %v4430
    %v4717 = vunpack.c.l.b16 %v4431
    %v4718 = vunpack.c.h.b16 %v4431
    %v4719 = vunpack.c.l.b16 %v4432
    %v4720 = vunpack.c.l.b16 %v4433
    %v4721 = vunpack.c.h.b16 %v4433
    %v4722 = vunpack.c.l.b16 %v4434
    %v4723 = vunpack.c.l.b16 %v4435
    %v4724 = vunpack.c.h.b16 %v4435
    %v4725 = vunpack.c.l.b16 %v4436
    %v4726 = vunpack.c.l.b16 %v4437
    %v4727 = vunpack.c.h.b16 %v4437
    %v4728 = vunpack.c.l.b16 %v4438
    %v4729 = vunpack.c.l.b16 %v4439
    %v4730 = vunpack.c.h.b16 %v4439
    %v4731 = vunpack.c.l.b16 %v4440
    %v4732 = vunpack.c.l.b16 %v4441
    %v4733 = vunpack.c.h.b16 %v4441
    %v4734 = vunpack.c.l.b16 %v4442
    %v4735 = vunpack.c.l.b16 %v4443
    %v4736 = vunpack.c.h.b16 %v4443
    %v4737 = vunpack.c.l.b16 %v4444
    %v4738 = vunpack.c.l.b16 %v4445
    %v4739 = vunpack.c.h.b16 %v4445
    %v4740 = vunpack.c.l.b16 %v4446
    %v4741 = vunpack.c.l.b16 %v4447
    %v4742 = vunpack.c.h.b16 %v4447
    %v4743 = vunpack.c.l.b16 %v4448
    %v4744 = vunpack.c.l.b16 %v4449
    %v4745 = vunpack.c.h.b16 %v4449
    %v4746 = vunpack.c.l.b16 %v4450
    %v4747 = vunpack.c.l.b16 %v4451
    %v4748 = vunpack.c.h.b16 %v4451
    %v4749 = vunpack.c.l.b16 %v4452
    %v4750 = vunpack.c.l.b16 %v4453
    %v4751 = vunpack.c.h.b16 %v4453
    %v4752 = vunpack.c.l.b16 %v4454
    %v4753 = vunpack.c.l.b16 %v4455
    %v4754 = vunpack.c.h.b16 %v4455
    %v4755 = vunpack.c.l.b16 %v4456
    %v4756 = vunpack.c.l.b16 %v4457
    %v4757 = vunpack.c.h.b16 %v4457
    %v4758 = vunpack.c.l.b16 %v4458
    %v4759 = vunpack.c.l.b16 %v4459
    %v4760 = vunpack.c.h.b16 %v4459
    %v4761 = vunpack.c.l.b16 %v4460
    %v4762 = vunpack.c.l.b16 %v4461
    %v4763 = vunpack.c.h.b16 %v4461
    %v4764 = vunpack.c.l.b16 %v4462
    %v4765 = vunpack.c.l.b16 %v4463
    %v4766 = vunpack.c.h.b16 %v4463
    %v4767 = vunpack.c.l.b16 %v4464
    %v4768 = vunpack.c.l.b16 %v4465
    %v4769 = vunpack.c.h.b16 %v4465
    %v4770 = vunpack.c.l.b16 %v4466
    %v4771 = vunpack.c.l.b16 %v4467
    %v4772 = vunpack.c.h.b16 %v4467
    %v4773 = vunpack.c.l.b16 %v4468
    %v4774 = vunpack.c.l.b16 %v4469
    %v4775 = vunpack.c.h.b16 %v4469
    %v4776 = vunpack.c.l.b16 %v4470
    %v4777 = vunpack.c.l.b16 %v4471
    %v4778 = vunpack.c.h.b16 %v4471
    %v4779 = vunpack.c.l.b16 %v4472
    %v4780 = vunpack.c.l.b16 %v4473
    %v4781 = vunpack.c.h.b16 %v4473
    %v4782 = vunpack.c.l.b16 %v4474
    %v4783 = vunpack.c.l.b16 %v4475
    %v4784 = vunpack.c.h.b16 %v4475
    %v4785 = vunpack.c.l.b16 %v4476
    %v4786 = vunpack.c.l.b16 %v4477
    %v4787 = vunpack.c.h.b16 %v4477
    %v4788 = vunpack.c.l.b16 %v4478
    %v4789 = vunpack.c.l.b16 %v4479
    %v4790 = vunpack.c.h.b16 %v4479
    %v4791 = vunpack.c.l.b16 %v4480
    %v4792 = vunpack.c.l.b16 %v4481
    %v4793 = vunpack.c.h.b16 %v4481
    %v4794 = vunpack.c.l.b16 %v4482
    %v4795 = vunpack.c.l.b16 %v4483
    %v4796 = vunpack.c.h.b16 %v4483
    %v4797 = vunpack.c.l.b16 %v4484
    %v4798 = vunpack.c.l.b16 %v4485
    %v4799 = vunpack.c.h.b16 %v4485
    %v4800 = vunpack.c.l.b16 %v4486
    %v4801 = vunpack.c.l.b16 %v4487
    %v4802 = vunpack.c.h.b16 %v4487
    %v4803 = vunpack.c.l.b16 %v4488
    %v4804 = vunpack.c.l.b16 %v4489
    %v4805 = vunpack.c.h.b16 %v4489
    %v4806 = vunpack.c.l.b16 %v4490
    %v4807 = vunpack.c.l.b16 %v4491
    %v4808 = vunpack.c.h.b16 %v4491
    %v4809 = vunpack.c.l.b16 %v4492
    %v4810 = vunpack.c.l.b16 %v4493
    %v4811 = vunpack.c.h.b16 %v4493
    %v4812 = vunpack.c.l.b16 %v4494
    %v4813 = vunpack.c.l.b16 %v4495
    %v4814 = vunpack.c.h.b16 %v4495
    %v4815 = vunpack.c.l.b16 %v4496
    %v4816 = vunpack.c.l.b16 %v4497
    %v4817 = vunpack.c.h.b16 %v4497
    %v4818 = vunpack.c.l.b16 %v4498
    %v4819 = vunpack.c.l.b16 %v4499
    %v4820 = vunpack.c.h.b16 %v4499
    %v4821 = vunpack.c.l.b16 %v4500
    %v4822 = vunpack.c.l.b16 %v4501
    %v4823 = vunpack.c.h.b16 %v4501
    %v4824 = vunpack.c.l.b16 %v4502
    %v4825 = vunpack.c.l.b16 %v4503
    %v4826 = vunpack.c.h.b16 %v4503
    %v4827 = vunpack.c.l.b16 %v4504
    %v4828 = vunpack.c.l.b16 %v4505
    %v4829 = vunpack.c.h.b16 %v4505
    %v4830 = vunpack.c.l.b16 %v4506
    %v4831 = vunpack.c.l.b16 %v4507
    %v4832 = vunpack.c.h.b16 %v4507
    %v4833 = vunpack.c.l.b16 %v4508
    %v4834 = vunpack.c.l.b16 %v4509
    %v4835 = vunpack.c.h.b16 %v4509
    %v4836 = vunpack.c.l.b16 %v4510
    %v4837 = vunpack.c.l.b16 %v4511
    %v4838 = vunpack.c.h.b16 %v4511
    %v4839 = vunpack.c.l.b16 %v4512
    %v4840 = vunpack.c.l.b16 %v4513
    %v4841 = vunpack.c.h.b16 %v4513
    %v4842 = vunpack.c.l.b16 %v4514
    %v4843 = vpack.c.b16 %v4654, %v4651
    %v4844 = vpack.c.b16 %v4655, %v4652
    %v4845 = vpack.c.b16 %v4656, %v4653
    %v4846 = vpack.c.b16 %v4660, %v4657
    %v4847 = vpack.c.b16 %v4661, %v4658
    %v4848 = vpack.c.b16 %v4662, %v4659
    %v4849 = vpack.c.b16 %v4666, %v4663
    %v4850 = vpack.c.b16 %v4667, %v4664
    %v4851 = vpack.c.b16 %v4668, %v4665
    %v4852 = vpack.c.b16 %v4672, %v4669
    %v4853 = vpack.c.b16 %v4673, %v4670
    %v4854 = vpack.c.b16 %v4674, %v4671
    %v4855 = vpack.c.b16 %v4678, %v4675
    %v4856 = vpack.c.b16 %v4679, %v4676
    %v4857 = vpack.c.b16 %v4680, %v4677
    %v4858 = vpack.c.b16 %v4684, %v4681
    %v4859 = vpack.c.b16 %v4685, %v4682
    %v4860 = vpack.c.b16 %v4686, %v4683
    %v4861 = vpack.c.b16 %v4690, %v4687
    %v4862 = vpack.c.b16 %v4691, %v4688
    %v4863 = vpack.c.b16 %v4692, %v4689
    %v4864 = vpack.c.b16 %v4696, %v4693
    %v4865 = vpack.c.b16 %v4697, %v4694
    %v4866 = vpack.c.b16 %v4698, %v4695
    %v4867 = vpack.c.b16 %v4702, %v4699
    %v4868 = vpack.c.b16 %v4703, %v4700
    %v4869 = vpack.c.b16 %v4704, %v4701
    %v4870 = vpack.c.b16 %v4708, %v4705
    %v4871 = vpack.c.b16 %v4709, %v4706
    %v4872 = vpack.c.b16 %v4710, %v4707
    %v4873 = vpack.c.b16 %v4714, %v4711
    %v4874 = vpack.c.b16 %v4715, %v4712
    %v4875 = vpack.c.b16 %v4716, %v4713
    %v4876 = vpack.c.b16 %v4720, %v4717
    %v4877 = vpack.c.b16 %v4721, %v4718
    %v4878 = vpack.c.b16 %v4722, %v4719
    %v4879 = vpack.c.b16 %v4726, %v4723
    %v4880 = vpack.c.b16 %v4727, %v4724
    %v4881 = vpack.c.b16 %v4728, %v4725
    %v4882 = vpack.c.b16 %v4732, %v4729
    %v4883 = vpack.c.b16 %v4733, %v4730
    %v4884 = vpack.c.b16 %v4734, %v4731
    %v4885 = vpack.c.b16 %v4738, %v4735
    %v4886 = vpack.c.b16 %v4739, %v4736
    %v4887 = vpack.c.b16 %v4740, %v4737
    %v4888 = vpack.c.b16 %v4744, %v4741
    %v4889 = vpack.c.b16 %v4745, %v4742
    %v4890 = vpack.c.b16 %v4746, %v4743
    %v4891 = vpack.c.b16 %v4750, %v4747
    %v4892 = vpack.c.b16 %v4751, %v4748
    %v4893 = vpack.c.b16 %v4752, %v4749
    %v4894 = vpack.c.b16 %v4756, %v4753
    %v4895 = vpack.c.b16 %v4757, %v4754
    %v4896 = vpack.c.b16 %v4758, %v4755
    %v4897 = vpack.c.b16 %v4762, %v4759
    %v4898 = vpack.c.b16 %v4763, %v4760
    %v4899 = vpack.c.b16 %v4764, %v4761
    %v4900 = vpack.c.b16 %v4768, %v4765
    %v4901 = vpack.c.b16 %v4769, %v4766
    %v4902 = vpack.c.b16 %v4770, %v4767
    %v4903 = vpack.c.b16 %v4774, %v4771
    %v4904 = vpack.c.b16 %v4775, %v4772
    %v4905 = vpack.c.b16 %v4776, %v4773
    %v4906 = vpack.c.b16 %v4780, %v4777
    %v4907 = vpack.c.b16 %v4781, %v4778
    %v4908 = vpack.c.b16 %v4782, %v4779
    %v4909 = vpack.c.b16 %v4786, %v4783
    %v4910 = vpack.c.b16 %v4787, %v4784
    %v4911 = vpack.c.b16 %v4788, %v4785
    %v4912 = vpack.c.b16 %v4792, %v4789
    %v4913 = vpack.c.b16 %v4793, %v4790
    %v4914 = vpack.c.b16 %v4794, %v4791
    %v4915 = vpack.c.b16 %v4798, %v4795
    %v4916 = vpack.c.b16 %v4799, %v4796
    %v4917 = vpack.c.b16 %v4800, %v4797
    %v4918 = vpack.c.b16 %v4804, %v4801
    %v4919 = vpack.c.b16 %v4805, %v4802
    %v4920 = vpack.c.b16 %v4806, %v4803
    %v4921 = vpack.c.b16 %v4810, %v4807
    %v4922 = vpack.c.b16 %v4811, %v4808
    %v4923 = vpack.c.b16 %v4812, %v4809
    %v4924 = vpack.c.b16 %v4816, %v4813
    %v4925 = vpack.c.b16 %v4817, %v4814
    %v4926 = vpack.c.b16 %v4818, %v4815
    %v4927 = vpack.c.b16 %v4822, %v4819
    %v4928 = vpack.c.b16 %v4823, %v4820
    %v4929 = vpack.c.b16 %v4824, %v4821
    %v4930 = vpack.c.b16 %v4828, %v4825
    %v4931 = vpack.c.b16 %v4829, %v4826
    %v4932 = vpack.c.b16 %v4830, %v4827
    %v4933 = vpack.c.b16 %v4834, %v4831
    %v4934 = vpack.c.b16 %v4835, %v4832
    %v4935 = vpack.c.b16 %v4836, %v4833
    %v4936 = vpack.c.b16 %v4840, %v4837
    %v4937 = vpack.c.b16 %v4841, %v4838
    %v4938 = vpack.c.b16 %v4842, %v4839
    %5035 = vmatpush.bf16.msra.mxu0 %v4864
    %5036 = vmatpush.bf16.msra.mxu0 %v4861
    %5037 = vmatpush.bf16.msra.mxu0 %v4858
    %5038 = vmatpush.bf16.msra.mxu0 %v4855
    %5039 = vmatpush.bf16.msra.mxu0 %v4852
    %5040 = vmatpush.bf16.msra.mxu0 %v4849
    %5041 = vmatpush.bf16.msra.mxu0 %v4846
    %5042 = vmatpush.bf16.msra.mxu0 %v4843
    %5043 = vmatmul.bf16.gmra.mxu0 %v4383
    %v5044 = vpop.f32.mrf.mxu0
    %v5045 = vadd.f32 %v4517, %v5044
    %v5046 = vpop.f32.mrf.mxu0
    %5047 = vdwg.mxu0
    %5048 = vmatpush.bf16.msra.mxu0 %v4888
    %5049 = vmatpush.bf16.msra.mxu0 %v4885
    %5050 = vmatpush.bf16.msra.mxu0 %v4882
    %5051 = vmatpush.bf16.msra.mxu0 %v4879
    %5052 = vmatpush.bf16.msra.mxu0 %v4876
    %5053 = vmatpush.bf16.msra.mxu0 %v4873
    %5054 = vmatpush.bf16.msra.mxu0 %v4870
    %5055 = vmatpush.bf16.msra.mxu0 %v4867
    %5056 = vmatmul.bf16.gmra.mxu0 %v4384
    %v5057 = vpop.f32.mrf.mxu0
    %v5058 = vadd.f32 %v5045, %v5057
    %v5059 = vpop.f32.mrf.mxu0
    %5060 = vdwg.mxu0
    %5061 = vmatpush.bf16.msra.mxu0 %v4912
    %5062 = vmatpush.bf16.msra.mxu0 %v4909
    %5063 = vmatpush.bf16.msra.mxu0 %v4906
    %5064 = vmatpush.bf16.msra.mxu0 %v4903
    %5065 = vmatpush.bf16.msra.mxu0 %v4900
    %5066 = vmatpush.bf16.msra.mxu0 %v4897
    %5067 = vmatpush.bf16.msra.mxu0 %v4894
    %5068 = vmatpush.bf16.msra.mxu0 %v4891
    %5069 = vmatmul.bf16.gmra.mxu0 %v4385
    %v5070 = vpop.f32.mrf.mxu0
    %v5071 = vadd.f32 %v5058, %v5070
    %v5072 = vpop.f32.mrf.mxu0
    %5073 = vdwg.mxu0
    %5074 = vmatpush.bf16.msra.mxu0 %v4936
    %5075 = vmatpush.bf16.msra.mxu0 %v4933
    %5076 = vmatpush.bf16.msra.mxu0 %v4930
    %5077 = vmatpush.bf16.msra.mxu0 %v4927
    %5078 = vmatpush.bf16.msra.mxu0 %v4924
    %5079 = vmatpush.bf16.msra.mxu0 %v4921
    %5080 = vmatpush.bf16.msra.mxu0 %v4918
    %5081 = vmatpush.bf16.msra.mxu0 %v4915
    %5082 = vmatmul.bf16.gmra.mxu0 %v4386
    %v5083 = vpop.f32.mrf.mxu0
    %v5084 = vadd.f32 %v5071, %v5083
    %v5085 = vpop.f32.mrf.mxu0
    %5086 = vdwg.mxu0
    %5087 = vmatpush.bf16.msra.mxu0 %v4865
    %5088 = vmatpush.bf16.msra.mxu0 %v4862
    %5089 = vmatpush.bf16.msra.mxu0 %v4859
    %5090 = vmatpush.bf16.msra.mxu0 %v4856
    %5091 = vmatpush.bf16.msra.mxu0 %v4853
    %5092 = vmatpush.bf16.msra.mxu0 %v4850
    %5093 = vmatpush.bf16.msra.mxu0 %v4847
    %5094 = vmatpush.bf16.msra.mxu0 %v4844
    %5095 = vmatmul.bf16.gmra.mxu0 %v4383
    %v5096 = vpop.f32.mrf.mxu0
    %v5097 = vadd.f32 %v4518, %v5096
    %v5098 = vpop.f32.mrf.mxu0
    %5099 = vdwg.mxu0
    %5100 = vmatpush.bf16.msra.mxu0 %v4889
    %5101 = vmatpush.bf16.msra.mxu0 %v4886
    %5102 = vmatpush.bf16.msra.mxu0 %v4883
    %5103 = vmatpush.bf16.msra.mxu0 %v4880
    %5104 = vmatpush.bf16.msra.mxu0 %v4877
    %5105 = vmatpush.bf16.msra.mxu0 %v4874
    %5106 = vmatpush.bf16.msra.mxu0 %v4871
    %5107 = vmatpush.bf16.msra.mxu0 %v4868
    %5108 = vmatmul.bf16.gmra.mxu0 %v4384
    %v5109 = vpop.f32.mrf.mxu0
    %v5110 = vadd.f32 %v5097, %v5109
    %v5111 = vpop.f32.mrf.mxu0
    %5112 = vdwg.mxu0
    %5113 = vmatpush.bf16.msra.mxu0 %v4913
    %5114 = vmatpush.bf16.msra.mxu0 %v4910
    %5115 = vmatpush.bf16.msra.mxu0 %v4907
    %5116 = vmatpush.bf16.msra.mxu0 %v4904
    %5117 = vmatpush.bf16.msra.mxu0 %v4901
    %5118 = vmatpush.bf16.msra.mxu0 %v4898
    %5119 = vmatpush.bf16.msra.mxu0 %v4895
    %5120 = vmatpush.bf16.msra.mxu0 %v4892
    %5121 = vmatmul.bf16.gmra.mxu0 %v4385
    %v5122 = vpop.f32.mrf.mxu0
    %v5123 = vadd.f32 %v5110, %v5122
    %v5124 = vpop.f32.mrf.mxu0
    %5125 = vdwg.mxu0
    %5126 = vmatpush.bf16.msra.mxu0 %v4937
    %5127 = vmatpush.bf16.msra.mxu0 %v4934
    %5128 = vmatpush.bf16.msra.mxu0 %v4931
    %5129 = vmatpush.bf16.msra.mxu0 %v4928
    %5130 = vmatpush.bf16.msra.mxu0 %v4925
    %5131 = vmatpush.bf16.msra.mxu0 %v4922
    %5132 = vmatpush.bf16.msra.mxu0 %v4919
    %5133 = vmatpush.bf16.msra.mxu0 %v4916
    %5134 = vmatmul.bf16.gmra.mxu0 %v4386
    %v5135 = vpop.f32.mrf.mxu0
    %v5136 = vadd.f32 %v5123, %v5135
    %v5137 = vpop.f32.mrf.mxu0
    %5138 = vdwg.mxu0
    %5139 = vmatpush.bf16.msra.mxu0 %v4866
    %5140 = vmatpush.bf16.msra.mxu0 %v4863
    %5141 = vmatpush.bf16.msra.mxu0 %v4860
    %5142 = vmatpush.bf16.msra.mxu0 %v4857
    %5143 = vmatpush.bf16.msra.mxu0 %v4854
    %5144 = vmatpush.bf16.msra.mxu0 %v4851
    %5145 = vmatpush.bf16.msra.mxu0 %v4848
    %5146 = vmatpush.bf16.msra.mxu0 %v4845
    %5147 = vmatmul.bf16.gmra.mxu0 %v4383
    %v5148 = vpop.f32.mrf.mxu0
    %v5149 = vadd.f32 %v4519, %v5148
    %v5150 = vpop.f32.mrf.mxu0
    %5151 = vdwg.mxu0
    %5152 = vmatpush.bf16.msra.mxu0 %v4890
    %5153 = vmatpush.bf16.msra.mxu0 %v4887
    %5154 = vmatpush.bf16.msra.mxu0 %v4884
    %5155 = vmatpush.bf16.msra.mxu0 %v4881
    %5156 = vmatpush.bf16.msra.mxu0 %v4878
    %5157 = vmatpush.bf16.msra.mxu0 %v4875
    %5158 = vmatpush.bf16.msra.mxu0 %v4872
    %5159 = vmatpush.bf16.msra.mxu0 %v4869
    %5160 = vmatmul.bf16.gmra.mxu0 %v4384
    %v5161 = vpop.f32.mrf.mxu0
    %v5162 = vadd.f32 %v5149, %v5161
    %v5163 = vpop.f32.mrf.mxu0
    %5164 = vdwg.mxu0
    %5165 = vmatpush.bf16.msra.mxu0 %v4914
    %5166 = vmatpush.bf16.msra.mxu0 %v4911
    %5167 = vmatpush.bf16.msra.mxu0 %v4908
    %5168 = vmatpush.bf16.msra.mxu0 %v4905
    %5169 = vmatpush.bf16.msra.mxu0 %v4902
    %5170 = vmatpush.bf16.msra.mxu0 %v4899
    %5171 = vmatpush.bf16.msra.mxu0 %v4896
    %5172 = vmatpush.bf16.msra.mxu0 %v4893
    %5173 = vmatmul.bf16.gmra.mxu0 %v4385
    %v5174 = vpop.f32.mrf.mxu0
    %v5175 = vadd.f32 %v5162, %v5174
    %v5176 = vpop.f32.mrf.mxu0
    %5177 = vdwg.mxu0
    %5178 = vmatpush.bf16.msra.mxu0 %v4938
    %5179 = vmatpush.bf16.msra.mxu0 %v4935
    %5180 = vmatpush.bf16.msra.mxu0 %v4932
    %5181 = vmatpush.bf16.msra.mxu0 %v4929
    %5182 = vmatpush.bf16.msra.mxu0 %v4926
    %5183 = vmatpush.bf16.msra.mxu0 %v4923
    %5184 = vmatpush.bf16.msra.mxu0 %v4920
    %5185 = vmatpush.bf16.msra.mxu0 %v4917
    %5186 = vmatmul.bf16.gmra.mxu0 %v4386
    %v5187 = vpop.f32.mrf.mxu0
    %v5188 = vadd.f32 %v5175, %v5187
    %v5189 = vpop.f32.mrf.mxu0
    %5190 = vdwg.mxu0
    %5191 = vst [vmem:[%s5] sm:$0xff] %v5084
    %5192 = vst [vmem:[%s5 + $0x8] sm:$0xff] %v5136
    %5193 = vst [vmem:[%s5 + $0x10] sm:$0xff] %v5188
    // Predicated region
    $region38: #{att_forward.1} parent=1 // pred_check
      _
    $region39: #{att_forward.1} parent=1 // pred_check_branch
      %5195 = sbr.rel (0) target = $region41
    $region40: #{att_forward.1} parent=1 // pred_region
      _
    $region41: #{att_forward.1} parent=1 // pred_fallthru
      _
    // Predicated region
    $region42: #{att_forward.1} parent=1 // pred_check
      _
    $region43: #{att_forward.1} parent=1 // pred_check_branch
      %5197 = sbr.rel (0) target = $region45
    $region44: #{att_forward.1} parent=1 // pred_region
      _
    $region45: #{att_forward.1} parent=1 // pred_fallthru
      _
    %5198 = vsyncpa [#allocation3], 1
    %5199 = vsyncpa [#allocation5], 1
    %5200 = vsyncpa [#allocation8], 1

</llo_original>
